<compile_context>
chip_gen: v6e
topology: v6e:2x2x1
jax: 0.10.0
libtpu: 0.0.40
codegen_flags: <defaults>
</compile_context>

<pallas_src>
import functools

import jax
import jax.numpy as jnp
from jax.experimental import pallas as pl
from jax.experimental.pallas import tpu as pltpu


# ----------------------------- model config ---------------------------------
IN_N = 3        # input features (chunked into x, y, z)
M = 32          # hidden width
DEPTH = 2       # number of residual Blocks
OUT_N = 1       # output features
SUB = 512       # in-kernel sub-tile (lanes): ~35-40 live vregs at f32
TM_MAX = 2048   # max lanes per grid step (amortizes per-step overhead)


# ------------------------------- kernel --------------------------------------
def drrnn_kernel(x_ref, w0_ref, b0_ref, wb1_ref, bb1_ref, wb2_ref, bb2_ref,
                 wl_ref, bl_ref, o_ref, *, depth, sub, compute_dtype):
    cd = compute_dtype
    n_sub = x_ref.shape[-1] // sub          # sub-tiles per grid step (static)

    def sub_body(s, carry):
        c0 = pl.multiple_of(s * sub, sub)   # aligned lane offset of sub-tile
        x = x_ref[:, pl.ds(c0, sub)]        # (IN_N, sub) f32, batch on lanes
        dx = x[0:1, :]
        dy = x[1:2, :]
        dz = x[2:3, :]

        # First Linear (K = 3): three VPU broadcast FMAs; an MXU pass with a
        # 3-deep contraction would be almost pure latency.
        w0 = w0_ref[...]                    # (M, IN_N) f32
        h = (w0[:, 0:1] * dx + w0[:, 1:2] * dy + w0[:, 2:3] * dz
             + b0_ref[...])                 # (M, sub) f32

        # Residual Blocks: h = tanh(W2 @ tanh(W1 @ h + b1) + b2) + h.
        # Matmul operands and tanh run in compute_dtype (bf16 on v6e/v7x);
        # accumulation, biases and the residual stream stay f32.
        for d in range(depth):              # static unroll (depth = 2)
            z = jnp.dot(wb1_ref[d], h.astype(cd),
                        preferred_element_type=jnp.float32) + bb1_ref[d]
            t = jnp.tanh(z.astype(cd))
            z = jnp.dot(wb2_ref[d], t,
                        preferred_element_type=jnp.float32) + bb2_ref[d]
            t = jnp.tanh(z.astype(cd))
            h = t.astype(jnp.float32) + h   # residual add stays f32

        # Final Linear (OUT_N = 1): VPU multiply + sublane (XLU) reduce
        # instead of an N=1 MXU pass.
        y = jnp.sum(h * wl_ref[...], axis=0, keepdims=True) + bl_ref[...]

        # Boundary factor x*y*z*(1-x)*(1-y)*(1-z); lane-aligned store.
        o_ref[:, pl.ds(c0, sub)] = (y * dx * dy * dz
                                    * (1.0 - dx) * (1.0 - dy) * (1.0 - dz))
        return carry

    jax.lax.fori_loop(0, n_sub, sub_body, 0, unroll=True)


# ---------------------------- tile-size heuristic ----------------------------
def _choose_tile(n):
    """Lanes per grid step.

    Big tiles amortize the fixed ~600-cycle per-grid-step overhead; among the
    candidates we minimize a per-TensorCore wall proxy so the grid step count
    comes out even (>= 2) for v7x's two TensorCores whenever N allows.
    """
    if n <= SUB:
        return n                      # single (possibly ragged) full-dim block
    best_tm, best_cost = SUB, None
    for s in range(TM_MAX // SUB, 0, -1):
        tm = s * SUB
        steps = pl.cdiv(n, tm)
        # fixed per-step overhead ~ 128 lanes worth of compute
        cost = pl.cdiv(steps, 2) * (tm + 128)
        if best_cost is None or cost < best_cost:
            best_tm, best_cost = tm, cost
    return best_tm


# ------------------------------- wrappers -------------------------------------
def drrnn_forward_t(x_t, params, *, compute_dtype=jnp.float32, tm=None):
    """Fast path.  x_t: (IN_N, N) features-major (batch on lanes) -> (OUT_N, N).

    No host-side padding or transposition; the ragged tail of the last grid
    step is handled by Pallas' OOB block masking.
    """
    (w0, b0, wb1, bb1, wb2, bb2, wl, bl) = params
    in_n, n = x_t.shape
    assert in_n == IN_N, "first-layer VPU path assumes IN_N == 3"
    assert OUT_N == 1, "final-layer reduce path assumes OUT_N == 1"

    if tm is None:
        tm = _choose_tile(n)
    sub = min(SUB, tm)
    grid = (pl.cdiv(n, tm),)

    kernel = functools.partial(drrnn_kernel, depth=DEPTH, sub=sub,
                               compute_dtype=compute_dtype)

    const2 = lambda a: pl.BlockSpec(a.shape, lambda i: (0, 0))
    const3 = lambda a: pl.BlockSpec(a.shape, lambda i: (0, 0, 0))

    out = pl.pallas_call(
        kernel,
        out_shape=jax.ShapeDtypeStruct((OUT_N, n), jnp.float32),
        grid_spec=pltpu.PrefetchScalarGridSpec(
            num_scalar_prefetch=0,
            grid=grid,
            in_specs=[
                pl.BlockSpec((IN_N, tm), lambda i: (0, i)),   # x tile (3, tm)
                const2(w0),                                   # (M, IN_N)
                const2(b0),                                   # (M, 1)
                const3(wb1),                                  # (DEPTH, M, M)
                const3(bb1),                                  # (DEPTH, M, 1)
                const3(wb2),                                  # (DEPTH, M, M)
                const3(bb2),                                  # (DEPTH, M, 1)
                const2(wl),                                   # (M, OUT_N)
                const2(bl),                                   # (1, 1)
            ],
            out_specs=pl.BlockSpec((OUT_N, tm), lambda i: (0, i)),
        ),
        compiler_params=pltpu.CompilerParams(
            dimension_semantics=("parallel",)),
    )(x_t.astype(jnp.float32),
      w0, b0,
      wb1.astype(compute_dtype), bb1,
      wb2.astype(compute_dtype), bb2,
      wl, bl)
    return out


def drrnn_forward(x, params, *, compute_dtype=jnp.float32):
    """PyTorch-parity entry point: x (N, IN_N) -> (N, OUT_N).

    Prefer drrnn_forward_t with features-major (IN_N, N) input to avoid the
    wrapper-side transpose (an (N, 3) array also wastes HBM: XLA pads the
    3-wide minor dim to 128 lanes).
    """
    return drrnn_forward_t(x.T, params, compute_dtype=compute_dtype).T


# --------------------------- param initialization ----------------------------
def init_params(key):
    """PyTorch-Linear-style init (uniform +/- 1/sqrt(fan_in)).

    Weights stored PyTorch-native (out_features, in_features) except the last
    layer, stored as an (M, OUT_N) column for the in-kernel sublane reduce.
    Biases stored as (out_features, 1) columns (broadcast over lanes).
    """
    keys = jax.random.split(key, 4)

    def lin(k, fan_in, fan_out, extra_leading=()):
        bound = 1.0 / jnp.sqrt(jnp.float32(fan_in))
        kw, kb = jax.random.split(k)
        w = jax.random.uniform(kw, extra_leading + (fan_out, fan_in),
                               jnp.float32, -bound, bound)
        b = jax.random.uniform(kb, extra_leading + (fan_out, 1),
                               jnp.float32, -bound, bound)
        return w, b

    w0, b0 = lin(keys[0], IN_N, M)              # stack[0]:  (M, IN_N), (M, 1)
    wb1, bb1 = lin(keys[1], M, M, (DEPTH,))     # Block.L1:  (DEPTH, M, M)
    wb2, bb2 = lin(keys[2], M, M, (DEPTH,))     # Block.L2:  (DEPTH, M, M)
    wl_t, bl_t = lin(keys[3], M, OUT_N)         # stack[-1]: (OUT_N, M), (OUT_N, 1)
    wl = wl_t.T                                 # (M, OUT_N) column for reduce
    bl = bl_t                                   # (OUT_N, 1) == (1, 1)
    return (w0, b0, wb1, bb1, wb2, bb2, wl, bl)


# ------------------------------ pure-JAX reference ---------------------------
def drrnn_reference(x, params, *, compute_dtype=jnp.float32):
    """Reference on (N, IN_N) input; mirrors the kernel's dtype choices."""
    (w0, b0, wb1, bb1, wb2, bb2, wl, bl) = params
    cd = compute_dtype
    dx, dy, dz = x[:, 0:1], x[:, 1:2], x[:, 2:3]
    h = x @ w0.T + b0.T                              # (N, M) f32
    for d in range(DEPTH):
        z = jnp.dot(h.astype(cd), wb1[d].astype(cd).T,
                    preferred_element_type=jnp.float32) + bb1[d].T
        t = jnp.tanh(z.astype(cd))
        z = jnp.dot(t, wb2[d].astype(cd).T,
                    preferred_element_type=jnp.float32) + bb2[d].T
        t = jnp.tanh(z.astype(cd))
        h = t.astype(jnp.float32) + h
    y = h @ wl + bl.T                                # (N, OUT_N)
    return y * dx * dy * dz * (1 - dx) * (1 - dy) * (1 - dz)


# ---------------------------------- main -------------------------------------
if __name__ == "__main__":
    key = jax.random.PRNGKey(0)
    k_x, k_x2, k_p = jax.random.split(key, 3)
    params = init_params(k_p)

    # Collocation points generated directly in features-major (3, N) layout
    # (batch on lanes): no wrapper-side pad/transpose HBM round trips.
    N = 4096                       # -> 2 grid steps of 2048 lanes (even, v7x)
    x_t = jax.random.uniform(k_x, (IN_N, N), jnp.float32)

    # f32 path (exact PyTorch-parity numerics; also the v5e-recommended path).
    out = jax.block_until_ready(drrnn_forward_t(x_t, params))
    ref = drrnn_reference(x_t.T, params)
    assert out.shape == (OUT_N, N)
    assert jnp.allclose(out.T, ref, atol=1e-5, rtol=1e-5)

    # bf16 fast path (v6e/v7x: bf16 MXU operands + bf16 EUP tanh, f32
    # accumulation/residual).  Compared against the bf16-mirroring reference
    # with a relaxed tolerance (deliberate precision/perf tradeoff).
    out_bf = jax.block_until_ready(
        drrnn_forward_t(x_t, params, compute_dtype=jnp.bfloat16))
    ref_bf = drrnn_reference(x_t.T, params, compute_dtype=jnp.bfloat16)
    assert bool(jnp.all(jnp.isfinite(out_bf)))
    assert jnp.allclose(out_bf.T, ref_bf, atol=5e-3, rtol=5e-2)

    # PyTorch-parity entry point ((N, 3) in, (N, 1) out) on a ragged batch:
    # exercises the in-kernel OOB-masked tail (no host-side padding).
    N2 = 1000
    x2 = jax.random.uniform(k_x2, (N2, IN_N), jnp.float32)
    out2 = jax.block_until_ready(drrnn_forward(x2, params))
    ref2 = drrnn_reference(x2, params)
    assert out2.shape == (N2, OUT_N)
    assert jnp.allclose(out2, ref2, atol=1e-5, rtol=1e-5)

    print("KERNEL_OK")
</pallas_src>

<mosaic_0001>
module attributes {stable_mosaic.version = 11 : i64} {
  func.func @drrnn_kernel(%arg0: i32, %arg1: memref<3x2048xf32, #tpu.memory_space<vmem>>, %arg2: memref<32x3xf32, #tpu.memory_space<vmem>>, %arg3: memref<32x1xf32, #tpu.memory_space<vmem>>, %arg4: memref<2x32x32xf32, #tpu.memory_space<vmem>>, %arg5: memref<2x32x1xf32, #tpu.memory_space<vmem>>, %arg6: memref<2x32x32xf32, #tpu.memory_space<vmem>>, %arg7: memref<2x32x1xf32, #tpu.memory_space<vmem>>, %arg8: memref<32x1xf32, #tpu.memory_space<vmem>>, %arg9: memref<1x1xf32, #tpu.memory_space<vmem>>, %arg10: memref<1x2048xf32, #tpu.memory_space<vmem>>) attributes {dimension_semantics = [#tpu.dimension_semantics<parallel>], iteration_bounds = array<i64: 2>, scalar_prefetch = 0 : i64, scratch_operands = 0 : i64, tpu.core_type = #tpu.core_type<tc>, window_params = [{transform_indices = @transform_0, window_bounds = array<i64: 3, 2048>}, {pipeline_mode = #tpu.pipeline_mode<synchronous>, transform_indices = @transform_1, window_bounds = array<i64: 32, 3>}, {pipeline_mode = #tpu.pipeline_mode<synchronous>, transform_indices = @transform_2, window_bounds = array<i64: 32, 1>}, {pipeline_mode = #tpu.pipeline_mode<synchronous>, transform_indices = @transform_3, window_bounds = array<i64: 2, 32, 32>}, {pipeline_mode = #tpu.pipeline_mode<synchronous>, transform_indices = @transform_4, window_bounds = array<i64: 2, 32, 1>}, {pipeline_mode = #tpu.pipeline_mode<synchronous>, transform_indices = @transform_5, window_bounds = array<i64: 2, 32, 32>}, {pipeline_mode = #tpu.pipeline_mode<synchronous>, transform_indices = @transform_6, window_bounds = array<i64: 2, 32, 1>}, {pipeline_mode = #tpu.pipeline_mode<synchronous>, transform_indices = @transform_7, window_bounds = array<i64: 32, 1>}, {pipeline_mode = #tpu.pipeline_mode<synchronous>, transform_indices = @transform_8, window_bounds = array<i64: 1, 1>}, {transform_indices = @transform_9, window_bounds = array<i64: 1, 2048>}]} {
    %c0_i32 = arith.constant 0 : i32
    %c512_i32 = arith.constant 512 : i32
    %0 = arith.muli %c0_i32, %c512_i32 : i32
    %1 = tpu.assume_multiple %0, 512 : i32
    %c0 = arith.constant 0 : index
    %2 = arith.index_cast %1 : i32 to index
    %3 = vector.load %arg1[%c0, %2] : memref<3x2048xf32, #tpu.memory_space<vmem>>, vector<3x512xf32>
    %4 = vector.extract_strided_slice %3 {offsets = [0, 0], sizes = [1, 512], strides = [1, 1]} : vector<3x512xf32> to vector<1x512xf32>
    %5 = vector.extract_strided_slice %3 {offsets = [1, 0], sizes = [1, 512], strides = [1, 1]} : vector<3x512xf32> to vector<1x512xf32>
    %6 = vector.extract_strided_slice %3 {offsets = [2, 0], sizes = [1, 512], strides = [1, 1]} : vector<3x512xf32> to vector<1x512xf32>
    %c0_0 = arith.constant 0 : index
    %c0_1 = arith.constant 0 : index
    %7 = vector.load %arg2[%c0_0, %c0_1] : memref<32x3xf32, #tpu.memory_space<vmem>>, vector<32x3xf32>
    %8 = vector.extract_strided_slice %7 {offsets = [0, 0], sizes = [32, 1], strides = [1, 1]} : vector<32x3xf32> to vector<32x1xf32>
    %9 = vector.broadcast %8 : vector<32x1xf32> to vector<32x512xf32>
    %10 = vector.broadcast %4 : vector<1x512xf32> to vector<32x512xf32>
    %11 = arith.mulf %9, %10 : vector<32x512xf32>
    %12 = vector.extract_strided_slice %7 {offsets = [0, 1], sizes = [32, 1], strides = [1, 1]} : vector<32x3xf32> to vector<32x1xf32>
    %13 = vector.broadcast %12 : vector<32x1xf32> to vector<32x512xf32>
    %14 = vector.broadcast %5 : vector<1x512xf32> to vector<32x512xf32>
    %15 = arith.mulf %13, %14 : vector<32x512xf32>
    %16 = arith.addf %11, %15 : vector<32x512xf32>
    %17 = vector.extract_strided_slice %7 {offsets = [0, 2], sizes = [32, 1], strides = [1, 1]} : vector<32x3xf32> to vector<32x1xf32>
    %18 = vector.broadcast %17 : vector<32x1xf32> to vector<32x512xf32>
    %19 = vector.broadcast %6 : vector<1x512xf32> to vector<32x512xf32>
    %20 = arith.mulf %18, %19 : vector<32x512xf32>
    %21 = arith.addf %16, %20 : vector<32x512xf32>
    %c0_2 = arith.constant 0 : index
    %c0_3 = arith.constant 0 : index
    %22 = vector.load %arg3[%c0_2, %c0_3] : memref<32x1xf32, #tpu.memory_space<vmem>>, vector<32x1xf32>
    %23 = vector.broadcast %22 : vector<32x1xf32> to vector<32x512xf32>
    %24 = arith.addf %21, %23 : vector<32x512xf32>
    %c0_4 = arith.constant 0 : index
    %c0_5 = arith.constant 0 : index
    %c0_6 = arith.constant 0 : index
    %25 = vector.load %arg4[%c0_4, %c0_5, %c0_6] : memref<2x32x32xf32, #tpu.memory_space<vmem>>, vector<1x32x32xf32>
    %26 = vector.shape_cast %25 : vector<1x32x32xf32> to vector<32x32xf32>
    %cst = arith.constant dense<0.000000e+00> : vector<32x512xf32>
    %27 = tpu.matmul %26, %24, %cst {dimension_numbers = #tpu.dot_dimension_numbers<[1], [0], [0], [1], [0, 0, 1, 1], [], []>} : vector<32x32xf32>, vector<32x512xf32>, vector<32x512xf32> -> vector<32x512xf32>
    %c0_7 = arith.constant 0 : index
    %c0_8 = arith.constant 0 : index
    %c0_9 = arith.constant 0 : index
    %28 = vector.load %arg5[%c0_7, %c0_8, %c0_9] : memref<2x32x1xf32, #tpu.memory_space<vmem>>, vector<1x32x1xf32>
    %29 = vector.shape_cast %28 : vector<1x32x1xf32> to vector<32x1xf32>
    %30 = vector.broadcast %29 : vector<32x1xf32> to vector<32x512xf32>
    %31 = arith.addf %27, %30 : vector<32x512xf32>
    %32 = math.tanh %31 : vector<32x512xf32>
    %c0_10 = arith.constant 0 : index
    %c0_11 = arith.constant 0 : index
    %c0_12 = arith.constant 0 : index
    %33 = vector.load %arg6[%c0_10, %c0_11, %c0_12] : memref<2x32x32xf32, #tpu.memory_space<vmem>>, vector<1x32x32xf32>
    %34 = vector.shape_cast %33 : vector<1x32x32xf32> to vector<32x32xf32>
    %cst_13 = arith.constant dense<0.000000e+00> : vector<32x512xf32>
    %35 = tpu.matmul %34, %32, %cst_13 {dimension_numbers = #tpu.dot_dimension_numbers<[1], [0], [0], [1], [0, 0, 1, 1], [], []>} : vector<32x32xf32>, vector<32x512xf32>, vector<32x512xf32> -> vector<32x512xf32>
    %c0_14 = arith.constant 0 : index
    %c0_15 = arith.constant 0 : index
    %c0_16 = arith.constant 0 : index
    %36 = vector.load %arg7[%c0_14, %c0_15, %c0_16] : memref<2x32x1xf32, #tpu.memory_space<vmem>>, vector<1x32x1xf32>
    %37 = vector.shape_cast %36 : vector<1x32x1xf32> to vector<32x1xf32>
    %38 = vector.broadcast %37 : vector<32x1xf32> to vector<32x512xf32>
    %39 = arith.addf %35, %38 : vector<32x512xf32>
    %40 = math.tanh %39 : vector<32x512xf32>
    %41 = arith.addf %40, %24 : vector<32x512xf32>
    %c1 = arith.constant 1 : index
    %c0_17 = arith.constant 0 : index
    %c0_18 = arith.constant 0 : index
    %42 = vector.load %arg4[%c1, %c0_17, %c0_18] : memref<2x32x32xf32, #tpu.memory_space<vmem>>, vector<1x32x32xf32>
    %43 = vector.shape_cast %42 : vector<1x32x32xf32> to vector<32x32xf32>
    %cst_19 = arith.constant dense<0.000000e+00> : vector<32x512xf32>
    %44 = tpu.matmul %43, %41, %cst_19 {dimension_numbers = #tpu.dot_dimension_numbers<[1], [0], [0], [1], [0, 0, 1, 1], [], []>} : vector<32x32xf32>, vector<32x512xf32>, vector<32x512xf32> -> vector<32x512xf32>
    %c1_20 = arith.constant 1 : index
    %c0_21 = arith.constant 0 : index
    %c0_22 = arith.constant 0 : index
    %45 = vector.load %arg5[%c1_20, %c0_21, %c0_22] : memref<2x32x1xf32, #tpu.memory_space<vmem>>, vector<1x32x1xf32>
    %46 = vector.shape_cast %45 : vector<1x32x1xf32> to vector<32x1xf32>
    %47 = vector.broadcast %46 : vector<32x1xf32> to vector<32x512xf32>
    %48 = arith.addf %44, %47 : vector<32x512xf32>
    %49 = math.tanh %48 : vector<32x512xf32>
    %c1_23 = arith.constant 1 : index
    %c0_24 = arith.constant 0 : index
    %c0_25 = arith.constant 0 : index
    %50 = vector.load %arg6[%c1_23, %c0_24, %c0_25] : memref<2x32x32xf32, #tpu.memory_space<vmem>>, vector<1x32x32xf32>
    %51 = vector.shape_cast %50 : vector<1x32x32xf32> to vector<32x32xf32>
    %cst_26 = arith.constant dense<0.000000e+00> : vector<32x512xf32>
    %52 = tpu.matmul %51, %49, %cst_26 {dimension_numbers = #tpu.dot_dimension_numbers<[1], [0], [0], [1], [0, 0, 1, 1], [], []>} : vector<32x32xf32>, vector<32x512xf32>, vector<32x512xf32> -> vector<32x512xf32>
    %c1_27 = arith.constant 1 : index
    %c0_28 = arith.constant 0 : index
    %c0_29 = arith.constant 0 : index
    %53 = vector.load %arg7[%c1_27, %c0_28, %c0_29] : memref<2x32x1xf32, #tpu.memory_space<vmem>>, vector<1x32x1xf32>
    %54 = vector.shape_cast %53 : vector<1x32x1xf32> to vector<32x1xf32>
    %55 = vector.broadcast %54 : vector<32x1xf32> to vector<32x512xf32>
    %56 = arith.addf %52, %55 : vector<32x512xf32>
    %57 = math.tanh %56 : vector<32x512xf32>
    %58 = arith.addf %57, %41 : vector<32x512xf32>
    %c0_30 = arith.constant 0 : index
    %c0_31 = arith.constant 0 : index
    %59 = vector.load %arg8[%c0_30, %c0_31] : memref<32x1xf32, #tpu.memory_space<vmem>>, vector<32x1xf32>
    %60 = vector.broadcast %59 : vector<32x1xf32> to vector<32x512xf32>
    %61 = arith.mulf %58, %60 : vector<32x512xf32>
    %cst_32 = arith.constant dense<0.000000e+00> : vector<512xf32>
    %62 = vector.multi_reduction <add>, %61, %cst_32 [0] : vector<32x512xf32> to vector<512xf32>
    %63 = vector.shape_cast %62 : vector<512xf32> to vector<1x512xf32>
    %c0_33 = arith.constant 0 : index
    %c0_34 = arith.constant 0 : index
    %64 = vector.load %arg9[%c0_33, %c0_34] : memref<1x1xf32, #tpu.memory_space<vmem>>, vector<1x1xf32>
    %65 = vector.broadcast %64 : vector<1x1xf32> to vector<1x512xf32>
    %66 = arith.addf %63, %65 : vector<1x512xf32>
    %67 = arith.mulf %66, %4 : vector<1x512xf32>
    %68 = arith.mulf %67, %5 : vector<1x512xf32>
    %69 = arith.mulf %68, %6 : vector<1x512xf32>
    %cst_35 = arith.constant 1.000000e+00 : f32
    %70 = vector.broadcast %cst_35 : f32 to vector<1x512xf32>
    %71 = arith.subf %70, %4 : vector<1x512xf32>
    %72 = arith.mulf %69, %71 : vector<1x512xf32>
    %cst_36 = arith.constant 1.000000e+00 : f32
    %73 = vector.broadcast %cst_36 : f32 to vector<1x512xf32>
    %74 = arith.subf %73, %5 : vector<1x512xf32>
    %75 = arith.mulf %72, %74 : vector<1x512xf32>
    %cst_37 = arith.constant 1.000000e+00 : f32
    %76 = vector.broadcast %cst_37 : f32 to vector<1x512xf32>
    %77 = arith.subf %76, %6 : vector<1x512xf32>
    %78 = arith.mulf %75, %77 : vector<1x512xf32>
    %c0_38 = arith.constant 0 : index
    %79 = arith.index_cast %1 : i32 to index
    %80 = vector.load %arg10[%c0_38, %79] : memref<1x2048xf32, #tpu.memory_space<vmem>>, vector<1x512xf32>
    tpu.vector_store %arg10[%c0_38, %79], %78 {strides = array<i32>} : memref<1x2048xf32, #tpu.memory_space<vmem>>, vector<1x512xf32>,
    %c1_i32 = arith.constant 1 : i32
    %c512_i32_39 = arith.constant 512 : i32
    %81 = arith.muli %c1_i32, %c512_i32_39 : i32
    %82 = tpu.assume_multiple %81, 512 : i32
    %c0_40 = arith.constant 0 : index
    %83 = arith.index_cast %82 : i32 to index
    %84 = vector.load %arg1[%c0_40, %83] : memref<3x2048xf32, #tpu.memory_space<vmem>>, vector<3x512xf32>
    %85 = vector.extract_strided_slice %84 {offsets = [0, 0], sizes = [1, 512], strides = [1, 1]} : vector<3x512xf32> to vector<1x512xf32>
    %86 = vector.extract_strided_slice %84 {offsets = [1, 0], sizes = [1, 512], strides = [1, 1]} : vector<3x512xf32> to vector<1x512xf32>
    %87 = vector.extract_strided_slice %84 {offsets = [2, 0], sizes = [1, 512], strides = [1, 1]} : vector<3x512xf32> to vector<1x512xf32>
    %c0_41 = arith.constant 0 : index
    %c0_42 = arith.constant 0 : index
    %88 = vector.load %arg2[%c0_41, %c0_42] : memref<32x3xf32, #tpu.memory_space<vmem>>, vector<32x3xf32>
    %89 = vector.extract_strided_slice %88 {offsets = [0, 0], sizes = [32, 1], strides = [1, 1]} : vector<32x3xf32> to vector<32x1xf32>
    %90 = vector.broadcast %89 : vector<32x1xf32> to vector<32x512xf32>
    %91 = vector.broadcast %85 : vector<1x512xf32> to vector<32x512xf32>
    %92 = arith.mulf %90, %91 : vector<32x512xf32>
    %93 = vector.extract_strided_slice %88 {offsets = [0, 1], sizes = [32, 1], strides = [1, 1]} : vector<32x3xf32> to vector<32x1xf32>
    %94 = vector.broadcast %93 : vector<32x1xf32> to vector<32x512xf32>
    %95 = vector.broadcast %86 : vector<1x512xf32> to vector<32x512xf32>
    %96 = arith.mulf %94, %95 : vector<32x512xf32>
    %97 = arith.addf %92, %96 : vector<32x512xf32>
    %98 = vector.extract_strided_slice %88 {offsets = [0, 2], sizes = [32, 1], strides = [1, 1]} : vector<32x3xf32> to vector<32x1xf32>
    %99 = vector.broadcast %98 : vector<32x1xf32> to vector<32x512xf32>
    %100 = vector.broadcast %87 : vector<1x512xf32> to vector<32x512xf32>
    %101 = arith.mulf %99, %100 : vector<32x512xf32>
    %102 = arith.addf %97, %101 : vector<32x512xf32>
    %c0_43 = arith.constant 0 : index
    %c0_44 = arith.constant 0 : index
    %103 = vector.load %arg3[%c0_43, %c0_44] : memref<32x1xf32, #tpu.memory_space<vmem>>, vector<32x1xf32>
    %104 = vector.broadcast %103 : vector<32x1xf32> to vector<32x512xf32>
    %105 = arith.addf %102, %104 : vector<32x512xf32>
    %c0_45 = arith.constant 0 : index
    %c0_46 = arith.constant 0 : index
    %c0_47 = arith.constant 0 : index
    %106 = vector.load %arg4[%c0_45, %c0_46, %c0_47] : memref<2x32x32xf32, #tpu.memory_space<vmem>>, vector<1x32x32xf32>
    %107 = vector.shape_cast %106 : vector<1x32x32xf32> to vector<32x32xf32>
    %cst_48 = arith.constant dense<0.000000e+00> : vector<32x512xf32>
    %108 = tpu.matmul %107, %105, %cst_48 {dimension_numbers = #tpu.dot_dimension_numbers<[1], [0], [0], [1], [0, 0, 1, 1], [], []>} : vector<32x32xf32>, vector<32x512xf32>, vector<32x512xf32> -> vector<32x512xf32>
    %c0_49 = arith.constant 0 : index
    %c0_50 = arith.constant 0 : index
    %c0_51 = arith.constant 0 : index
    %109 = vector.load %arg5[%c0_49, %c0_50, %c0_51] : memref<2x32x1xf32, #tpu.memory_space<vmem>>, vector<1x32x1xf32>
    %110 = vector.shape_cast %109 : vector<1x32x1xf32> to vector<32x1xf32>
    %111 = vector.broadcast %110 : vector<32x1xf32> to vector<32x512xf32>
    %112 = arith.addf %108, %111 : vector<32x512xf32>
    %113 = math.tanh %112 : vector<32x512xf32>
    %c0_52 = arith.constant 0 : index
    %c0_53 = arith.constant 0 : index
    %c0_54 = arith.constant 0 : index
    %114 = vector.load %arg6[%c0_52, %c0_53, %c0_54] : memref<2x32x32xf32, #tpu.memory_space<vmem>>, vector<1x32x32xf32>
    %115 = vector.shape_cast %114 : vector<1x32x32xf32> to vector<32x32xf32>
    %cst_55 = arith.constant dense<0.000000e+00> : vector<32x512xf32>
    %116 = tpu.matmul %115, %113, %cst_55 {dimension_numbers = #tpu.dot_dimension_numbers<[1], [0], [0], [1], [0, 0, 1, 1], [], []>} : vector<32x32xf32>, vector<32x512xf32>, vector<32x512xf32> -> vector<32x512xf32>
    %c0_56 = arith.constant 0 : index
    %c0_57 = arith.constant 0 : index
    %c0_58 = arith.constant 0 : index
    %117 = vector.load %arg7[%c0_56, %c0_57, %c0_58] : memref<2x32x1xf32, #tpu.memory_space<vmem>>, vector<1x32x1xf32>
    %118 = vector.shape_cast %117 : vector<1x32x1xf32> to vector<32x1xf32>
    %119 = vector.broadcast %118 : vector<32x1xf32> to vector<32x512xf32>
    %120 = arith.addf %116, %119 : vector<32x512xf32>
    %121 = math.tanh %120 : vector<32x512xf32>
    %122 = arith.addf %121, %105 : vector<32x512xf32>
    %c1_59 = arith.constant 1 : index
    %c0_60 = arith.constant 0 : index
    %c0_61 = arith.constant 0 : index
    %123 = vector.load %arg4[%c1_59, %c0_60, %c0_61] : memref<2x32x32xf32, #tpu.memory_space<vmem>>, vector<1x32x32xf32>
    %124 = vector.shape_cast %123 : vector<1x32x32xf32> to vector<32x32xf32>
    %cst_62 = arith.constant dense<0.000000e+00> : vector<32x512xf32>
    %125 = tpu.matmul %124, %122, %cst_62 {dimension_numbers = #tpu.dot_dimension_numbers<[1], [0], [0], [1], [0, 0, 1, 1], [], []>} : vector<32x32xf32>, vector<32x512xf32>, vector<32x512xf32> -> vector<32x512xf32>
    %c1_63 = arith.constant 1 : index
    %c0_64 = arith.constant 0 : index
    %c0_65 = arith.constant 0 : index
    %126 = vector.load %arg5[%c1_63, %c0_64, %c0_65] : memref<2x32x1xf32, #tpu.memory_space<vmem>>, vector<1x32x1xf32>
    %127 = vector.shape_cast %126 : vector<1x32x1xf32> to vector<32x1xf32>
    %128 = vector.broadcast %127 : vector<32x1xf32> to vector<32x512xf32>
    %129 = arith.addf %125, %128 : vector<32x512xf32>
    %130 = math.tanh %129 : vector<32x512xf32>
    %c1_66 = arith.constant 1 : index
    %c0_67 = arith.constant 0 : index
    %c0_68 = arith.constant 0 : index
    %131 = vector.load %arg6[%c1_66, %c0_67, %c0_68] : memref<2x32x32xf32, #tpu.memory_space<vmem>>, vector<1x32x32xf32>
    %132 = vector.shape_cast %131 : vector<1x32x32xf32> to vector<32x32xf32>
    %cst_69 = arith.constant dense<0.000000e+00> : vector<32x512xf32>
    %133 = tpu.matmul %132, %130, %cst_69 {dimension_numbers = #tpu.dot_dimension_numbers<[1], [0], [0], [1], [0, 0, 1, 1], [], []>} : vector<32x32xf32>, vector<32x512xf32>, vector<32x512xf32> -> vector<32x512xf32>
    %c1_70 = arith.constant 1 : index
    %c0_71 = arith.constant 0 : index
    %c0_72 = arith.constant 0 : index
    %134 = vector.load %arg7[%c1_70, %c0_71, %c0_72] : memref<2x32x1xf32, #tpu.memory_space<vmem>>, vector<1x32x1xf32>
    %135 = vector.shape_cast %134 : vector<1x32x1xf32> to vector<32x1xf32>
    %136 = vector.broadcast %135 : vector<32x1xf32> to vector<32x512xf32>
    %137 = arith.addf %133, %136 : vector<32x512xf32>
    %138 = math.tanh %137 : vector<32x512xf32>
    %139 = arith.addf %138, %122 : vector<32x512xf32>
    %c0_73 = arith.constant 0 : index
    %c0_74 = arith.constant 0 : index
    %140 = vector.load %arg8[%c0_73, %c0_74] : memref<32x1xf32, #tpu.memory_space<vmem>>, vector<32x1xf32>
    %141 = vector.broadcast %140 : vector<32x1xf32> to vector<32x512xf32>
    %142 = arith.mulf %139, %141 : vector<32x512xf32>
    %cst_75 = arith.constant dense<0.000000e+00> : vector<512xf32>
    %143 = vector.multi_reduction <add>, %142, %cst_75 [0] : vector<32x512xf32> to vector<512xf32>
    %144 = vector.shape_cast %143 : vector<512xf32> to vector<1x512xf32>
    %c0_76 = arith.constant 0 : index
    %c0_77 = arith.constant 0 : index
    %145 = vector.load %arg9[%c0_76, %c0_77] : memref<1x1xf32, #tpu.memory_space<vmem>>, vector<1x1xf32>
    %146 = vector.broadcast %145 : vector<1x1xf32> to vector<1x512xf32>
    %147 = arith.addf %144, %146 : vector<1x512xf32>
    %148 = arith.mulf %147, %85 : vector<1x512xf32>
    %149 = arith.mulf %148, %86 : vector<1x512xf32>
    %150 = arith.mulf %149, %87 : vector<1x512xf32>
    %cst_78 = arith.constant 1.000000e+00 : f32
    %151 = vector.broadcast %cst_78 : f32 to vector<1x512xf32>
    %152 = arith.subf %151, %85 : vector<1x512xf32>
    %153 = arith.mulf %150, %152 : vector<1x512xf32>
    %cst_79 = arith.constant 1.000000e+00 : f32
    %154 = vector.broadcast %cst_79 : f32 to vector<1x512xf32>
    %155 = arith.subf %154, %86 : vector<1x512xf32>
    %156 = arith.mulf %153, %155 : vector<1x512xf32>
    %cst_80 = arith.constant 1.000000e+00 : f32
    %157 = vector.broadcast %cst_80 : f32 to vector<1x512xf32>
    %158 = arith.subf %157, %87 : vector<1x512xf32>
    %159 = arith.mulf %156, %158 : vector<1x512xf32>
    %c0_81 = arith.constant 0 : index
    %160 = arith.index_cast %82 : i32 to index
    %161 = vector.load %arg10[%c0_81, %160] : memref<1x2048xf32, #tpu.memory_space<vmem>>, vector<1x512xf32>
    tpu.vector_store %arg10[%c0_81, %160], %159 {strides = array<i32>} : memref<1x2048xf32, #tpu.memory_space<vmem>>, vector<1x512xf32>,
    %c2_i32 = arith.constant 2 : i32
    %c512_i32_82 = arith.constant 512 : i32
    %162 = arith.muli %c2_i32, %c512_i32_82 : i32
    %163 = tpu.assume_multiple %162, 512 : i32
    %c0_83 = arith.constant 0 : index
    %164 = arith.index_cast %163 : i32 to index
    %165 = vector.load %arg1[%c0_83, %164] : memref<3x2048xf32, #tpu.memory_space<vmem>>, vector<3x512xf32>
    %166 = vector.extract_strided_slice %165 {offsets = [0, 0], sizes = [1, 512], strides = [1, 1]} : vector<3x512xf32> to vector<1x512xf32>
    %167 = vector.extract_strided_slice %165 {offsets = [1, 0], sizes = [1, 512], strides = [1, 1]} : vector<3x512xf32> to vector<1x512xf32>
    %168 = vector.extract_strided_slice %165 {offsets = [2, 0], sizes = [1, 512], strides = [1, 1]} : vector<3x512xf32> to vector<1x512xf32>
    %c0_84 = arith.constant 0 : index
    %c0_85 = arith.constant 0 : index
    %169 = vector.load %arg2[%c0_84, %c0_85] : memref<32x3xf32, #tpu.memory_space<vmem>>, vector<32x3xf32>
    %170 = vector.extract_strided_slice %169 {offsets = [0, 0], sizes = [32, 1], strides = [1, 1]} : vector<32x3xf32> to vector<32x1xf32>
    %171 = vector.broadcast %170 : vector<32x1xf32> to vector<32x512xf32>
    %172 = vector.broadcast %166 : vector<1x512xf32> to vector<32x512xf32>
    %173 = arith.mulf %171, %172 : vector<32x512xf32>
    %174 = vector.extract_strided_slice %169 {offsets = [0, 1], sizes = [32, 1], strides = [1, 1]} : vector<32x3xf32> to vector<32x1xf32>
    %175 = vector.broadcast %174 : vector<32x1xf32> to vector<32x512xf32>
    %176 = vector.broadcast %167 : vector<1x512xf32> to vector<32x512xf32>
    %177 = arith.mulf %175, %176 : vector<32x512xf32>
    %178 = arith.addf %173, %177 : vector<32x512xf32>
    %179 = vector.extract_strided_slice %169 {offsets = [0, 2], sizes = [32, 1], strides = [1, 1]} : vector<32x3xf32> to vector<32x1xf32>
    %180 = vector.broadcast %179 : vector<32x1xf32> to vector<32x512xf32>
    %181 = vector.broadcast %168 : vector<1x512xf32> to vector<32x512xf32>
    %182 = arith.mulf %180, %181 : vector<32x512xf32>
    %183 = arith.addf %178, %182 : vector<32x512xf32>
    %c0_86 = arith.constant 0 : index
    %c0_87 = arith.constant 0 : index
    %184 = vector.load %arg3[%c0_86, %c0_87] : memref<32x1xf32, #tpu.memory_space<vmem>>, vector<32x1xf32>
    %185 = vector.broadcast %184 : vector<32x1xf32> to vector<32x512xf32>
    %186 = arith.addf %183, %185 : vector<32x512xf32>
    %c0_88 = arith.constant 0 : index
    %c0_89 = arith.constant 0 : index
    %c0_90 = arith.constant 0 : index
    %187 = vector.load %arg4[%c0_88, %c0_89, %c0_90] : memref<2x32x32xf32, #tpu.memory_space<vmem>>, vector<1x32x32xf32>
    %188 = vector.shape_cast %187 : vector<1x32x32xf32> to vector<32x32xf32>
    %cst_91 = arith.constant dense<0.000000e+00> : vector<32x512xf32>
    %189 = tpu.matmul %188, %186, %cst_91 {dimension_numbers = #tpu.dot_dimension_numbers<[1], [0], [0], [1], [0, 0, 1, 1], [], []>} : vector<32x32xf32>, vector<32x512xf32>, vector<32x512xf32> -> vector<32x512xf32>
    %c0_92 = arith.constant 0 : index
    %c0_93 = arith.constant 0 : index
    %c0_94 = arith.constant 0 : index
    %190 = vector.load %arg5[%c0_92, %c0_93, %c0_94] : memref<2x32x1xf32, #tpu.memory_space<vmem>>, vector<1x32x1xf32>
    %191 = vector.shape_cast %190 : vector<1x32x1xf32> to vector<32x1xf32>
    %192 = vector.broadcast %191 : vector<32x1xf32> to vector<32x512xf32>
    %193 = arith.addf %189, %192 : vector<32x512xf32>
    %194 = math.tanh %193 : vector<32x512xf32>
    %c0_95 = arith.constant 0 : index
    %c0_96 = arith.constant 0 : index
    %c0_97 = arith.constant 0 : index
    %195 = vector.load %arg6[%c0_95, %c0_96, %c0_97] : memref<2x32x32xf32, #tpu.memory_space<vmem>>, vector<1x32x32xf32>
    %196 = vector.shape_cast %195 : vector<1x32x32xf32> to vector<32x32xf32>
    %cst_98 = arith.constant dense<0.000000e+00> : vector<32x512xf32>
    %197 = tpu.matmul %196, %194, %cst_98 {dimension_numbers = #tpu.dot_dimension_numbers<[1], [0], [0], [1], [0, 0, 1, 1], [], []>} : vector<32x32xf32>, vector<32x512xf32>, vector<32x512xf32> -> vector<32x512xf32>
    %c0_99 = arith.constant 0 : index
    %c0_100 = arith.constant 0 : index
    %c0_101 = arith.constant 0 : index
    %198 = vector.load %arg7[%c0_99, %c0_100, %c0_101] : memref<2x32x1xf32, #tpu.memory_space<vmem>>, vector<1x32x1xf32>
    %199 = vector.shape_cast %198 : vector<1x32x1xf32> to vector<32x1xf32>
    %200 = vector.broadcast %199 : vector<32x1xf32> to vector<32x512xf32>
    %201 = arith.addf %197, %200 : vector<32x512xf32>
    %202 = math.tanh %201 : vector<32x512xf32>
    %203 = arith.addf %202, %186 : vector<32x512xf32>
    %c1_102 = arith.constant 1 : index
    %c0_103 = arith.constant 0 : index
    %c0_104 = arith.constant 0 : index
    %204 = vector.load %arg4[%c1_102, %c0_103, %c0_104] : memref<2x32x32xf32, #tpu.memory_space<vmem>>, vector<1x32x32xf32>
    %205 = vector.shape_cast %204 : vector<1x32x32xf32> to vector<32x32xf32>
    %cst_105 = arith.constant dense<0.000000e+00> : vector<32x512xf32>
    %206 = tpu.matmul %205, %203, %cst_105 {dimension_numbers = #tpu.dot_dimension_numbers<[1], [0], [0], [1], [0, 0, 1, 1], [], []>} : vector<32x32xf32>, vector<32x512xf32>, vector<32x512xf32> -> vector<32x512xf32>
    %c1_106 = arith.constant 1 : index
    %c0_107 = arith.constant 0 : index
    %c0_108 = arith.constant 0 : index
    %207 = vector.load %arg5[%c1_106, %c0_107, %c0_108] : memref<2x32x1xf32, #tpu.memory_space<vmem>>, vector<1x32x1xf32>
    %208 = vector.shape_cast %207 : vector<1x32x1xf32> to vector<32x1xf32>
    %209 = vector.broadcast %208 : vector<32x1xf32> to vector<32x512xf32>
    %210 = arith.addf %206, %209 : vector<32x512xf32>
    %211 = math.tanh %210 : vector<32x512xf32>
    %c1_109 = arith.constant 1 : index
    %c0_110 = arith.constant 0 : index
    %c0_111 = arith.constant 0 : index
    %212 = vector.load %arg6[%c1_109, %c0_110, %c0_111] : memref<2x32x32xf32, #tpu.memory_space<vmem>>, vector<1x32x32xf32>
    %213 = vector.shape_cast %212 : vector<1x32x32xf32> to vector<32x32xf32>
    %cst_112 = arith.constant dense<0.000000e+00> : vector<32x512xf32>
    %214 = tpu.matmul %213, %211, %cst_112 {dimension_numbers = #tpu.dot_dimension_numbers<[1], [0], [0], [1], [0, 0, 1, 1], [], []>} : vector<32x32xf32>, vector<32x512xf32>, vector<32x512xf32> -> vector<32x512xf32>
    %c1_113 = arith.constant 1 : index
    %c0_114 = arith.constant 0 : index
    %c0_115 = arith.constant 0 : index
    %215 = vector.load %arg7[%c1_113, %c0_114, %c0_115] : memref<2x32x1xf32, #tpu.memory_space<vmem>>, vector<1x32x1xf32>
    %216 = vector.shape_cast %215 : vector<1x32x1xf32> to vector<32x1xf32>
    %217 = vector.broadcast %216 : vector<32x1xf32> to vector<32x512xf32>
    %218 = arith.addf %214, %217 : vector<32x512xf32>
    %219 = math.tanh %218 : vector<32x512xf32>
    %220 = arith.addf %219, %203 : vector<32x512xf32>
    %c0_116 = arith.constant 0 : index
    %c0_117 = arith.constant 0 : index
    %221 = vector.load %arg8[%c0_116, %c0_117] : memref<32x1xf32, #tpu.memory_space<vmem>>, vector<32x1xf32>
    %222 = vector.broadcast %221 : vector<32x1xf32> to vector<32x512xf32>
    %223 = arith.mulf %220, %222 : vector<32x512xf32>
    %cst_118 = arith.constant dense<0.000000e+00> : vector<512xf32>
    %224 = vector.multi_reduction <add>, %223, %cst_118 [0] : vector<32x512xf32> to vector<512xf32>
    %225 = vector.shape_cast %224 : vector<512xf32> to vector<1x512xf32>
    %c0_119 = arith.constant 0 : index
    %c0_120 = arith.constant 0 : index
    %226 = vector.load %arg9[%c0_119, %c0_120] : memref<1x1xf32, #tpu.memory_space<vmem>>, vector<1x1xf32>
    %227 = vector.broadcast %226 : vector<1x1xf32> to vector<1x512xf32>
    %228 = arith.addf %225, %227 : vector<1x512xf32>
    %229 = arith.mulf %228, %166 : vector<1x512xf32>
    %230 = arith.mulf %229, %167 : vector<1x512xf32>
    %231 = arith.mulf %230, %168 : vector<1x512xf32>
    %cst_121 = arith.constant 1.000000e+00 : f32
    %232 = vector.broadcast %cst_121 : f32 to vector<1x512xf32>
    %233 = arith.subf %232, %166 : vector<1x512xf32>
    %234 = arith.mulf %231, %233 : vector<1x512xf32>
    %cst_122 = arith.constant 1.000000e+00 : f32
    %235 = vector.broadcast %cst_122 : f32 to vector<1x512xf32>
    %236 = arith.subf %235, %167 : vector<1x512xf32>
    %237 = arith.mulf %234, %236 : vector<1x512xf32>
    %cst_123 = arith.constant 1.000000e+00 : f32
    %238 = vector.broadcast %cst_123 : f32 to vector<1x512xf32>
    %239 = arith.subf %238, %168 : vector<1x512xf32>
    %240 = arith.mulf %237, %239 : vector<1x512xf32>
    %c0_124 = arith.constant 0 : index
    %241 = arith.index_cast %163 : i32 to index
    %242 = vector.load %arg10[%c0_124, %241] : memref<1x2048xf32, #tpu.memory_space<vmem>>, vector<1x512xf32>
    tpu.vector_store %arg10[%c0_124, %241], %240 {strides = array<i32>} : memref<1x2048xf32, #tpu.memory_space<vmem>>, vector<1x512xf32>,
    %c3_i32 = arith.constant 3 : i32
    %c512_i32_125 = arith.constant 512 : i32
    %243 = arith.muli %c3_i32, %c512_i32_125 : i32
    %244 = tpu.assume_multiple %243, 512 : i32
    %c0_126 = arith.constant 0 : index
    %245 = arith.index_cast %244 : i32 to index
    %246 = vector.load %arg1[%c0_126, %245] : memref<3x2048xf32, #tpu.memory_space<vmem>>, vector<3x512xf32>
    %247 = vector.extract_strided_slice %246 {offsets = [0, 0], sizes = [1, 512], strides = [1, 1]} : vector<3x512xf32> to vector<1x512xf32>
    %248 = vector.extract_strided_slice %246 {offsets = [1, 0], sizes = [1, 512], strides = [1, 1]} : vector<3x512xf32> to vector<1x512xf32>
    %249 = vector.extract_strided_slice %246 {offsets = [2, 0], sizes = [1, 512], strides = [1, 1]} : vector<3x512xf32> to vector<1x512xf32>
    %c0_127 = arith.constant 0 : index
    %c0_128 = arith.constant 0 : index
    %250 = vector.load %arg2[%c0_127, %c0_128] : memref<32x3xf32, #tpu.memory_space<vmem>>, vector<32x3xf32>
    %251 = vector.extract_strided_slice %250 {offsets = [0, 0], sizes = [32, 1], strides = [1, 1]} : vector<32x3xf32> to vector<32x1xf32>
    %252 = vector.broadcast %251 : vector<32x1xf32> to vector<32x512xf32>
    %253 = vector.broadcast %247 : vector<1x512xf32> to vector<32x512xf32>
    %254 = arith.mulf %252, %253 : vector<32x512xf32>
    %255 = vector.extract_strided_slice %250 {offsets = [0, 1], sizes = [32, 1], strides = [1, 1]} : vector<32x3xf32> to vector<32x1xf32>
    %256 = vector.broadcast %255 : vector<32x1xf32> to vector<32x512xf32>
    %257 = vector.broadcast %248 : vector<1x512xf32> to vector<32x512xf32>
    %258 = arith.mulf %256, %257 : vector<32x512xf32>
    %259 = arith.addf %254, %258 : vector<32x512xf32>
    %260 = vector.extract_strided_slice %250 {offsets = [0, 2], sizes = [32, 1], strides = [1, 1]} : vector<32x3xf32> to vector<32x1xf32>
    %261 = vector.broadcast %260 : vector<32x1xf32> to vector<32x512xf32>
    %262 = vector.broadcast %249 : vector<1x512xf32> to vector<32x512xf32>
    %263 = arith.mulf %261, %262 : vector<32x512xf32>
    %264 = arith.addf %259, %263 : vector<32x512xf32>
    %c0_129 = arith.constant 0 : index
    %c0_130 = arith.constant 0 : index
    %265 = vector.load %arg3[%c0_129, %c0_130] : memref<32x1xf32, #tpu.memory_space<vmem>>, vector<32x1xf32>
    %266 = vector.broadcast %265 : vector<32x1xf32> to vector<32x512xf32>
    %267 = arith.addf %264, %266 : vector<32x512xf32>
    %c0_131 = arith.constant 0 : index
    %c0_132 = arith.constant 0 : index
    %c0_133 = arith.constant 0 : index
    %268 = vector.load %arg4[%c0_131, %c0_132, %c0_133] : memref<2x32x32xf32, #tpu.memory_space<vmem>>, vector<1x32x32xf32>
    %269 = vector.shape_cast %268 : vector<1x32x32xf32> to vector<32x32xf32>
    %cst_134 = arith.constant dense<0.000000e+00> : vector<32x512xf32>
    %270 = tpu.matmul %269, %267, %cst_134 {dimension_numbers = #tpu.dot_dimension_numbers<[1], [0], [0], [1], [0, 0, 1, 1], [], []>} : vector<32x32xf32>, vector<32x512xf32>, vector<32x512xf32> -> vector<32x512xf32>
    %c0_135 = arith.constant 0 : index
    %c0_136 = arith.constant 0 : index
    %c0_137 = arith.constant 0 : index
    %271 = vector.load %arg5[%c0_135, %c0_136, %c0_137] : memref<2x32x1xf32, #tpu.memory_space<vmem>>, vector<1x32x1xf32>
    %272 = vector.shape_cast %271 : vector<1x32x1xf32> to vector<32x1xf32>
    %273 = vector.broadcast %272 : vector<32x1xf32> to vector<32x512xf32>
    %274 = arith.addf %270, %273 : vector<32x512xf32>
    %275 = math.tanh %274 : vector<32x512xf32>
    %c0_138 = arith.constant 0 : index
    %c0_139 = arith.constant 0 : index
    %c0_140 = arith.constant 0 : index
    %276 = vector.load %arg6[%c0_138, %c0_139, %c0_140] : memref<2x32x32xf32, #tpu.memory_space<vmem>>, vector<1x32x32xf32>
    %277 = vector.shape_cast %276 : vector<1x32x32xf32> to vector<32x32xf32>
    %cst_141 = arith.constant dense<0.000000e+00> : vector<32x512xf32>
    %278 = tpu.matmul %277, %275, %cst_141 {dimension_numbers = #tpu.dot_dimension_numbers<[1], [0], [0], [1], [0, 0, 1, 1], [], []>} : vector<32x32xf32>, vector<32x512xf32>, vector<32x512xf32> -> vector<32x512xf32>
    %c0_142 = arith.constant 0 : index
    %c0_143 = arith.constant 0 : index
    %c0_144 = arith.constant 0 : index
    %279 = vector.load %arg7[%c0_142, %c0_143, %c0_144] : memref<2x32x1xf32, #tpu.memory_space<vmem>>, vector<1x32x1xf32>
    %280 = vector.shape_cast %279 : vector<1x32x1xf32> to vector<32x1xf32>
    %281 = vector.broadcast %280 : vector<32x1xf32> to vector<32x512xf32>
    %282 = arith.addf %278, %281 : vector<32x512xf32>
    %283 = math.tanh %282 : vector<32x512xf32>
    %284 = arith.addf %283, %267 : vector<32x512xf32>
    %c1_145 = arith.constant 1 : index
    %c0_146 = arith.constant 0 : index
    %c0_147 = arith.constant 0 : index
    %285 = vector.load %arg4[%c1_145, %c0_146, %c0_147] : memref<2x32x32xf32, #tpu.memory_space<vmem>>, vector<1x32x32xf32>
    %286 = vector.shape_cast %285 : vector<1x32x32xf32> to vector<32x32xf32>
    %cst_148 = arith.constant dense<0.000000e+00> : vector<32x512xf32>
    %287 = tpu.matmul %286, %284, %cst_148 {dimension_numbers = #tpu.dot_dimension_numbers<[1], [0], [0], [1], [0, 0, 1, 1], [], []>} : vector<32x32xf32>, vector<32x512xf32>, vector<32x512xf32> -> vector<32x512xf32>
    %c1_149 = arith.constant 1 : index
    %c0_150 = arith.constant 0 : index
    %c0_151 = arith.constant 0 : index
    %288 = vector.load %arg5[%c1_149, %c0_150, %c0_151] : memref<2x32x1xf32, #tpu.memory_space<vmem>>, vector<1x32x1xf32>
    %289 = vector.shape_cast %288 : vector<1x32x1xf32> to vector<32x1xf32>
    %290 = vector.broadcast %289 : vector<32x1xf32> to vector<32x512xf32>
    %291 = arith.addf %287, %290 : vector<32x512xf32>
    %292 = math.tanh %291 : vector<32x512xf32>
    %c1_152 = arith.constant 1 : index
    %c0_153 = arith.constant 0 : index
    %c0_154 = arith.constant 0 : index
    %293 = vector.load %arg6[%c1_152, %c0_153, %c0_154] : memref<2x32x32xf32, #tpu.memory_space<vmem>>, vector<1x32x32xf32>
    %294 = vector.shape_cast %293 : vector<1x32x32xf32> to vector<32x32xf32>
    %cst_155 = arith.constant dense<0.000000e+00> : vector<32x512xf32>
    %295 = tpu.matmul %294, %292, %cst_155 {dimension_numbers = #tpu.dot_dimension_numbers<[1], [0], [0], [1], [0, 0, 1, 1], [], []>} : vector<32x32xf32>, vector<32x512xf32>, vector<32x512xf32> -> vector<32x512xf32>
    %c1_156 = arith.constant 1 : index
    %c0_157 = arith.constant 0 : index
    %c0_158 = arith.constant 0 : index
    %296 = vector.load %arg7[%c1_156, %c0_157, %c0_158] : memref<2x32x1xf32, #tpu.memory_space<vmem>>, vector<1x32x1xf32>
    %297 = vector.shape_cast %296 : vector<1x32x1xf32> to vector<32x1xf32>
    %298 = vector.broadcast %297 : vector<32x1xf32> to vector<32x512xf32>
    %299 = arith.addf %295, %298 : vector<32x512xf32>
    %300 = math.tanh %299 : vector<32x512xf32>
    %301 = arith.addf %300, %284 : vector<32x512xf32>
    %c0_159 = arith.constant 0 : index
    %c0_160 = arith.constant 0 : index
    %302 = vector.load %arg8[%c0_159, %c0_160] : memref<32x1xf32, #tpu.memory_space<vmem>>, vector<32x1xf32>
    %303 = vector.broadcast %302 : vector<32x1xf32> to vector<32x512xf32>
    %304 = arith.mulf %301, %303 : vector<32x512xf32>
    %cst_161 = arith.constant dense<0.000000e+00> : vector<512xf32>
    %305 = vector.multi_reduction <add>, %304, %cst_161 [0] : vector<32x512xf32> to vector<512xf32>
    %306 = vector.shape_cast %305 : vector<512xf32> to vector<1x512xf32>
    %c0_162 = arith.constant 0 : index
    %c0_163 = arith.constant 0 : index
    %307 = vector.load %arg9[%c0_162, %c0_163] : memref<1x1xf32, #tpu.memory_space<vmem>>, vector<1x1xf32>
    %308 = vector.broadcast %307 : vector<1x1xf32> to vector<1x512xf32>
    %309 = arith.addf %306, %308 : vector<1x512xf32>
    %310 = arith.mulf %309, %247 : vector<1x512xf32>
    %311 = arith.mulf %310, %248 : vector<1x512xf32>
    %312 = arith.mulf %311, %249 : vector<1x512xf32>
    %cst_164 = arith.constant 1.000000e+00 : f32
    %313 = vector.broadcast %cst_164 : f32 to vector<1x512xf32>
    %314 = arith.subf %313, %247 : vector<1x512xf32>
    %315 = arith.mulf %312, %314 : vector<1x512xf32>
    %cst_165 = arith.constant 1.000000e+00 : f32
    %316 = vector.broadcast %cst_165 : f32 to vector<1x512xf32>
    %317 = arith.subf %316, %248 : vector<1x512xf32>
    %318 = arith.mulf %315, %317 : vector<1x512xf32>
    %cst_166 = arith.constant 1.000000e+00 : f32
    %319 = vector.broadcast %cst_166 : f32 to vector<1x512xf32>
    %320 = arith.subf %319, %249 : vector<1x512xf32>
    %321 = arith.mulf %318, %320 : vector<1x512xf32>
    %c0_167 = arith.constant 0 : index
    %322 = arith.index_cast %244 : i32 to index
    %323 = vector.load %arg10[%c0_167, %322] : memref<1x2048xf32, #tpu.memory_space<vmem>>, vector<1x512xf32>
    tpu.vector_store %arg10[%c0_167, %322], %321 {strides = array<i32>} : memref<1x2048xf32, #tpu.memory_space<vmem>>, vector<1x512xf32>,
    %c4_i32 = arith.constant 4 : i32
    return
  }
  func.func @transform_0(%arg0: i32) -> (i32, i32) {
    %c0_i32 = arith.constant 0 : i32
    %c0_i32_0 = arith.constant 0 : i32
    return %c0_i32, %arg0 : i32, i32
  }
  func.func @transform_1(%arg0: i32) -> (i32, i32) {
    %c0_i32 = arith.constant 0 : i32
    %c0_i32_0 = arith.constant 0 : i32
    %c0_i32_1 = arith.constant 0 : i32
    return %c0_i32, %c0_i32_0 : i32, i32
  }
  func.func @transform_2(%arg0: i32) -> (i32, i32) {
    %c0_i32 = arith.constant 0 : i32
    %c0_i32_0 = arith.constant 0 : i32
    %c0_i32_1 = arith.constant 0 : i32
    return %c0_i32, %c0_i32_0 : i32, i32
  }
  func.func @transform_3(%arg0: i32) -> (i32, i32, i32) {
    %c0_i32 = arith.constant 0 : i32
    %c0_i32_0 = arith.constant 0 : i32
    %c0_i32_1 = arith.constant 0 : i32
    %c0_i32_2 = arith.constant 0 : i32
    return %c0_i32, %c0_i32_0, %c0_i32_1 : i32, i32, i32
  }
  func.func @transform_4(%arg0: i32) -> (i32, i32, i32) {
    %c0_i32 = arith.constant 0 : i32
    %c0_i32_0 = arith.constant 0 : i32
    %c0_i32_1 = arith.constant 0 : i32
    %c0_i32_2 = arith.constant 0 : i32
    return %c0_i32, %c0_i32_0, %c0_i32_1 : i32, i32, i32
  }
  func.func @transform_5(%arg0: i32) -> (i32, i32, i32) {
    %c0_i32 = arith.constant 0 : i32
    %c0_i32_0 = arith.constant 0 : i32
    %c0_i32_1 = arith.constant 0 : i32
    %c0_i32_2 = arith.constant 0 : i32
    return %c0_i32, %c0_i32_0, %c0_i32_1 : i32, i32, i32
  }
  func.func @transform_6(%arg0: i32) -> (i32, i32, i32) {
    %c0_i32 = arith.constant 0 : i32
    %c0_i32_0 = arith.constant 0 : i32
    %c0_i32_1 = arith.constant 0 : i32
    %c0_i32_2 = arith.constant 0 : i32
    return %c0_i32, %c0_i32_0, %c0_i32_1 : i32, i32, i32
  }
  func.func @transform_7(%arg0: i32) -> (i32, i32) {
    %c0_i32 = arith.constant 0 : i32
    %c0_i32_0 = arith.constant 0 : i32
    %c0_i32_1 = arith.constant 0 : i32
    return %c0_i32, %c0_i32_0 : i32, i32
  }
  func.func @transform_8(%arg0: i32) -> (i32, i32) {
    %c0_i32 = arith.constant 0 : i32
    %c0_i32_0 = arith.constant 0 : i32
    %c0_i32_1 = arith.constant 0 : i32
    return %c0_i32, %c0_i32_0 : i32, i32
  }
  func.func @transform_9(%arg0: i32) -> (i32, i32) {
    %c0_i32 = arith.constant 0 : i32
    %c0_i32_0 = arith.constant 0 : i32
    return %c0_i32, %arg0 : i32, i32
  }
}

</mosaic_0001>

<llo_original>
// kernel: tpu_custom_call.1
$region0: #{tpu_custom_call.1}
  #allocation0 [shape = 'u32[]', space=smem, size = 0x4, offset = 0x4, fixed_abs, tag = 'smem constant byte address 0x4 - core index']
  #allocation1 [shape = 'u32[144,128]{1,0:T(1,128)}', space=vmem, size = 0x12000, scoped, tag = 'internal scratch']
  #allocation2 [shape = 'f32[1,1]{1,0:T(1,128)S(1)}', space=vmem, size = 0x200, scoped, tag = 'scoped memory for tpu_custom_call.1']
  %s0 = inlined_call_operand.vmem [shape: f32[3,4096], index: 0, kind: input, shape index: {}]
  %s1 = inlined_call_operand.vmem [shape: f32[32,3], index: 1, kind: input, shape index: {}]
  %s2 = inlined_call_operand.vmem [shape: f32[32,1], index: 2, kind: input, shape index: {}]
  %s3 = inlined_call_operand.vmem [shape: f32[2,32,32], index: 3, kind: input, shape index: {}]
  %s4 = inlined_call_operand.vmem [shape: f32[2,32,1], index: 4, kind: input, shape index: {}]
  %s5 = inlined_call_operand.hbm [shape: f32[2,32,32], index: 5, kind: input, shape index: {}]
  %s6 = inlined_call_operand.vmem [shape: f32[2,32,1], index: 6, kind: input, shape index: {}]
  %s7 = inlined_call_operand.vmem [shape: f32[32,1], index: 7, kind: input, shape index: {}]
  %s8 = inlined_call_operand.<no memory space> [shape: f32[1,1], index: 8, kind: input, shape index: {}]
  %s9 = inlined_call_operand.hbm [shape: f32[1,4096], index: 9, kind: output, shape index: {}]
  %s10 = sld [smem:[#allocation0]]
  $region73: #{tpu_custom_call.1} parent=0
    _
  %s12 = ssub.s32 1, %s10
  %s13 = scalar_select 0, %s12, %s10
  %v14 = vstv %s8
  %15 = vst [vmem:[#allocation2] sm:$0x1] %v14
  $region1: #{tpu_custom_call.1} parent=0
    #allocation3 [shape = 'u8[32768]{0}', space=vmem, size = 0x8000, scoped, tag = 'input window, operand 5, single buffered']
    #allocation4 [shape = 's32[2]{0}', space=sflag, size = 0x8, scoped, tag = 'scoped memory for tpu_custom_call.1']
    #allocation5 [shape = 's32[2]{0}', space=sflag, size = 0x8, scoped, tag = 'scoped memory for tpu_custom_call.1']
    #allocation6 [shape = 'u8[16384]{0}', space=vmem, size = 0x4000, scoped, tag = 'output window, operand 0']
    %16 = vsyncpa [#allocation4], 0
    %17 = vsyncpa [#allocation5], 0
    %s18 = scalar_lea.sflag [#allocation5], 1
    %19 = vsyncpa %s18, 0
    loop: start=0, step=1, limit=4
    $region2: #{tpu_custom_call.1} parent=1 // loop_pre_header
      _
    $region3: #{tpu_custom_call.1} parent=1 // loop_header
      %s21 = sphi 0, %s25
      %p22 = scmp.ge.s32.totalorder %s21, 4
      %s31 = sphi 0, %s33
      %s34 = sphi 0, %s31
      %s35 = sphi 0, %s34
      %s51 = sphi 0, %s35
      %s55 = sphi 0, %s55
      %s57 = sphi 0, %s55
      %s58 = sphi 0, %s57
      %s72 = sphi 0, %s58
      %s76 = sphi 0, %s76
      %s78 = sphi 0, %s76
      %s79 = sphi 0, %s78
      %s93 = sphi 0, %s79
      %s97 = sphi 0, %s97
      %s99 = sphi 0, %s97
      %s100 = sphi 0, %s99
      %s114 = sphi 0, %s100
      %s118 = sphi 0, %s118
      %s120 = sphi 0, %s118
      %s121 = sphi 0, %s120
      %s135 = sphi 0, %s121
      %s139 = sphi 0, %s139
      %s141 = sphi 0, %s139
      %s142 = sphi 0, %s141
      %s156 = sphi 0, %s142
      %s160 = sphi 0, %s160
      %s162 = sphi 0, %s160
      %s163 = sphi 0, %s162
      %s177 = sphi 0, %s163
      %s181 = sphi 0, %s181
      %s183 = sphi 0, %s181
      %s184 = sphi 0, %s183
      %s198 = sphi 0, %s184
      %s202 = sphi 0, %s202
      %s204 = sphi 0, %s202
      %s205 = sphi 0, %s204
      %s219 = sphi 0, %s205
      %s225 = sphi 0, %s227
      %s228 = sphi 0, %s225
      %s229 = sphi 0, %s228
      %s245 = sphi 0, %s229
    $region4: #{tpu_custom_call.1} parent=1 // loop_header_branch
      %24 = sbr.rel (%p22) target = $region8
    $region5: #{tpu_custom_call.1} parent=1 // loop_body
      %s26 = ssub.s32 %s21, 1
      %s27 = ssub.s32 %s21, 2
      %s28 = sadd.s32 %s21, 1
      %s29 = ssub.s32 %s21, %s28
      %p30 = scmp.eq.s32.totalorder %s29, 0
      %s32 = sadd.s32 %s31, 1
      %s33 = scalar_select %p30, %s31, %s32
      %p36 = pneg %p30
      %p37 = scmp.eq.s32.totalorder %s21, 1
      %p38 = por %p36, %p37
      %p39 = scmp.ne.s32.totalorder %s31, %s34
      %p40 = scmp.eq.s32.totalorder %s21, 0
      %p41 = por %p39, %p40
      %p42 = scmp.ne.s32.totalorder %s31, %s34
      %p43 = scmp.eq.s32.totalorder %s26, 1
      %p44 = por %p42, %p43
      %p45 = scmp.ne.s32.totalorder %s34, %s35
      %p46 = scmp.eq.s32.totalorder %s26, 0
      %p47 = por %p45, %p46
      %p48 = scmp.ne.s32.totalorder %s34, %s35
      %p49 = scmp.eq.s32.totalorder %s27, 1
      %p50 = por %p48, %p49
      %p52 = scmp.ne.s32.totalorder %s35, %s51
      %p53 = scmp.eq.s32.totalorder %s27, 0
      %p54 = por %p52, %p53
      %s56 = sadd.s32 %s55, 1
      %p59 = scmp.eq.s32.totalorder %s21, 1
      %p60 = scmp.ne.s32.totalorder %s55, %s57
      %p61 = scmp.eq.s32.totalorder %s21, 0
      %p62 = por %p60, %p61
      %p63 = scmp.ne.s32.totalorder %s55, %s57
      %p64 = scmp.eq.s32.totalorder %s26, 1
      %p65 = por %p63, %p64
      %p66 = scmp.ne.s32.totalorder %s57, %s58
      %p67 = scmp.eq.s32.totalorder %s26, 0
      %p68 = por %p66, %p67
      %p69 = scmp.ne.s32.totalorder %s57, %s58
      %p70 = scmp.eq.s32.totalorder %s27, 1
      %p71 = por %p69, %p70
      %p73 = scmp.ne.s32.totalorder %s58, %s72
      %p74 = scmp.eq.s32.totalorder %s27, 0
      %p75 = por %p73, %p74
      %s77 = sadd.s32 %s76, 1
      %p80 = scmp.eq.s32.totalorder %s21, 1
      %p81 = scmp.ne.s32.totalorder %s76, %s78
      %p82 = scmp.eq.s32.totalorder %s21, 0
      %p83 = por %p81, %p82
      %p84 = scmp.ne.s32.totalorder %s76, %s78
      %p85 = scmp.eq.s32.totalorder %s26, 1
      %p86 = por %p84, %p85
      %p87 = scmp.ne.s32.totalorder %s78, %s79
      %p88 = scmp.eq.s32.totalorder %s26, 0
      %p89 = por %p87, %p88
      %p90 = scmp.ne.s32.totalorder %s78, %s79
      %p91 = scmp.eq.s32.totalorder %s27, 1
      %p92 = por %p90, %p91
      %p94 = scmp.ne.s32.totalorder %s79, %s93
      %p95 = scmp.eq.s32.totalorder %s27, 0
      %p96 = por %p94, %p95
      %s98 = sadd.s32 %s97, 1
      %p101 = scmp.eq.s32.totalorder %s21, 1
      %p102 = scmp.ne.s32.totalorder %s97, %s99
      %p103 = scmp.eq.s32.totalorder %s21, 0
      %p104 = por %p102, %p103
      %p105 = scmp.ne.s32.totalorder %s97, %s99
      %p106 = scmp.eq.s32.totalorder %s26, 1
      %p107 = por %p105, %p106
      %p108 = scmp.ne.s32.totalorder %s99, %s100
      %p109 = scmp.eq.s32.totalorder %s26, 0
      %p110 = por %p108, %p109
      %p111 = scmp.ne.s32.totalorder %s99, %s100
      %p112 = scmp.eq.s32.totalorder %s27, 1
      %p113 = por %p111, %p112
      %p115 = scmp.ne.s32.totalorder %s100, %s114
      %p116 = scmp.eq.s32.totalorder %s27, 0
      %p117 = por %p115, %p116
      %s119 = sadd.s32 %s118, 1
      %p122 = scmp.eq.s32.totalorder %s21, 1
      %p123 = scmp.ne.s32.totalorder %s118, %s120
      %p124 = scmp.eq.s32.totalorder %s21, 0
      %p125 = por %p123, %p124
      %p126 = scmp.ne.s32.totalorder %s118, %s120
      %p127 = scmp.eq.s32.totalorder %s26, 1
      %p128 = por %p126, %p127
      %p129 = scmp.ne.s32.totalorder %s120, %s121
      %p130 = scmp.eq.s32.totalorder %s26, 0
      %p131 = por %p129, %p130
      %p132 = scmp.ne.s32.totalorder %s120, %s121
      %p133 = scmp.eq.s32.totalorder %s27, 1
      %p134 = por %p132, %p133
      %p136 = scmp.ne.s32.totalorder %s121, %s135
      %p137 = scmp.eq.s32.totalorder %s27, 0
      %p138 = por %p136, %p137
      %s140 = sadd.s32 %s139, 1
      %p143 = scmp.eq.s32.totalorder %s21, 1
      %p144 = scmp.ne.s32.totalorder %s139, %s141
      %p145 = scmp.eq.s32.totalorder %s21, 0
      %p146 = por %p144, %p145
      %p147 = scmp.ne.s32.totalorder %s139, %s141
      %p148 = scmp.eq.s32.totalorder %s26, 1
      %p149 = por %p147, %p148
      %p150 = scmp.ne.s32.totalorder %s141, %s142
      %p151 = scmp.eq.s32.totalorder %s26, 0
      %p152 = por %p150, %p151
      %p153 = scmp.ne.s32.totalorder %s141, %s142
      %p154 = scmp.eq.s32.totalorder %s27, 1
      %p155 = por %p153, %p154
      %p157 = scmp.ne.s32.totalorder %s142, %s156
      %p158 = scmp.eq.s32.totalorder %s27, 0
      %p159 = por %p157, %p158
      %s161 = sadd.s32 %s160, 1
      %p164 = scmp.eq.s32.totalorder %s21, 1
      %p165 = scmp.ne.s32.totalorder %s160, %s162
      %p166 = scmp.eq.s32.totalorder %s21, 0
      %p167 = por %p165, %p166
      %p168 = scmp.ne.s32.totalorder %s160, %s162
      %p169 = scmp.eq.s32.totalorder %s26, 1
      %p170 = por %p168, %p169
      %p171 = scmp.ne.s32.totalorder %s162, %s163
      %p172 = scmp.eq.s32.totalorder %s26, 0
      %p173 = por %p171, %p172
      %p174 = scmp.ne.s32.totalorder %s162, %s163
      %p175 = scmp.eq.s32.totalorder %s27, 1
      %p176 = por %p174, %p175
      %p178 = scmp.ne.s32.totalorder %s163, %s177
      %p179 = scmp.eq.s32.totalorder %s27, 0
      %p180 = por %p178, %p179
      %s182 = sadd.s32 %s181, 1
      %p185 = scmp.eq.s32.totalorder %s21, 1
      %p186 = scmp.ne.s32.totalorder %s181, %s183
      %p187 = scmp.eq.s32.totalorder %s21, 0
      %p188 = por %p186, %p187
      %p189 = scmp.ne.s32.totalorder %s181, %s183
      %p190 = scmp.eq.s32.totalorder %s26, 1
      %p191 = por %p189, %p190
      %p192 = scmp.ne.s32.totalorder %s183, %s184
      %p193 = scmp.eq.s32.totalorder %s26, 0
      %p194 = por %p192, %p193
      %p195 = scmp.ne.s32.totalorder %s183, %s184
      %p196 = scmp.eq.s32.totalorder %s27, 1
      %p197 = por %p195, %p196
      %p199 = scmp.ne.s32.totalorder %s184, %s198
      %p200 = scmp.eq.s32.totalorder %s27, 0
      %p201 = por %p199, %p200
      %s203 = sadd.s32 %s202, 1
      %p206 = scmp.eq.s32.totalorder %s21, 1
      %p207 = scmp.ne.s32.totalorder %s202, %s204
      %p208 = scmp.eq.s32.totalorder %s21, 0
      %p209 = por %p207, %p208
      %p210 = scmp.ne.s32.totalorder %s202, %s204
      %p211 = scmp.eq.s32.totalorder %s26, 1
      %p212 = por %p210, %p211
      %p213 = scmp.ne.s32.totalorder %s204, %s205
      %p214 = scmp.eq.s32.totalorder %s26, 0
      %p215 = por %p213, %p214
      %p216 = scmp.ne.s32.totalorder %s204, %s205
      %p217 = scmp.eq.s32.totalorder %s27, 1
      %p218 = por %p216, %p217
      %p220 = scmp.ne.s32.totalorder %s205, %s219
      %p221 = scmp.eq.s32.totalorder %s27, 0
      %p222 = por %p220, %p221
      %s223 = ssub.s32 %s21, %s28
      %p224 = scmp.eq.s32.totalorder %s223, 0
      %s226 = sadd.s32 %s225, 1
      %s227 = scalar_select %p224, %s225, %s226
      %p230 = pneg %p224
      %p231 = scmp.eq.s32.totalorder %s21, 1
      %p232 = por %p230, %p231
      %p233 = scmp.ne.s32.totalorder %s225, %s228
      %p234 = scmp.eq.s32.totalorder %s21, 0
      %p235 = por %p233, %p234
      %p236 = scmp.ne.s32.totalorder %s225, %s228
      %p237 = scmp.eq.s32.totalorder %s26, 1
      %p238 = por %p236, %p237
      %p239 = scmp.ne.s32.totalorder %s228, %s229
      %p240 = scmp.eq.s32.totalorder %s26, 0
      %p241 = por %p239, %p240
      %p242 = scmp.ne.s32.totalorder %s228, %s229
      %p243 = scmp.eq.s32.totalorder %s27, 1
      %p244 = por %p242, %p243
      %p246 = scmp.ne.s32.totalorder %s229, %s245
      %p247 = scmp.eq.s32.totalorder %s27, 0
      %p248 = por %p246, %p247
      %p249 = scmp.le.s32.totalorder 1, %s21
      %p250 = scmp.lt.s32.totalorder %s21, 3
      %p251 = pnand %p249, %p250
      %p252 = pneg %p251
      // Predicated region
      $region9: #{tpu_custom_call.1} parent=5 // pred_check
        _
      $region10: #{tpu_custom_call.1} parent=5 // pred_check_branch
        %254 = sbr.rel (%p251) target = $region12
      $region11: #{tpu_custom_call.1} parent=5 // pred_region
        %s255 = ssub.s32 %s21, 1
        // Predicated region
        $region13: #{tpu_custom_call.1} parent=11 // pred_check
          %p256 = pneg %p68
        $region14: #{tpu_custom_call.1} parent=11 // pred_check_branch
          %258 = sbr.rel (%p256) target = $region16
        $region15: #{tpu_custom_call.1} parent=11 // pred_region
          _
        $region16: #{tpu_custom_call.1} parent=11 // pred_fallthru
          _
        // Predicated region
        $region17: #{tpu_custom_call.1} parent=11 // pred_check
          %p259 = pneg %p89
        $region18: #{tpu_custom_call.1} parent=11 // pred_check_branch
          %261 = sbr.rel (%p259) target = $region20
        $region19: #{tpu_custom_call.1} parent=11 // pred_region
          _
        $region20: #{tpu_custom_call.1} parent=11 // pred_fallthru
          _
        // Predicated region
        $region21: #{tpu_custom_call.1} parent=11 // pred_check
          %p262 = pneg %p110
        $region22: #{tpu_custom_call.1} parent=11 // pred_check_branch
          %264 = sbr.rel (%p262) target = $region24
        $region23: #{tpu_custom_call.1} parent=11 // pred_region
          _
        $region24: #{tpu_custom_call.1} parent=11 // pred_fallthru
          _
        // Predicated region
        $region25: #{tpu_custom_call.1} parent=11 // pred_check
          %p265 = pneg %p131
        $region26: #{tpu_custom_call.1} parent=11 // pred_check_branch
          %267 = sbr.rel (%p265) target = $region28
        $region27: #{tpu_custom_call.1} parent=11 // pred_region
          _
        $region28: #{tpu_custom_call.1} parent=11 // pred_fallthru
          _
        // Predicated region
        $region29: #{tpu_custom_call.1} parent=11 // pred_check
          %p268 = pneg %p152
        $region30: #{tpu_custom_call.1} parent=11 // pred_check_branch
          %270 = sbr.rel (%p268) target = $region32
        $region31: #{tpu_custom_call.1} parent=11 // pred_region
          %s272 = ssub.s32 1024, 1024
          %273 = vsyncadd [#allocation4], %s272
          %s274 = sshll.u32 [#allocation3], 4
          %s275 = int_to_ptr.vmem [resolvable:$true] %s274
          %280 = dma.hbm_to_vmem [thread:$0]  %s5, 1024, %s275, [#allocation4], 128, 128, 8
        $region32: #{tpu_custom_call.1} parent=11 // pred_fallthru
          _
        // Predicated region
        $region33: #{tpu_custom_call.1} parent=11 // pred_check
          %p281 = pneg %p173
        $region34: #{tpu_custom_call.1} parent=11 // pred_check_branch
          %283 = sbr.rel (%p281) target = $region36
        $region35: #{tpu_custom_call.1} parent=11 // pred_region
          _
        $region36: #{tpu_custom_call.1} parent=11 // pred_fallthru
          _
        // Predicated region
        $region37: #{tpu_custom_call.1} parent=11 // pred_check
          %p284 = pneg %p194
        $region38: #{tpu_custom_call.1} parent=11 // pred_check_branch
          %286 = sbr.rel (%p284) target = $region40
        $region39: #{tpu_custom_call.1} parent=11 // pred_region
          _
        $region40: #{tpu_custom_call.1} parent=11 // pred_fallthru
          _
        // Predicated region
        $region41: #{tpu_custom_call.1} parent=11 // pred_check
          %p287 = pneg %p215
        $region42: #{tpu_custom_call.1} parent=11 // pred_check_branch
          %289 = sbr.rel (%p287) target = $region44
        $region43: #{tpu_custom_call.1} parent=11 // pred_region
          _
        $region44: #{tpu_custom_call.1} parent=11 // pred_fallthru
          _
      $region12: #{tpu_custom_call.1} parent=5 // pred_fallthru
        _
      %p290 = scmp.lt.s32.totalorder %s21, 2
      // Predicated region
      $region45: #{tpu_custom_call.1} parent=5 // pred_check
        %p291 = pneg %p290
      $region46: #{tpu_custom_call.1} parent=5 // pred_check_branch
        %293 = sbr.rel (%p291) target = $region48
      $region47: #{tpu_custom_call.1} parent=5 // pred_region
        // Predicated region
        $region49: #{tpu_custom_call.1} parent=47 // pred_check
          %p294 = pneg %p41
        $region50: #{tpu_custom_call.1} parent=47 // pred_check_branch
          %296 = sbr.rel (%p294) target = $region52
        $region51: #{tpu_custom_call.1} parent=47 // pred_region
          %s297 = smul.u32 16, %s21
          %p298 = scmp.lt.s32.totalorder %s297, 31
          %s299 = scalar_select %p298, %s297, 31
          %s300 = smul.addr %s299, 4
          %s301 = scalar_lea.vmem %s0, %s300
          %s302 = smul.u32 16, %s21
        $region52: #{tpu_custom_call.1} parent=47 // pred_fallthru
          _
      $region48: #{tpu_custom_call.1} parent=5 // pred_fallthru
        _
      %p303 = scmp.le.s32.totalorder 1, %s21
      %p304 = scmp.lt.s32.totalorder %s21, 3
      %p305 = pnand %p303, %p304
      %p306 = pneg %p305
      // Predicated region
      $region53: #{tpu_custom_call.1} parent=5 // pred_check
        _
      $region54: #{tpu_custom_call.1} parent=5 // pred_check_branch
        %308 = sbr.rel (%p305) target = $region56
      $region55: #{tpu_custom_call.1} parent=5 // pred_region
        %s309 = ssub.s32 %s21, 1
        // Predicated region
        $region57: #{tpu_custom_call.1} parent=55 // pred_check
          %p310 = pneg %p152
        $region58: #{tpu_custom_call.1} parent=55 // pred_check_branch
          %312 = sbr.rel (%p310) target = $region60
        $region59: #{tpu_custom_call.1} parent=55 // pred_region
          %313 = dma.done [#allocation4], 1024
        $region60: #{tpu_custom_call.1} parent=55 // pred_fallthru
          _
        %s314 = smul.u32 16, %s26
        %p315 = scmp.lt.s32.totalorder %s314, 31
        %s316 = scalar_select %p315, %s314, 31
        %s317 = smul.addr %s316, 4
        %s318 = scalar_lea.vmem %s0, %s317
        %p319 = pneg %p47
        %p320 = pneg %p44
        %p321 = pneg %p68
        %p322 = pneg %p65
        %p323 = pneg %p89
        %p324 = pneg %p86
        %p325 = pneg %p110
        %p326 = pneg %p107
        %p327 = pneg %p131
        %p328 = pneg %p128
        %p329 = pneg %p152
        %p330 = pneg %p149
        %p331 = pneg %p173
        %p332 = pneg %p170
        %p333 = pneg %p194
        %p334 = pneg %p191
        %p335 = pneg %p215
        %p336 = pneg %p212
        %p337 = pneg %p241
        %p338 = pneg %p238
        %s339 = sand.u32 %s228, 1
        %s340 = scalar_lea.sflag [#allocation5], %s339
        %s341 = sand.u32 %s228, 1
        %s342 = smul.addr %s341, 16
        %s343 = scalar_lea.vmem [#allocation6], %s342
        %s344 = smul.u32 16, %s26
        %p345 = scmp.lt.s32.totalorder %s344, 31
        %s346 = scalar_select %p345, %s344, 31
        %s347 = smul.addr %s346, 4
        %s348 = scalar_lea.vmem %s0, %s347
        %s349 = smul.u32 16, %s26
        %s350 = smul.u32 16, %s26
        %v351 = vld [vmem:[%s348] sm:$0x77]
        %v352 = vld [vmem:[%s348 + $0x8] sm:$0x77]
        %v353 = vld [vmem:[%s1] sm:$0xff]
        %v354 = vld [vmem:[%s1 + $0x8] sm:$0xff]
        %v355 = vld [vmem:[%s1 + $0x10] sm:$0xff]
        %v356 = vld [vmem:[%s1 + $0x18] sm:$0xff]
        %358 = vset.pattern.permute.xlu0 0
        %359 = vperm.xlu0 %358, %v353
        %v360 = vpop.permute.xlu0 %359
        %363 = vset.pattern.permute.xlu0 0
        %364 = vperm.xlu0 %363, %v354
        %v365 = vpop.permute.xlu0 %364
        %368 = vset.pattern.permute.xlu0 0
        %369 = vperm.xlu0 %368, %v355
        %v370 = vpop.permute.xlu0 %369
        %373 = vset.pattern.permute.xlu0 0
        %374 = vperm.xlu0 %373, %v356
        %v375 = vpop.permute.xlu0 %374
        %v379 = vlaneseq
        %v380 = vshrl.u32 %v379, 7
        %v381 = vsub.s32 0, %v380
        %v382 = vrot.slane %v351, %v381
        %v383 = vlaneseq
        %v384 = vshrl.u32 %v383, 7
        %v385 = vsub.s32 4, %v384
        %v386 = vrot.slane %v351, %v385
        %v387 = vlaneseq
        %v388 = vshrl.u32 %v387, 7
        %v389 = vsub.s32 0, %v388
        %v390 = vrot.slane %v352, %v389
        %v391 = vlaneseq
        %v392 = vshrl.u32 %v391, 7
        %v393 = vsub.s32 4, %v392
        %v394 = vrot.slane %v352, %v393
        %v399 = vlaneseq
        %v400 = vshrl.u32 %v399, 7
        %v401 = vsub.s32 0, %v400
        %v402 = vrot.slane %v382, %v401
        %v403 = vlaneseq
        %v404 = vshrl.u32 %v403, 7
        %v405 = vsub.s32 0, %v404
        %v406 = vrot.slane %v386, %v405
        %v407 = vlaneseq
        %v408 = vshrl.u32 %v407, 7
        %v409 = vsub.s32 0, %v408
        %v410 = vrot.slane %v390, %v409
        %v411 = vlaneseq
        %v412 = vshrl.u32 %v411, 7
        %v413 = vsub.s32 0, %v412
        %v414 = vrot.slane %v394, %v413
        %v415 = vmul.f32 %v360, %v402
        %v416 = vmul.f32 %v360, %v406
        %v417 = vmul.f32 %v360, %v410
        %v418 = vmul.f32 %v360, %v414
        %v419 = vmul.f32 %v365, %v402
        %v420 = vmul.f32 %v365, %v406
        %v421 = vmul.f32 %v365, %v410
        %v422 = vmul.f32 %v365, %v414
        %v423 = vmul.f32 %v370, %v402
        %v424 = vmul.f32 %v370, %v406
        %v425 = vmul.f32 %v370, %v410
        %v426 = vmul.f32 %v370, %v414
        %v427 = vmul.f32 %v375, %v402
        %v428 = vmul.f32 %v375, %v406
        %v429 = vmul.f32 %v375, %v410
        %v430 = vmul.f32 %v375, %v414
        %431 = vset.pattern.permute.xlu0 1
        %432 = vperm.xlu0 %431, %v353
        %v433 = vpop.permute.xlu0 %432
        %435 = vset.pattern.permute.xlu0 1
        %436 = vperm.xlu0 %435, %v354
        %v437 = vpop.permute.xlu0 %436
        %439 = vset.pattern.permute.xlu0 1
        %440 = vperm.xlu0 %439, %v355
        %v441 = vpop.permute.xlu0 %440
        %443 = vset.pattern.permute.xlu0 1
        %444 = vperm.xlu0 %443, %v356
        %v445 = vpop.permute.xlu0 %444
        %v447 = vlaneseq
        %v448 = vshrl.u32 %v447, 7
        %v449 = vsub.s32 1, %v448
        %v450 = vrot.slane %v351, %v449
        %v451 = vlaneseq
        %v452 = vshrl.u32 %v451, 7
        %v453 = vsub.s32 5, %v452
        %v454 = vrot.slane %v351, %v453
        %v455 = vlaneseq
        %v456 = vshrl.u32 %v455, 7
        %v457 = vsub.s32 1, %v456
        %v458 = vrot.slane %v352, %v457
        %v459 = vlaneseq
        %v460 = vshrl.u32 %v459, 7
        %v461 = vsub.s32 5, %v460
        %v462 = vrot.slane %v352, %v461
        %v467 = vlaneseq
        %v468 = vshrl.u32 %v467, 7
        %v469 = vsub.s32 1, %v468
        %v470 = vrot.slane %v450, %v469
        %v471 = vlaneseq
        %v472 = vshrl.u32 %v471, 7
        %v473 = vsub.s32 1, %v472
        %v474 = vrot.slane %v454, %v473
        %v475 = vlaneseq
        %v476 = vshrl.u32 %v475, 7
        %v477 = vsub.s32 1, %v476
        %v478 = vrot.slane %v458, %v477
        %v479 = vlaneseq
        %v480 = vshrl.u32 %v479, 7
        %v481 = vsub.s32 1, %v480
        %v482 = vrot.slane %v462, %v481
        %v483 = vmul.f32 %v433, %v470
        %v484 = vmul.f32 %v433, %v474
        %v485 = vmul.f32 %v433, %v478
        %v486 = vmul.f32 %v433, %v482
        %v487 = vmul.f32 %v437, %v470
        %v488 = vmul.f32 %v437, %v474
        %v489 = vmul.f32 %v437, %v478
        %v490 = vmul.f32 %v437, %v482
        %v491 = vmul.f32 %v441, %v470
        %v492 = vmul.f32 %v441, %v474
        %v493 = vmul.f32 %v441, %v478
        %v494 = vmul.f32 %v441, %v482
        %v495 = vmul.f32 %v445, %v470
        %v496 = vmul.f32 %v445, %v474
        %v497 = vmul.f32 %v445, %v478
        %v498 = vmul.f32 %v445, %v482
        %v499 = vadd.f32 %v415, %v483
        %v500 = vadd.f32 %v416, %v484
        %v501 = vadd.f32 %v417, %v485
        %v502 = vadd.f32 %v418, %v486
        %v503 = vadd.f32 %v419, %v487
        %v504 = vadd.f32 %v420, %v488
        %v505 = vadd.f32 %v421, %v489
        %v506 = vadd.f32 %v422, %v490
        %v507 = vadd.f32 %v423, %v491
        %v508 = vadd.f32 %v424, %v492
        %v509 = vadd.f32 %v425, %v493
        %v510 = vadd.f32 %v426, %v494
        %v511 = vadd.f32 %v427, %v495
        %v512 = vadd.f32 %v428, %v496
        %v513 = vadd.f32 %v429, %v497
        %v514 = vadd.f32 %v430, %v498
        %515 = vset.pattern.permute.xlu0 2
        %516 = vperm.xlu0 %515, %v353
        %v517 = vpop.permute.xlu0 %516
        %519 = vset.pattern.permute.xlu0 2
        %520 = vperm.xlu0 %519, %v354
        %v521 = vpop.permute.xlu0 %520
        %523 = vset.pattern.permute.xlu0 2
        %524 = vperm.xlu0 %523, %v355
        %v525 = vpop.permute.xlu0 %524
        %527 = vset.pattern.permute.xlu0 2
        %528 = vperm.xlu0 %527, %v356
        %v529 = vpop.permute.xlu0 %528
        %v531 = vlaneseq
        %v532 = vshrl.u32 %v531, 7
        %v533 = vsub.s32 2, %v532
        %v534 = vrot.slane %v351, %v533
        %v535 = vlaneseq
        %v536 = vshrl.u32 %v535, 7
        %v537 = vsub.s32 6, %v536
        %v538 = vrot.slane %v351, %v537
        %v539 = vlaneseq
        %v540 = vshrl.u32 %v539, 7
        %v541 = vsub.s32 2, %v540
        %v542 = vrot.slane %v352, %v541
        %v543 = vlaneseq
        %v544 = vshrl.u32 %v543, 7
        %v545 = vsub.s32 6, %v544
        %v546 = vrot.slane %v352, %v545
        %v551 = vlaneseq
        %v552 = vshrl.u32 %v551, 7
        %v553 = vsub.s32 2, %v552
        %v554 = vrot.slane %v534, %v553
        %v555 = vlaneseq
        %v556 = vshrl.u32 %v555, 7
        %v557 = vsub.s32 2, %v556
        %v558 = vrot.slane %v538, %v557
        %v559 = vlaneseq
        %v560 = vshrl.u32 %v559, 7
        %v561 = vsub.s32 2, %v560
        %v562 = vrot.slane %v542, %v561
        %v563 = vlaneseq
        %v564 = vshrl.u32 %v563, 7
        %v565 = vsub.s32 2, %v564
        %v566 = vrot.slane %v546, %v565
        %v567 = vmul.f32 %v517, %v554
        %v568 = vmul.f32 %v517, %v558
        %v569 = vmul.f32 %v517, %v562
        %v570 = vmul.f32 %v517, %v566
        %v571 = vmul.f32 %v521, %v554
        %v572 = vmul.f32 %v521, %v558
        %v573 = vmul.f32 %v521, %v562
        %v574 = vmul.f32 %v521, %v566
        %v575 = vmul.f32 %v525, %v554
        %v576 = vmul.f32 %v525, %v558
        %v577 = vmul.f32 %v525, %v562
        %v578 = vmul.f32 %v525, %v566
        %v579 = vmul.f32 %v529, %v554
        %v580 = vmul.f32 %v529, %v558
        %v581 = vmul.f32 %v529, %v562
        %v582 = vmul.f32 %v529, %v566
        %v583 = vadd.f32 %v499, %v567
        %v584 = vadd.f32 %v500, %v568
        %v585 = vadd.f32 %v501, %v569
        %v586 = vadd.f32 %v502, %v570
        %v587 = vadd.f32 %v503, %v571
        %v588 = vadd.f32 %v504, %v572
        %v589 = vadd.f32 %v505, %v573
        %v590 = vadd.f32 %v506, %v574
        %v591 = vadd.f32 %v507, %v575
        %v592 = vadd.f32 %v508, %v576
        %v593 = vadd.f32 %v509, %v577
        %v594 = vadd.f32 %v510, %v578
        %v595 = vadd.f32 %v511, %v579
        %v596 = vadd.f32 %v512, %v580
        %v597 = vadd.f32 %v513, %v581
        %v598 = vadd.f32 %v514, %v582
        %v599 = vld [vmem:[%s2] sm:$0xff]
        %v600 = vld [vmem:[%s2 + $0x8] sm:$0xff]
        %v601 = vld [vmem:[%s2 + $0x10] sm:$0xff]
        %v602 = vld [vmem:[%s2 + $0x18] sm:$0xff]
        %604 = vset.pattern.permute.xlu0 0
        %605 = vperm.xlu0 %604, %v599
        %v606 = vpop.permute.xlu0 %605
        %609 = vset.pattern.permute.xlu0 0
        %610 = vperm.xlu0 %609, %v600
        %v611 = vpop.permute.xlu0 %610
        %614 = vset.pattern.permute.xlu0 0
        %615 = vperm.xlu0 %614, %v601
        %v616 = vpop.permute.xlu0 %615
        %619 = vset.pattern.permute.xlu0 0
        %620 = vperm.xlu0 %619, %v602
        %v621 = vpop.permute.xlu0 %620
        %v623 = vadd.f32 %v583, %v606
        %v624 = vadd.f32 %v584, %v606
        %v625 = vadd.f32 %v585, %v606
        %v626 = vadd.f32 %v586, %v606
        %v627 = vadd.f32 %v587, %v611
        %v628 = vadd.f32 %v588, %v611
        %v629 = vadd.f32 %v589, %v611
        %v630 = vadd.f32 %v590, %v611
        %v631 = vadd.f32 %v591, %v616
        %v632 = vadd.f32 %v592, %v616
        %v633 = vadd.f32 %v593, %v616
        %v634 = vadd.f32 %v594, %v616
        %v635 = vadd.f32 %v595, %v621
        %v636 = vadd.f32 %v596, %v621
        %v637 = vadd.f32 %v597, %v621
        %v638 = vadd.f32 %v598, %v621
        %v639 = vld [vmem:[%s3] sm:$0xff]
        %v640 = vld [vmem:[%s3 + $0x8] sm:$0xff]
        %v641 = vld [vmem:[%s3 + $0x10] sm:$0xff]
        %v642 = vld [vmem:[%s3 + $0x18] sm:$0xff]
        %v643 = vld [vmem:[%s4] sm:$0xff]
        %v644 = vld [vmem:[%s4 + $0x8] sm:$0xff]
        %v645 = vld [vmem:[%s4 + $0x10] sm:$0xff]
        %v646 = vld [vmem:[%s4 + $0x18] sm:$0xff]
        %648 = vset.pattern.permute.xlu0 0
        %649 = vperm.xlu0 %648, %v643
        %v650 = vpop.permute.xlu0 %649
        %653 = vset.pattern.permute.xlu0 0
        %654 = vperm.xlu0 %653, %v644
        %v655 = vpop.permute.xlu0 %654
        %658 = vset.pattern.permute.xlu0 0
        %659 = vperm.xlu0 %658, %v645
        %v660 = vpop.permute.xlu0 %659
        %663 = vset.pattern.permute.xlu0 0
        %664 = vperm.xlu0 %663, %v646
        %v665 = vpop.permute.xlu0 %664
        %vm667 = vcmask 261120
        %v669 = vsel %vm667, %v639, 0
        %v672 = vsel %vm667, %v640, 0
        %v675 = vsel %vm667, %v641, 0
        %v678 = vsel %vm667, %v642, 0
        %680 = vmatprep.subr.mxu0 0.0
        %681 = vmatpush1.msra.mxu0 0.0
        %682 = vmatprep.subr.mxu0 0.0
        %683 = vmatpush1.msra.mxu0 0.0
        %684 = vmatprep.subr.mxu0 0.0
        %685 = vmatpush1.msra.mxu0 0.0
        %686 = vmatprep.subr.mxu0 0.0
        %687 = vmatpush1.msra.mxu0 0.0
        %688 = vmatprep.subr.mxu0 0.0
        %689 = vmatpush1.msra.mxu0 0.0
        %690 = vmatprep.subr.mxu0 0.0
        %691 = vmatpush1.msra.mxu0 0.0
        %692 = vmatprep.subr.mxu0 0.0
        %693 = vmatpush1.msra.mxu0 0.0
        %694 = vmatprep.subr.mxu0 0.0
        %695 = vmatpush1.msra.mxu0 0.0
        %696 = vmatprep.subr.mxu0 0.0
        %697 = vmatpush1.msra.mxu0 0.0
        %698 = vmatprep.subr.mxu0 0.0
        %699 = vmatpush1.msra.mxu0 0.0
        %700 = vmatprep.subr.mxu0 0.0
        %701 = vmatpush1.msra.mxu0 0.0
        %702 = vmatprep.subr.mxu0 0.0
        %703 = vmatpush1.msra.mxu0 0.0
        %704 = vmatprep.subr.mxu0 %v636
        %705 = vmatpush1.msra.mxu0 %v635
        %706 = vmatprep.subr.mxu0 %v632
        %707 = vmatpush1.msra.mxu0 %v631
        %708 = vmatprep.subr.mxu0 %v628
        %709 = vmatpush1.msra.mxu0 %v627
        %710 = vmatprep.subr.mxu0 %v624
        %711 = vmatpush1.msra.mxu0 %v623
        %712 = vmatprep.subr.mxu0 0.0
        %713 = vmatpush2.msra.mxu0 0.0
        %714 = vmatprep.subr.mxu0 0.0
        %715 = vmatpush2.msra.mxu0 0.0
        %716 = vmatprep.subr.mxu0 0.0
        %717 = vmatpush2.msra.mxu0 0.0
        %718 = vmatprep.subr.mxu0 0.0
        %719 = vmatpush2.msra.mxu0 0.0
        %720 = vmatprep.subr.mxu0 0.0
        %721 = vmatpush2.msra.mxu0 0.0
        %722 = vmatprep.subr.mxu0 0.0
        %723 = vmatpush2.msra.mxu0 0.0
        %724 = vmatprep.subr.mxu0 0.0
        %725 = vmatpush2.msra.mxu0 0.0
        %726 = vmatprep.subr.mxu0 0.0
        %727 = vmatpush2.msra.mxu0 0.0
        %728 = vmatprep.subr.mxu0 0.0
        %729 = vmatpush2.msra.mxu0 0.0
        %730 = vmatprep.subr.mxu0 0.0
        %731 = vmatpush2.msra.mxu0 0.0
        %732 = vmatprep.subr.mxu0 0.0
        %733 = vmatpush2.msra.mxu0 0.0
        %734 = vmatprep.subr.mxu0 0.0
        %735 = vmatpush2.msra.mxu0 0.0
        %736 = vmatprep.subr.mxu0 0.0
        %737 = vmatpush2.msra.mxu0 0.0
        %738 = vmatprep.subr.mxu0 0.0
        %739 = vmatpush2.msra.mxu0 0.0
        %740 = vmatprep.subr.mxu0 0.0
        %741 = vmatpush2.msra.mxu0 0.0
        %742 = vmatprep.subr.mxu0 0.0
        %743 = vmatpush2.msra.mxu0 0.0
        %744 = vmatprep.mubr.f32.mxu0 0.0
        %745 = vmatmul.mubr.f32.gmra.mxu0 %v669
        %v746 = vpop.f32.mrf.mxu0
        %v747 = vadd.f32 %v650, %v746
        %v748 = vpop.f32.mrf.mxu0
        %v749 = vadd.f32 %v650, %v748
        %750 = vmatprep.mubr.f32.mxu0 0.0
        %751 = vmatmul.mubr.f32.gmra.mxu0 %v672
        %v752 = vpop.f32.mrf.mxu0
        %v753 = vadd.f32 %v655, %v752
        %v754 = vpop.f32.mrf.mxu0
        %v755 = vadd.f32 %v655, %v754
        %756 = vmatprep.mubr.f32.mxu0 0.0
        %757 = vmatmul.mubr.f32.gmra.mxu0 %v675
        %v758 = vpop.f32.mrf.mxu0
        %v759 = vadd.f32 %v660, %v758
        %v760 = vpop.f32.mrf.mxu0
        %v761 = vadd.f32 %v660, %v760
        %762 = vmatprep.mubr.f32.mxu0 0.0
        %763 = vmatmul.mubr.f32.gmra.mxu0 %v678
        %v764 = vpop.f32.mrf.mxu0
        %v765 = vadd.f32 %v665, %v764
        %v766 = vpop.f32.mrf.mxu0
        %v767 = vadd.f32 %v665, %v766
        %768 = vdwg.mxu0
        %769 = vmatprep.subr.mxu0 0.0
        %770 = vmatpush1.msra.mxu0 0.0
        %771 = vmatprep.subr.mxu0 0.0
        %772 = vmatpush1.msra.mxu0 0.0
        %773 = vmatprep.subr.mxu0 0.0
        %774 = vmatpush1.msra.mxu0 0.0
        %775 = vmatprep.subr.mxu0 0.0
        %776 = vmatpush1.msra.mxu0 0.0
        %777 = vmatprep.subr.mxu0 0.0
        %778 = vmatpush1.msra.mxu0 0.0
        %779 = vmatprep.subr.mxu0 0.0
        %780 = vmatpush1.msra.mxu0 0.0
        %781 = vmatprep.subr.mxu0 0.0
        %782 = vmatpush1.msra.mxu0 0.0
        %783 = vmatprep.subr.mxu0 0.0
        %784 = vmatpush1.msra.mxu0 0.0
        %785 = vmatprep.subr.mxu0 0.0
        %786 = vmatpush1.msra.mxu0 0.0
        %787 = vmatprep.subr.mxu0 0.0
        %788 = vmatpush1.msra.mxu0 0.0
        %789 = vmatprep.subr.mxu0 0.0
        %790 = vmatpush1.msra.mxu0 0.0
        %791 = vmatprep.subr.mxu0 0.0
        %792 = vmatpush1.msra.mxu0 0.0
        %793 = vmatprep.subr.mxu0 %v638
        %794 = vmatpush1.msra.mxu0 %v637
        %795 = vmatprep.subr.mxu0 %v634
        %796 = vmatpush1.msra.mxu0 %v633
        %797 = vmatprep.subr.mxu0 %v630
        %798 = vmatpush1.msra.mxu0 %v629
        %799 = vmatprep.subr.mxu0 %v626
        %800 = vmatpush1.msra.mxu0 %v625
        %801 = vmatprep.subr.mxu0 0.0
        %802 = vmatpush2.msra.mxu0 0.0
        %803 = vmatprep.subr.mxu0 0.0
        %804 = vmatpush2.msra.mxu0 0.0
        %805 = vmatprep.subr.mxu0 0.0
        %806 = vmatpush2.msra.mxu0 0.0
        %807 = vmatprep.subr.mxu0 0.0
        %808 = vmatpush2.msra.mxu0 0.0
        %809 = vmatprep.subr.mxu0 0.0
        %810 = vmatpush2.msra.mxu0 0.0
        %811 = vmatprep.subr.mxu0 0.0
        %812 = vmatpush2.msra.mxu0 0.0
        %813 = vmatprep.subr.mxu0 0.0
        %814 = vmatpush2.msra.mxu0 0.0
        %815 = vmatprep.subr.mxu0 0.0
        %816 = vmatpush2.msra.mxu0 0.0
        %817 = vmatprep.subr.mxu0 0.0
        %818 = vmatpush2.msra.mxu0 0.0
        %819 = vmatprep.subr.mxu0 0.0
        %820 = vmatpush2.msra.mxu0 0.0
        %821 = vmatprep.subr.mxu0 0.0
        %822 = vmatpush2.msra.mxu0 0.0
        %823 = vmatprep.subr.mxu0 0.0
        %824 = vmatpush2.msra.mxu0 0.0
        %825 = vmatprep.subr.mxu0 0.0
        %826 = vmatpush2.msra.mxu0 0.0
        %827 = vmatprep.subr.mxu0 0.0
        %828 = vmatpush2.msra.mxu0 0.0
        %829 = vmatprep.subr.mxu0 0.0
        %830 = vmatpush2.msra.mxu0 0.0
        %831 = vmatprep.subr.mxu0 0.0
        %832 = vmatpush2.msra.mxu0 0.0
        %833 = vmatprep.mubr.f32.mxu0 0.0
        %834 = vmatmul.mubr.f32.gmra.mxu0 %v669
        %v835 = vpop.f32.mrf.mxu0
        %v836 = vadd.f32 %v650, %v835
        %v837 = vpop.f32.mrf.mxu0
        %v838 = vadd.f32 %v650, %v837
        %839 = vmatprep.mubr.f32.mxu0 0.0
        %840 = vmatmul.mubr.f32.gmra.mxu0 %v672
        %v841 = vpop.f32.mrf.mxu0
        %v842 = vadd.f32 %v655, %v841
        %v843 = vpop.f32.mrf.mxu0
        %v844 = vadd.f32 %v655, %v843
        %845 = vmatprep.mubr.f32.mxu0 0.0
        %846 = vmatmul.mubr.f32.gmra.mxu0 %v675
        %v847 = vpop.f32.mrf.mxu0
        %v848 = vadd.f32 %v660, %v847
        %v849 = vpop.f32.mrf.mxu0
        %v850 = vadd.f32 %v660, %v849
        %851 = vmatprep.mubr.f32.mxu0 0.0
        %852 = vmatmul.mubr.f32.gmra.mxu0 %v678
        %v853 = vpop.f32.mrf.mxu0
        %v854 = vadd.f32 %v665, %v853
        %v855 = vpop.f32.mrf.mxu0
        %v856 = vadd.f32 %v665, %v855
        %857 = vdwg.mxu0
        %v858 = vtanh.pop %v747
        %v859 = vtanh.pop %v749
        %v860 = vtanh.pop %v836
        %v861 = vtanh.pop %v838
        %v862 = vtanh.pop %v753
        %v863 = vtanh.pop %v755
        %v864 = vtanh.pop %v842
        %v865 = vtanh.pop %v844
        %v866 = vtanh.pop %v759
        %v867 = vtanh.pop %v761
        %v868 = vtanh.pop %v848
        %v869 = vtanh.pop %v850
        %v870 = vtanh.pop %v765
        %v871 = vtanh.pop %v767
        %v872 = vtanh.pop %v854
        %v873 = vtanh.pop %v856
        %v874 = vld [vmem:[#allocation3] sm:$0xff]
        %v875 = vld [vmem:[#allocation3 + $0x8] sm:$0xff]
        %v876 = vld [vmem:[#allocation3 + $0x10] sm:$0xff]
        %v877 = vld [vmem:[#allocation3 + $0x18] sm:$0xff]
        %v878 = vld [vmem:[%s6] sm:$0xff]
        %v879 = vld [vmem:[%s6 + $0x8] sm:$0xff]
        %v880 = vld [vmem:[%s6 + $0x10] sm:$0xff]
        %v881 = vld [vmem:[%s6 + $0x18] sm:$0xff]
        %883 = vset.pattern.permute.xlu0 0
        %884 = vperm.xlu0 %883, %v878
        %v885 = vpop.permute.xlu0 %884
        %888 = vset.pattern.permute.xlu0 0
        %889 = vperm.xlu0 %888, %v879
        %v890 = vpop.permute.xlu0 %889
        %893 = vset.pattern.permute.xlu0 0
        %894 = vperm.xlu0 %893, %v880
        %v895 = vpop.permute.xlu0 %894
        %898 = vset.pattern.permute.xlu0 0
        %899 = vperm.xlu0 %898, %v881
        %v900 = vpop.permute.xlu0 %899
        %v903 = vsel %vm667, %v874, 0
        %v906 = vsel %vm667, %v875, 0
        %v909 = vsel %vm667, %v876, 0
        %v912 = vsel %vm667, %v877, 0
        %914 = vmatprep.subr.mxu0 0.0
        %915 = vmatpush1.msra.mxu0 0.0
        %916 = vmatprep.subr.mxu0 0.0
        %917 = vmatpush1.msra.mxu0 0.0
        %918 = vmatprep.subr.mxu0 0.0
        %919 = vmatpush1.msra.mxu0 0.0
        %920 = vmatprep.subr.mxu0 0.0
        %921 = vmatpush1.msra.mxu0 0.0
        %922 = vmatprep.subr.mxu0 0.0
        %923 = vmatpush1.msra.mxu0 0.0
        %924 = vmatprep.subr.mxu0 0.0
        %925 = vmatpush1.msra.mxu0 0.0
        %926 = vmatprep.subr.mxu0 0.0
        %927 = vmatpush1.msra.mxu0 0.0
        %928 = vmatprep.subr.mxu0 0.0
        %929 = vmatpush1.msra.mxu0 0.0
        %930 = vmatprep.subr.mxu0 0.0
        %931 = vmatpush1.msra.mxu0 0.0
        %932 = vmatprep.subr.mxu0 0.0
        %933 = vmatpush1.msra.mxu0 0.0
        %934 = vmatprep.subr.mxu0 0.0
        %935 = vmatpush1.msra.mxu0 0.0
        %936 = vmatprep.subr.mxu0 0.0
        %937 = vmatpush1.msra.mxu0 0.0
        %938 = vmatprep.subr.mxu0 %v871
        %939 = vmatpush1.msra.mxu0 %v870
        %940 = vmatprep.subr.mxu0 %v867
        %941 = vmatpush1.msra.mxu0 %v866
        %942 = vmatprep.subr.mxu0 %v863
        %943 = vmatpush1.msra.mxu0 %v862
        %944 = vmatprep.subr.mxu0 %v859
        %945 = vmatpush1.msra.mxu0 %v858
        %946 = vmatprep.subr.mxu0 0.0
        %947 = vmatpush2.msra.mxu0 0.0
        %948 = vmatprep.subr.mxu0 0.0
        %949 = vmatpush2.msra.mxu0 0.0
        %950 = vmatprep.subr.mxu0 0.0
        %951 = vmatpush2.msra.mxu0 0.0
        %952 = vmatprep.subr.mxu0 0.0
        %953 = vmatpush2.msra.mxu0 0.0
        %954 = vmatprep.subr.mxu0 0.0
        %955 = vmatpush2.msra.mxu0 0.0
        %956 = vmatprep.subr.mxu0 0.0
        %957 = vmatpush2.msra.mxu0 0.0
        %958 = vmatprep.subr.mxu0 0.0
        %959 = vmatpush2.msra.mxu0 0.0
        %960 = vmatprep.subr.mxu0 0.0
        %961 = vmatpush2.msra.mxu0 0.0
        %962 = vmatprep.subr.mxu0 0.0
        %963 = vmatpush2.msra.mxu0 0.0
        %964 = vmatprep.subr.mxu0 0.0
        %965 = vmatpush2.msra.mxu0 0.0
        %966 = vmatprep.subr.mxu0 0.0
        %967 = vmatpush2.msra.mxu0 0.0
        %968 = vmatprep.subr.mxu0 0.0
        %969 = vmatpush2.msra.mxu0 0.0
        %970 = vmatprep.subr.mxu0 0.0
        %971 = vmatpush2.msra.mxu0 0.0
        %972 = vmatprep.subr.mxu0 0.0
        %973 = vmatpush2.msra.mxu0 0.0
        %974 = vmatprep.subr.mxu0 0.0
        %975 = vmatpush2.msra.mxu0 0.0
        %976 = vmatprep.subr.mxu0 0.0
        %977 = vmatpush2.msra.mxu0 0.0
        %978 = vmatprep.mubr.f32.mxu0 0.0
        %979 = vmatmul.mubr.f32.gmra.mxu0 %v903
        %v980 = vpop.f32.mrf.mxu0
        %v981 = vadd.f32 %v885, %v980
        %v982 = vpop.f32.mrf.mxu0
        %v983 = vadd.f32 %v885, %v982
        %984 = vmatprep.mubr.f32.mxu0 0.0
        %985 = vmatmul.mubr.f32.gmra.mxu0 %v906
        %v986 = vpop.f32.mrf.mxu0
        %v987 = vadd.f32 %v890, %v986
        %v988 = vpop.f32.mrf.mxu0
        %v989 = vadd.f32 %v890, %v988
        %990 = vmatprep.mubr.f32.mxu0 0.0
        %991 = vmatmul.mubr.f32.gmra.mxu0 %v909
        %v992 = vpop.f32.mrf.mxu0
        %v993 = vadd.f32 %v895, %v992
        %v994 = vpop.f32.mrf.mxu0
        %v995 = vadd.f32 %v895, %v994
        %996 = vmatprep.mubr.f32.mxu0 0.0
        %997 = vmatmul.mubr.f32.gmra.mxu0 %v912
        %v998 = vpop.f32.mrf.mxu0
        %v999 = vadd.f32 %v900, %v998
        %v1000 = vpop.f32.mrf.mxu0
        %v1001 = vadd.f32 %v900, %v1000
        %1002 = vdwg.mxu0
        %1003 = vmatprep.subr.mxu0 0.0
        %1004 = vmatpush1.msra.mxu0 0.0
        %1005 = vmatprep.subr.mxu0 0.0
        %1006 = vmatpush1.msra.mxu0 0.0
        %1007 = vmatprep.subr.mxu0 0.0
        %1008 = vmatpush1.msra.mxu0 0.0
        %1009 = vmatprep.subr.mxu0 0.0
        %1010 = vmatpush1.msra.mxu0 0.0
        %1011 = vmatprep.subr.mxu0 0.0
        %1012 = vmatpush1.msra.mxu0 0.0
        %1013 = vmatprep.subr.mxu0 0.0
        %1014 = vmatpush1.msra.mxu0 0.0
        %1015 = vmatprep.subr.mxu0 0.0
        %1016 = vmatpush1.msra.mxu0 0.0
        %1017 = vmatprep.subr.mxu0 0.0
        %1018 = vmatpush1.msra.mxu0 0.0
        %1019 = vmatprep.subr.mxu0 0.0
        %1020 = vmatpush1.msra.mxu0 0.0
        %1021 = vmatprep.subr.mxu0 0.0
        %1022 = vmatpush1.msra.mxu0 0.0
        %1023 = vmatprep.subr.mxu0 0.0
        %1024 = vmatpush1.msra.mxu0 0.0
        %1025 = vmatprep.subr.mxu0 0.0
        %1026 = vmatpush1.msra.mxu0 0.0
        %1027 = vmatprep.subr.mxu0 %v873
        %1028 = vmatpush1.msra.mxu0 %v872
        %1029 = vmatprep.subr.mxu0 %v869
        %1030 = vmatpush1.msra.mxu0 %v868
        %1031 = vmatprep.subr.mxu0 %v865
        %1032 = vmatpush1.msra.mxu0 %v864
        %1033 = vmatprep.subr.mxu0 %v861
        %1034 = vmatpush1.msra.mxu0 %v860
        %1035 = vmatprep.subr.mxu0 0.0
        %1036 = vmatpush2.msra.mxu0 0.0
        %1037 = vmatprep.subr.mxu0 0.0
        %1038 = vmatpush2.msra.mxu0 0.0
        %1039 = vmatprep.subr.mxu0 0.0
        %1040 = vmatpush2.msra.mxu0 0.0
        %1041 = vmatprep.subr.mxu0 0.0
        %1042 = vmatpush2.msra.mxu0 0.0
        %1043 = vmatprep.subr.mxu0 0.0
        %1044 = vmatpush2.msra.mxu0 0.0
        %1045 = vmatprep.subr.mxu0 0.0
        %1046 = vmatpush2.msra.mxu0 0.0
        %1047 = vmatprep.subr.mxu0 0.0
        %1048 = vmatpush2.msra.mxu0 0.0
        %1049 = vmatprep.subr.mxu0 0.0
        %1050 = vmatpush2.msra.mxu0 0.0
        %1051 = vmatprep.subr.mxu0 0.0
        %1052 = vmatpush2.msra.mxu0 0.0
        %1053 = vmatprep.subr.mxu0 0.0
        %1054 = vmatpush2.msra.mxu0 0.0
        %1055 = vmatprep.subr.mxu0 0.0
        %1056 = vmatpush2.msra.mxu0 0.0
        %1057 = vmatprep.subr.mxu0 0.0
        %1058 = vmatpush2.msra.mxu0 0.0
        %1059 = vmatprep.subr.mxu0 0.0
        %1060 = vmatpush2.msra.mxu0 0.0
        %1061 = vmatprep.subr.mxu0 0.0
        %1062 = vmatpush2.msra.mxu0 0.0
        %1063 = vmatprep.subr.mxu0 0.0
        %1064 = vmatpush2.msra.mxu0 0.0
        %1065 = vmatprep.subr.mxu0 0.0
        %1066 = vmatpush2.msra.mxu0 0.0
        %1067 = vmatprep.mubr.f32.mxu0 0.0
        %1068 = vmatmul.mubr.f32.gmra.mxu0 %v903
        %v1069 = vpop.f32.mrf.mxu0
        %v1070 = vadd.f32 %v885, %v1069
        %v1071 = vpop.f32.mrf.mxu0
        %v1072 = vadd.f32 %v885, %v1071
        %1073 = vmatprep.mubr.f32.mxu0 0.0
        %1074 = vmatmul.mubr.f32.gmra.mxu0 %v906
        %v1075 = vpop.f32.mrf.mxu0
        %v1076 = vadd.f32 %v890, %v1075
        %v1077 = vpop.f32.mrf.mxu0
        %v1078 = vadd.f32 %v890, %v1077
        %1079 = vmatprep.mubr.f32.mxu0 0.0
        %1080 = vmatmul.mubr.f32.gmra.mxu0 %v909
        %v1081 = vpop.f32.mrf.mxu0
        %v1082 = vadd.f32 %v895, %v1081
        %v1083 = vpop.f32.mrf.mxu0
        %v1084 = vadd.f32 %v895, %v1083
        %1085 = vmatprep.mubr.f32.mxu0 0.0
        %1086 = vmatmul.mubr.f32.gmra.mxu0 %v912
        %v1087 = vpop.f32.mrf.mxu0
        %v1088 = vadd.f32 %v900, %v1087
        %v1089 = vpop.f32.mrf.mxu0
        %v1090 = vadd.f32 %v900, %v1089
        %1091 = vdwg.mxu0
        %v1092 = vtanh.pop %v981
        %v1093 = vtanh.pop %v983
        %v1094 = vtanh.pop %v1070
        %v1095 = vtanh.pop %v1072
        %v1096 = vtanh.pop %v987
        %v1097 = vtanh.pop %v989
        %v1098 = vtanh.pop %v1076
        %v1099 = vtanh.pop %v1078
        %v1100 = vtanh.pop %v993
        %v1101 = vtanh.pop %v995
        %v1102 = vtanh.pop %v1082
        %v1103 = vtanh.pop %v1084
        %v1104 = vtanh.pop %v999
        %v1105 = vtanh.pop %v1001
        %v1106 = vtanh.pop %v1088
        %v1107 = vtanh.pop %v1090
        %v1108 = vadd.f32 %v1092, %v623
        %v1109 = vadd.f32 %v1093, %v624
        %v1110 = vadd.f32 %v1094, %v625
        %v1111 = vadd.f32 %v1095, %v626
        %v1112 = vadd.f32 %v1096, %v627
        %v1113 = vadd.f32 %v1097, %v628
        %v1114 = vadd.f32 %v1098, %v629
        %v1115 = vadd.f32 %v1099, %v630
        %v1116 = vadd.f32 %v1100, %v631
        %v1117 = vadd.f32 %v1101, %v632
        %v1118 = vadd.f32 %v1102, %v633
        %v1119 = vadd.f32 %v1103, %v634
        %v1120 = vadd.f32 %v1104, %v635
        %v1121 = vadd.f32 %v1105, %v636
        %v1122 = vadd.f32 %v1106, %v637
        %v1123 = vadd.f32 %v1107, %v638
        %s1124 = scalar_lea.vmem %s3, 32
        %v1125 = vld [vmem:[%s1124] sm:$0xff]
        %v1126 = vld [vmem:[%s1124 + $0x8] sm:$0xff]
        %v1127 = vld [vmem:[%s1124 + $0x10] sm:$0xff]
        %v1128 = vld [vmem:[%s1124 + $0x18] sm:$0xff]
        %s1129 = scalar_lea.vmem %s4, 32
        %v1130 = vld [vmem:[%s1129] sm:$0xff]
        %v1131 = vld [vmem:[%s1129 + $0x8] sm:$0xff]
        %v1132 = vld [vmem:[%s1129 + $0x10] sm:$0xff]
        %v1133 = vld [vmem:[%s1129 + $0x18] sm:$0xff]
        %1135 = vset.pattern.permute.xlu0 0
        %1136 = vperm.xlu0 %1135, %v1130
        %v1137 = vpop.permute.xlu0 %1136
        %1140 = vset.pattern.permute.xlu0 0
        %1141 = vperm.xlu0 %1140, %v1131
        %v1142 = vpop.permute.xlu0 %1141
        %1145 = vset.pattern.permute.xlu0 0
        %1146 = vperm.xlu0 %1145, %v1132
        %v1147 = vpop.permute.xlu0 %1146
        %1150 = vset.pattern.permute.xlu0 0
        %1151 = vperm.xlu0 %1150, %v1133
        %v1152 = vpop.permute.xlu0 %1151
        %v1155 = vsel %vm667, %v1125, 0
        %v1158 = vsel %vm667, %v1126, 0
        %v1161 = vsel %vm667, %v1127, 0
        %v1164 = vsel %vm667, %v1128, 0
        %1166 = vmatprep.subr.mxu0 0.0
        %1167 = vmatpush1.msra.mxu0 0.0
        %1168 = vmatprep.subr.mxu0 0.0
        %1169 = vmatpush1.msra.mxu0 0.0
        %1170 = vmatprep.subr.mxu0 0.0
        %1171 = vmatpush1.msra.mxu0 0.0
        %1172 = vmatprep.subr.mxu0 0.0
        %1173 = vmatpush1.msra.mxu0 0.0
        %1174 = vmatprep.subr.mxu0 0.0
        %1175 = vmatpush1.msra.mxu0 0.0
        %1176 = vmatprep.subr.mxu0 0.0
        %1177 = vmatpush1.msra.mxu0 0.0
        %1178 = vmatprep.subr.mxu0 0.0
        %1179 = vmatpush1.msra.mxu0 0.0
        %1180 = vmatprep.subr.mxu0 0.0
        %1181 = vmatpush1.msra.mxu0 0.0
        %1182 = vmatprep.subr.mxu0 0.0
        %1183 = vmatpush1.msra.mxu0 0.0
        %1184 = vmatprep.subr.mxu0 0.0
        %1185 = vmatpush1.msra.mxu0 0.0
        %1186 = vmatprep.subr.mxu0 0.0
        %1187 = vmatpush1.msra.mxu0 0.0
        %1188 = vmatprep.subr.mxu0 0.0
        %1189 = vmatpush1.msra.mxu0 0.0
        %1190 = vmatprep.subr.mxu0 %v1121
        %1191 = vmatpush1.msra.mxu0 %v1120
        %1192 = vmatprep.subr.mxu0 %v1117
        %1193 = vmatpush1.msra.mxu0 %v1116
        %1194 = vmatprep.subr.mxu0 %v1113
        %1195 = vmatpush1.msra.mxu0 %v1112
        %1196 = vmatprep.subr.mxu0 %v1109
        %1197 = vmatpush1.msra.mxu0 %v1108
        %1198 = vmatprep.subr.mxu0 0.0
        %1199 = vmatpush2.msra.mxu0 0.0
        %1200 = vmatprep.subr.mxu0 0.0
        %1201 = vmatpush2.msra.mxu0 0.0
        %1202 = vmatprep.subr.mxu0 0.0
        %1203 = vmatpush2.msra.mxu0 0.0
        %1204 = vmatprep.subr.mxu0 0.0
        %1205 = vmatpush2.msra.mxu0 0.0
        %1206 = vmatprep.subr.mxu0 0.0
        %1207 = vmatpush2.msra.mxu0 0.0
        %1208 = vmatprep.subr.mxu0 0.0
        %1209 = vmatpush2.msra.mxu0 0.0
        %1210 = vmatprep.subr.mxu0 0.0
        %1211 = vmatpush2.msra.mxu0 0.0
        %1212 = vmatprep.subr.mxu0 0.0
        %1213 = vmatpush2.msra.mxu0 0.0
        %1214 = vmatprep.subr.mxu0 0.0
        %1215 = vmatpush2.msra.mxu0 0.0
        %1216 = vmatprep.subr.mxu0 0.0
        %1217 = vmatpush2.msra.mxu0 0.0
        %1218 = vmatprep.subr.mxu0 0.0
        %1219 = vmatpush2.msra.mxu0 0.0
        %1220 = vmatprep.subr.mxu0 0.0
        %1221 = vmatpush2.msra.mxu0 0.0
        %1222 = vmatprep.subr.mxu0 0.0
        %1223 = vmatpush2.msra.mxu0 0.0
        %1224 = vmatprep.subr.mxu0 0.0
        %1225 = vmatpush2.msra.mxu0 0.0
        %1226 = vmatprep.subr.mxu0 0.0
        %1227 = vmatpush2.msra.mxu0 0.0
        %1228 = vmatprep.subr.mxu0 0.0
        %1229 = vmatpush2.msra.mxu0 0.0
        %1230 = vmatprep.mubr.f32.mxu0 0.0
        %1231 = vmatmul.mubr.f32.gmra.mxu0 %v1155
        %v1232 = vpop.f32.mrf.mxu0
        %v1233 = vadd.f32 %v1137, %v1232
        %v1234 = vpop.f32.mrf.mxu0
        %v1235 = vadd.f32 %v1137, %v1234
        %1236 = vmatprep.mubr.f32.mxu0 0.0
        %1237 = vmatmul.mubr.f32.gmra.mxu0 %v1158
        %v1238 = vpop.f32.mrf.mxu0
        %v1239 = vadd.f32 %v1142, %v1238
        %v1240 = vpop.f32.mrf.mxu0
        %v1241 = vadd.f32 %v1142, %v1240
        %1242 = vmatprep.mubr.f32.mxu0 0.0
        %1243 = vmatmul.mubr.f32.gmra.mxu0 %v1161
        %v1244 = vpop.f32.mrf.mxu0
        %v1245 = vadd.f32 %v1147, %v1244
        %v1246 = vpop.f32.mrf.mxu0
        %v1247 = vadd.f32 %v1147, %v1246
        %1248 = vmatprep.mubr.f32.mxu0 0.0
        %1249 = vmatmul.mubr.f32.gmra.mxu0 %v1164
        %v1250 = vpop.f32.mrf.mxu0
        %v1251 = vadd.f32 %v1152, %v1250
        %v1252 = vpop.f32.mrf.mxu0
        %v1253 = vadd.f32 %v1152, %v1252
        %1254 = vdwg.mxu0
        %1255 = vmatprep.subr.mxu0 0.0
        %1256 = vmatpush1.msra.mxu0 0.0
        %1257 = vmatprep.subr.mxu0 0.0
        %1258 = vmatpush1.msra.mxu0 0.0
        %1259 = vmatprep.subr.mxu0 0.0
        %1260 = vmatpush1.msra.mxu0 0.0
        %1261 = vmatprep.subr.mxu0 0.0
        %1262 = vmatpush1.msra.mxu0 0.0
        %1263 = vmatprep.subr.mxu0 0.0
        %1264 = vmatpush1.msra.mxu0 0.0
        %1265 = vmatprep.subr.mxu0 0.0
        %1266 = vmatpush1.msra.mxu0 0.0
        %1267 = vmatprep.subr.mxu0 0.0
        %1268 = vmatpush1.msra.mxu0 0.0
        %1269 = vmatprep.subr.mxu0 0.0
        %1270 = vmatpush1.msra.mxu0 0.0
        %1271 = vmatprep.subr.mxu0 0.0
        %1272 = vmatpush1.msra.mxu0 0.0
        %1273 = vmatprep.subr.mxu0 0.0
        %1274 = vmatpush1.msra.mxu0 0.0
        %1275 = vmatprep.subr.mxu0 0.0
        %1276 = vmatpush1.msra.mxu0 0.0
        %1277 = vmatprep.subr.mxu0 0.0
        %1278 = vmatpush1.msra.mxu0 0.0
        %1279 = vmatprep.subr.mxu0 %v1123
        %1280 = vmatpush1.msra.mxu0 %v1122
        %1281 = vmatprep.subr.mxu0 %v1119
        %1282 = vmatpush1.msra.mxu0 %v1118
        %1283 = vmatprep.subr.mxu0 %v1115
        %1284 = vmatpush1.msra.mxu0 %v1114
        %1285 = vmatprep.subr.mxu0 %v1111
        %1286 = vmatpush1.msra.mxu0 %v1110
        %1287 = vmatprep.subr.mxu0 0.0
        %1288 = vmatpush2.msra.mxu0 0.0
        %1289 = vmatprep.subr.mxu0 0.0
        %1290 = vmatpush2.msra.mxu0 0.0
        %1291 = vmatprep.subr.mxu0 0.0
        %1292 = vmatpush2.msra.mxu0 0.0
        %1293 = vmatprep.subr.mxu0 0.0
        %1294 = vmatpush2.msra.mxu0 0.0
        %1295 = vmatprep.subr.mxu0 0.0
        %1296 = vmatpush2.msra.mxu0 0.0
        %1297 = vmatprep.subr.mxu0 0.0
        %1298 = vmatpush2.msra.mxu0 0.0
        %1299 = vmatprep.subr.mxu0 0.0
        %1300 = vmatpush2.msra.mxu0 0.0
        %1301 = vmatprep.subr.mxu0 0.0
        %1302 = vmatpush2.msra.mxu0 0.0
        %1303 = vmatprep.subr.mxu0 0.0
        %1304 = vmatpush2.msra.mxu0 0.0
        %1305 = vmatprep.subr.mxu0 0.0
        %1306 = vmatpush2.msra.mxu0 0.0
        %1307 = vmatprep.subr.mxu0 0.0
        %1308 = vmatpush2.msra.mxu0 0.0
        %1309 = vmatprep.subr.mxu0 0.0
        %1310 = vmatpush2.msra.mxu0 0.0
        %1311 = vmatprep.subr.mxu0 0.0
        %1312 = vmatpush2.msra.mxu0 0.0
        %1313 = vmatprep.subr.mxu0 0.0
        %1314 = vmatpush2.msra.mxu0 0.0
        %1315 = vmatprep.subr.mxu0 0.0
        %1316 = vmatpush2.msra.mxu0 0.0
        %1317 = vmatprep.subr.mxu0 0.0
        %1318 = vmatpush2.msra.mxu0 0.0
        %1319 = vmatprep.mubr.f32.mxu0 0.0
        %1320 = vmatmul.mubr.f32.gmra.mxu0 %v1155
        %v1321 = vpop.f32.mrf.mxu0
        %v1322 = vadd.f32 %v1137, %v1321
        %v1323 = vpop.f32.mrf.mxu0
        %v1324 = vadd.f32 %v1137, %v1323
        %1325 = vmatprep.mubr.f32.mxu0 0.0
        %1326 = vmatmul.mubr.f32.gmra.mxu0 %v1158
        %v1327 = vpop.f32.mrf.mxu0
        %v1328 = vadd.f32 %v1142, %v1327
        %v1329 = vpop.f32.mrf.mxu0
        %v1330 = vadd.f32 %v1142, %v1329
        %1331 = vmatprep.mubr.f32.mxu0 0.0
        %1332 = vmatmul.mubr.f32.gmra.mxu0 %v1161
        %v1333 = vpop.f32.mrf.mxu0
        %v1334 = vadd.f32 %v1147, %v1333
        %v1335 = vpop.f32.mrf.mxu0
        %v1336 = vadd.f32 %v1147, %v1335
        %1337 = vmatprep.mubr.f32.mxu0 0.0
        %1338 = vmatmul.mubr.f32.gmra.mxu0 %v1164
        %v1339 = vpop.f32.mrf.mxu0
        %v1340 = vadd.f32 %v1152, %v1339
        %v1341 = vpop.f32.mrf.mxu0
        %v1342 = vadd.f32 %v1152, %v1341
        %1343 = vdwg.mxu0
        %v1344 = vtanh.pop %v1233
        %v1345 = vtanh.pop %v1235
        %v1346 = vtanh.pop %v1322
        %v1347 = vtanh.pop %v1324
        %v1348 = vtanh.pop %v1239
        %v1349 = vtanh.pop %v1241
        %v1350 = vtanh.pop %v1328
        %v1351 = vtanh.pop %v1330
        %v1352 = vtanh.pop %v1245
        %v1353 = vtanh.pop %v1247
        %v1354 = vtanh.pop %v1334
        %v1355 = vtanh.pop %v1336
        %v1356 = vtanh.pop %v1251
        %v1357 = vtanh.pop %v1253
        %v1358 = vtanh.pop %v1340
        %v1359 = vtanh.pop %v1342
        %s1360 = scalar_lea.vmem [#allocation3], 32
        %v1361 = vld [vmem:[%s1360] sm:$0xff]
        %v1362 = vld [vmem:[%s1360 + $0x8] sm:$0xff]
        %v1363 = vld [vmem:[%s1360 + $0x10] sm:$0xff]
        %v1364 = vld [vmem:[%s1360 + $0x18] sm:$0xff]
        %s1365 = scalar_lea.vmem %s6, 32
        %v1366 = vld [vmem:[%s1365] sm:$0xff]
        %v1367 = vld [vmem:[%s1365 + $0x8] sm:$0xff]
        %v1368 = vld [vmem:[%s1365 + $0x10] sm:$0xff]
        %v1369 = vld [vmem:[%s1365 + $0x18] sm:$0xff]
        %1371 = vset.pattern.permute.xlu0 0
        %1372 = vperm.xlu0 %1371, %v1366
        %v1373 = vpop.permute.xlu0 %1372
        %1376 = vset.pattern.permute.xlu0 0
        %1377 = vperm.xlu0 %1376, %v1367
        %v1378 = vpop.permute.xlu0 %1377
        %1381 = vset.pattern.permute.xlu0 0
        %1382 = vperm.xlu0 %1381, %v1368
        %v1383 = vpop.permute.xlu0 %1382
        %1386 = vset.pattern.permute.xlu0 0
        %1387 = vperm.xlu0 %1386, %v1369
        %v1388 = vpop.permute.xlu0 %1387
        %v1391 = vsel %vm667, %v1361, 0
        %v1394 = vsel %vm667, %v1362, 0
        %v1397 = vsel %vm667, %v1363, 0
        %v1400 = vsel %vm667, %v1364, 0
        %1402 = vmatprep.subr.mxu0 0.0
        %1403 = vmatpush1.msra.mxu0 0.0
        %1404 = vmatprep.subr.mxu0 0.0
        %1405 = vmatpush1.msra.mxu0 0.0
        %1406 = vmatprep.subr.mxu0 0.0
        %1407 = vmatpush1.msra.mxu0 0.0
        %1408 = vmatprep.subr.mxu0 0.0
        %1409 = vmatpush1.msra.mxu0 0.0
        %1410 = vmatprep.subr.mxu0 0.0
        %1411 = vmatpush1.msra.mxu0 0.0
        %1412 = vmatprep.subr.mxu0 0.0
        %1413 = vmatpush1.msra.mxu0 0.0
        %1414 = vmatprep.subr.mxu0 0.0
        %1415 = vmatpush1.msra.mxu0 0.0
        %1416 = vmatprep.subr.mxu0 0.0
        %1417 = vmatpush1.msra.mxu0 0.0
        %1418 = vmatprep.subr.mxu0 0.0
        %1419 = vmatpush1.msra.mxu0 0.0
        %1420 = vmatprep.subr.mxu0 0.0
        %1421 = vmatpush1.msra.mxu0 0.0
        %1422 = vmatprep.subr.mxu0 0.0
        %1423 = vmatpush1.msra.mxu0 0.0
        %1424 = vmatprep.subr.mxu0 0.0
        %1425 = vmatpush1.msra.mxu0 0.0
        %1426 = vmatprep.subr.mxu0 %v1357
        %1427 = vmatpush1.msra.mxu0 %v1356
        %1428 = vmatprep.subr.mxu0 %v1353
        %1429 = vmatpush1.msra.mxu0 %v1352
        %1430 = vmatprep.subr.mxu0 %v1349
        %1431 = vmatpush1.msra.mxu0 %v1348
        %1432 = vmatprep.subr.mxu0 %v1345
        %1433 = vmatpush1.msra.mxu0 %v1344
        %1434 = vmatprep.subr.mxu0 0.0
        %1435 = vmatpush2.msra.mxu0 0.0
        %1436 = vmatprep.subr.mxu0 0.0
        %1437 = vmatpush2.msra.mxu0 0.0
        %1438 = vmatprep.subr.mxu0 0.0
        %1439 = vmatpush2.msra.mxu0 0.0
        %1440 = vmatprep.subr.mxu0 0.0
        %1441 = vmatpush2.msra.mxu0 0.0
        %1442 = vmatprep.subr.mxu0 0.0
        %1443 = vmatpush2.msra.mxu0 0.0
        %1444 = vmatprep.subr.mxu0 0.0
        %1445 = vmatpush2.msra.mxu0 0.0
        %1446 = vmatprep.subr.mxu0 0.0
        %1447 = vmatpush2.msra.mxu0 0.0
        %1448 = vmatprep.subr.mxu0 0.0
        %1449 = vmatpush2.msra.mxu0 0.0
        %1450 = vmatprep.subr.mxu0 0.0
        %1451 = vmatpush2.msra.mxu0 0.0
        %1452 = vmatprep.subr.mxu0 0.0
        %1453 = vmatpush2.msra.mxu0 0.0
        %1454 = vmatprep.subr.mxu0 0.0
        %1455 = vmatpush2.msra.mxu0 0.0
        %1456 = vmatprep.subr.mxu0 0.0
        %1457 = vmatpush2.msra.mxu0 0.0
        %1458 = vmatprep.subr.mxu0 0.0
        %1459 = vmatpush2.msra.mxu0 0.0
        %1460 = vmatprep.subr.mxu0 0.0
        %1461 = vmatpush2.msra.mxu0 0.0
        %1462 = vmatprep.subr.mxu0 0.0
        %1463 = vmatpush2.msra.mxu0 0.0
        %1464 = vmatprep.subr.mxu0 0.0
        %1465 = vmatpush2.msra.mxu0 0.0
        %1466 = vmatprep.mubr.f32.mxu0 0.0
        %1467 = vmatmul.mubr.f32.gmra.mxu0 %v1391
        %v1468 = vpop.f32.mrf.mxu0
        %v1469 = vadd.f32 %v1373, %v1468
        %v1470 = vpop.f32.mrf.mxu0
        %v1471 = vadd.f32 %v1373, %v1470
        %1472 = vmatprep.mubr.f32.mxu0 0.0
        %1473 = vmatmul.mubr.f32.gmra.mxu0 %v1394
        %v1474 = vpop.f32.mrf.mxu0
        %v1475 = vadd.f32 %v1378, %v1474
        %v1476 = vpop.f32.mrf.mxu0
        %v1477 = vadd.f32 %v1378, %v1476
        %1478 = vmatprep.mubr.f32.mxu0 0.0
        %1479 = vmatmul.mubr.f32.gmra.mxu0 %v1397
        %v1480 = vpop.f32.mrf.mxu0
        %v1481 = vadd.f32 %v1383, %v1480
        %v1482 = vpop.f32.mrf.mxu0
        %v1483 = vadd.f32 %v1383, %v1482
        %1484 = vmatprep.mubr.f32.mxu0 0.0
        %1485 = vmatmul.mubr.f32.gmra.mxu0 %v1400
        %v1486 = vpop.f32.mrf.mxu0
        %v1487 = vadd.f32 %v1388, %v1486
        %v1488 = vpop.f32.mrf.mxu0
        %v1489 = vadd.f32 %v1388, %v1488
        %1490 = vdwg.mxu0
        %1491 = vmatprep.subr.mxu0 0.0
        %1492 = vmatpush1.msra.mxu0 0.0
        %1493 = vmatprep.subr.mxu0 0.0
        %1494 = vmatpush1.msra.mxu0 0.0
        %1495 = vmatprep.subr.mxu0 0.0
        %1496 = vmatpush1.msra.mxu0 0.0
        %1497 = vmatprep.subr.mxu0 0.0
        %1498 = vmatpush1.msra.mxu0 0.0
        %1499 = vmatprep.subr.mxu0 0.0
        %1500 = vmatpush1.msra.mxu0 0.0
        %1501 = vmatprep.subr.mxu0 0.0
        %1502 = vmatpush1.msra.mxu0 0.0
        %1503 = vmatprep.subr.mxu0 0.0
        %1504 = vmatpush1.msra.mxu0 0.0
        %1505 = vmatprep.subr.mxu0 0.0
        %1506 = vmatpush1.msra.mxu0 0.0
        %1507 = vmatprep.subr.mxu0 0.0
        %1508 = vmatpush1.msra.mxu0 0.0
        %1509 = vmatprep.subr.mxu0 0.0
        %1510 = vmatpush1.msra.mxu0 0.0
        %1511 = vmatprep.subr.mxu0 0.0
        %1512 = vmatpush1.msra.mxu0 0.0
        %1513 = vmatprep.subr.mxu0 0.0
        %1514 = vmatpush1.msra.mxu0 0.0
        %1515 = vmatprep.subr.mxu0 %v1359
        %1516 = vmatpush1.msra.mxu0 %v1358
        %1517 = vmatprep.subr.mxu0 %v1355
        %1518 = vmatpush1.msra.mxu0 %v1354
        %1519 = vmatprep.subr.mxu0 %v1351
        %1520 = vmatpush1.msra.mxu0 %v1350
        %1521 = vmatprep.subr.mxu0 %v1347
        %1522 = vmatpush1.msra.mxu0 %v1346
        %1523 = vmatprep.subr.mxu0 0.0
        %1524 = vmatpush2.msra.mxu0 0.0
        %1525 = vmatprep.subr.mxu0 0.0
        %1526 = vmatpush2.msra.mxu0 0.0
        %1527 = vmatprep.subr.mxu0 0.0
        %1528 = vmatpush2.msra.mxu0 0.0
        %1529 = vmatprep.subr.mxu0 0.0
        %1530 = vmatpush2.msra.mxu0 0.0
        %1531 = vmatprep.subr.mxu0 0.0
        %1532 = vmatpush2.msra.mxu0 0.0
        %1533 = vmatprep.subr.mxu0 0.0
        %1534 = vmatpush2.msra.mxu0 0.0
        %1535 = vmatprep.subr.mxu0 0.0
        %1536 = vmatpush2.msra.mxu0 0.0
        %1537 = vmatprep.subr.mxu0 0.0
        %1538 = vmatpush2.msra.mxu0 0.0
        %1539 = vmatprep.subr.mxu0 0.0
        %1540 = vmatpush2.msra.mxu0 0.0
        %1541 = vmatprep.subr.mxu0 0.0
        %1542 = vmatpush2.msra.mxu0 0.0
        %1543 = vmatprep.subr.mxu0 0.0
        %1544 = vmatpush2.msra.mxu0 0.0
        %1545 = vmatprep.subr.mxu0 0.0
        %1546 = vmatpush2.msra.mxu0 0.0
        %1547 = vmatprep.subr.mxu0 0.0
        %1548 = vmatpush2.msra.mxu0 0.0
        %1549 = vmatprep.subr.mxu0 0.0
        %1550 = vmatpush2.msra.mxu0 0.0
        %1551 = vmatprep.subr.mxu0 0.0
        %1552 = vmatpush2.msra.mxu0 0.0
        %1553 = vmatprep.subr.mxu0 0.0
        %1554 = vmatpush2.msra.mxu0 0.0
        %1555 = vmatprep.mubr.f32.mxu0 0.0
        %1556 = vmatmul.mubr.f32.gmra.mxu0 %v1391
        %v1557 = vpop.f32.mrf.mxu0
        %v1558 = vadd.f32 %v1373, %v1557
        %v1559 = vpop.f32.mrf.mxu0
        %v1560 = vadd.f32 %v1373, %v1559
        %1561 = vmatprep.mubr.f32.mxu0 0.0
        %1562 = vmatmul.mubr.f32.gmra.mxu0 %v1394
        %v1563 = vpop.f32.mrf.mxu0
        %v1564 = vadd.f32 %v1378, %v1563
        %v1565 = vpop.f32.mrf.mxu0
        %v1566 = vadd.f32 %v1378, %v1565
        %1567 = vmatprep.mubr.f32.mxu0 0.0
        %1568 = vmatmul.mubr.f32.gmra.mxu0 %v1397
        %v1569 = vpop.f32.mrf.mxu0
        %v1570 = vadd.f32 %v1383, %v1569
        %v1571 = vpop.f32.mrf.mxu0
        %v1572 = vadd.f32 %v1383, %v1571
        %1573 = vmatprep.mubr.f32.mxu0 0.0
        %1574 = vmatmul.mubr.f32.gmra.mxu0 %v1400
        %v1575 = vpop.f32.mrf.mxu0
        %v1576 = vadd.f32 %v1388, %v1575
        %v1577 = vpop.f32.mrf.mxu0
        %v1578 = vadd.f32 %v1388, %v1577
        %1579 = vdwg.mxu0
        %v1580 = vtanh.pop %v1469
        %v1581 = vtanh.pop %v1471
        %v1582 = vtanh.pop %v1558
        %v1583 = vtanh.pop %v1560
        %v1584 = vtanh.pop %v1475
        %v1585 = vtanh.pop %v1477
        %v1586 = vtanh.pop %v1564
        %v1587 = vtanh.pop %v1566
        %v1588 = vtanh.pop %v1481
        %v1589 = vtanh.pop %v1483
        %v1590 = vtanh.pop %v1570
        %v1591 = vtanh.pop %v1572
        %v1592 = vtanh.pop %v1487
        %v1593 = vtanh.pop %v1489
        %v1594 = vtanh.pop %v1576
        %v1595 = vtanh.pop %v1578
        %v1596 = vadd.f32 %v1580, %v1108
        %v1597 = vadd.f32 %v1581, %v1109
        %v1598 = vadd.f32 %v1582, %v1110
        %v1599 = vadd.f32 %v1583, %v1111
        %v1600 = vadd.f32 %v1584, %v1112
        %v1601 = vadd.f32 %v1585, %v1113
        %v1602 = vadd.f32 %v1586, %v1114
        %v1603 = vadd.f32 %v1587, %v1115
        %v1604 = vadd.f32 %v1588, %v1116
        %v1605 = vadd.f32 %v1589, %v1117
        %v1606 = vadd.f32 %v1590, %v1118
        %v1607 = vadd.f32 %v1591, %v1119
        %v1608 = vadd.f32 %v1592, %v1120
        %v1609 = vadd.f32 %v1593, %v1121
        %v1610 = vadd.f32 %v1594, %v1122
        %v1611 = vadd.f32 %v1595, %v1123
        %v1612 = vld [vmem:[%s7] sm:$0xff]
        %v1613 = vld [vmem:[%s7 + $0x8] sm:$0xff]
        %v1614 = vld [vmem:[%s7 + $0x10] sm:$0xff]
        %v1615 = vld [vmem:[%s7 + $0x18] sm:$0xff]
        %1617 = vset.pattern.permute.xlu0 0
        %1618 = vperm.xlu0 %1617, %v1612
        %v1619 = vpop.permute.xlu0 %1618
        %1622 = vset.pattern.permute.xlu0 0
        %1623 = vperm.xlu0 %1622, %v1613
        %v1624 = vpop.permute.xlu0 %1623
        %1627 = vset.pattern.permute.xlu0 0
        %1628 = vperm.xlu0 %1627, %v1614
        %v1629 = vpop.permute.xlu0 %1628
        %1632 = vset.pattern.permute.xlu0 0
        %1633 = vperm.xlu0 %1632, %v1615
        %v1634 = vpop.permute.xlu0 %1633
        %v1636 = vmul.f32 %v1596, %v1619
        %v1637 = vmul.f32 %v1597, %v1619
        %v1638 = vmul.f32 %v1598, %v1619
        %v1639 = vmul.f32 %v1599, %v1619
        %v1640 = vmul.f32 %v1600, %v1624
        %v1641 = vmul.f32 %v1601, %v1624
        %v1642 = vmul.f32 %v1602, %v1624
        %v1643 = vmul.f32 %v1603, %v1624
        %v1644 = vmul.f32 %v1604, %v1629
        %v1645 = vmul.f32 %v1605, %v1629
        %v1646 = vmul.f32 %v1606, %v1629
        %v1647 = vmul.f32 %v1607, %v1629
        %v1648 = vmul.f32 %v1608, %v1634
        %v1649 = vmul.f32 %v1609, %v1634
        %v1650 = vmul.f32 %v1610, %v1634
        %v1651 = vmul.f32 %v1611, %v1634
        %v1652 = vadd.f32 %v1636, %v1640
        %v1653 = vadd.f32 %v1652, %v1644
        %v1654 = vadd.f32 %v1653, %v1648
        %v1655 = vrot.slane %v1654, 4
        %v1656 = vadd.f32 %v1654, %v1655
        %v1657 = vrot.slane %v1656, 2
        %v1658 = vadd.f32 %v1656, %v1657
        %v1659 = vrot.slane %v1658, 1
        %v1660 = vadd.f32 %v1658, %v1659
        %v1661 = vadd.f32 %v1637, %v1641
        %v1662 = vadd.f32 %v1661, %v1645
        %v1663 = vadd.f32 %v1662, %v1649
        %v1664 = vrot.slane %v1663, 4
        %v1665 = vadd.f32 %v1663, %v1664
        %v1666 = vrot.slane %v1665, 2
        %v1667 = vadd.f32 %v1665, %v1666
        %v1668 = vrot.slane %v1667, 1
        %v1669 = vadd.f32 %v1667, %v1668
        %v1670 = vadd.f32 %v1638, %v1642
        %v1671 = vadd.f32 %v1670, %v1646
        %v1672 = vadd.f32 %v1671, %v1650
        %v1673 = vrot.slane %v1672, 4
        %v1674 = vadd.f32 %v1672, %v1673
        %v1675 = vrot.slane %v1674, 2
        %v1676 = vadd.f32 %v1674, %v1675
        %v1677 = vrot.slane %v1676, 1
        %v1678 = vadd.f32 %v1676, %v1677
        %v1679 = vadd.f32 %v1639, %v1643
        %v1680 = vadd.f32 %v1679, %v1647
        %v1681 = vadd.f32 %v1680, %v1651
        %v1682 = vrot.slane %v1681, 4
        %v1683 = vadd.f32 %v1681, %v1682
        %v1684 = vrot.slane %v1683, 2
        %v1685 = vadd.f32 %v1683, %v1684
        %v1686 = vrot.slane %v1685, 1
        %v1687 = vadd.f32 %v1685, %v1686
        %v1688 = vld [vmem:[#allocation2] sm:$0x1]
        %1690 = vset.pattern.permute.xlu0 0
        %1691 = vperm.xlu0 %1690, %v1688
        %v1692 = vpop.permute.xlu0 %1691
        %v1694 = vlaneseq
        %v1695 = vshrl.u32 %v1694, 7
        %v1696 = vsub.s32 0, %v1695
        %v1697 = vrot.slane %v1692, %v1696
        %v1698 = vadd.f32 %v1660, %v1697
        %v1699 = vadd.f32 %v1669, %v1697
        %v1700 = vadd.f32 %v1678, %v1697
        %v1701 = vadd.f32 %v1687, %v1697
        %v1702 = vmul.f32 %v1698, %v382
        %v1703 = vmul.f32 %v1699, %v386
        %v1704 = vmul.f32 %v1700, %v390
        %v1705 = vmul.f32 %v1701, %v394
        %v1706 = vmul.f32 %v1702, %v450
        %v1707 = vmul.f32 %v1703, %v454
        %v1708 = vmul.f32 %v1704, %v458
        %v1709 = vmul.f32 %v1705, %v462
        %v1710 = vmul.f32 %v1706, %v534
        %v1711 = vmul.f32 %v1707, %v538
        %v1712 = vmul.f32 %v1708, %v542
        %v1713 = vmul.f32 %v1709, %v546
        %v1714 = vsub.f32 1.0, %v351
        %v1715 = vsub.f32 1.0, %v352
        %v1718 = vlaneseq
        %v1719 = vshrl.u32 %v1718, 7
        %v1720 = vsub.s32 0, %v1719
        %v1721 = vrot.slane %v1714, %v1720
        %v1722 = vlaneseq
        %v1723 = vshrl.u32 %v1722, 7
        %v1724 = vsub.s32 4, %v1723
        %v1725 = vrot.slane %v1714, %v1724
        %v1726 = vlaneseq
        %v1727 = vshrl.u32 %v1726, 7
        %v1728 = vsub.s32 0, %v1727
        %v1729 = vrot.slane %v1715, %v1728
        %v1730 = vlaneseq
        %v1731 = vshrl.u32 %v1730, 7
        %v1732 = vsub.s32 4, %v1731
        %v1733 = vrot.slane %v1715, %v1732
        %v1738 = vmul.f32 %v1710, %v1721
        %v1739 = vmul.f32 %v1711, %v1725
        %v1740 = vmul.f32 %v1712, %v1729
        %v1741 = vmul.f32 %v1713, %v1733
        %v1742 = vlaneseq
        %v1743 = vshrl.u32 %v1742, 7
        %v1744 = vsub.s32 1, %v1743
        %v1745 = vrot.slane %v1714, %v1744
        %v1746 = vlaneseq
        %v1747 = vshrl.u32 %v1746, 7
        %v1748 = vsub.s32 5, %v1747
        %v1749 = vrot.slane %v1714, %v1748
        %v1750 = vlaneseq
        %v1751 = vshrl.u32 %v1750, 7
        %v1752 = vsub.s32 1, %v1751
        %v1753 = vrot.slane %v1715, %v1752
        %v1754 = vlaneseq
        %v1755 = vshrl.u32 %v1754, 7
        %v1756 = vsub.s32 5, %v1755
        %v1757 = vrot.slane %v1715, %v1756
        %v1762 = vmul.f32 %v1738, %v1745
        %v1763 = vmul.f32 %v1739, %v1749
        %v1764 = vmul.f32 %v1740, %v1753
        %v1765 = vmul.f32 %v1741, %v1757
        %v1766 = vlaneseq
        %v1767 = vshrl.u32 %v1766, 7
        %v1768 = vsub.s32 2, %v1767
        %v1769 = vrot.slane %v1714, %v1768
        %v1770 = vlaneseq
        %v1771 = vshrl.u32 %v1770, 7
        %v1772 = vsub.s32 6, %v1771
        %v1773 = vrot.slane %v1714, %v1772
        %v1774 = vlaneseq
        %v1775 = vshrl.u32 %v1774, 7
        %v1776 = vsub.s32 2, %v1775
        %v1777 = vrot.slane %v1715, %v1776
        %v1778 = vlaneseq
        %v1779 = vshrl.u32 %v1778, 7
        %v1780 = vsub.s32 6, %v1779
        %v1781 = vrot.slane %v1715, %v1780
        %v1786 = vmul.f32 %v1762, %v1769
        %v1787 = vmul.f32 %v1763, %v1773
        %v1788 = vmul.f32 %v1764, %v1777
        %v1789 = vmul.f32 %v1765, %v1781
        %v1794 = vcombine.low %v1786, %v1787
        %v1795 = vcombine.low %v1788, %v1789
        %v1797 = vunpack.c.l.s4 1966171168
        %v1798 = vunpack.c.0.s8 %v1797
        %v1799 = vlaneseq
        %v1800 = vshrl.u32 %v1799, 7
        %v1801 = vsub.s32 %v1798, %v1800
        %v1802 = vrot.slane %v1794, %v1801
        %v1804 = vunpack.c.l.s4 1966171168
        %v1805 = vunpack.c.0.s8 %v1804
        %v1806 = vlaneseq
        %v1807 = vshrl.u32 %v1806, 7
        %v1808 = vsub.s32 %v1805, %v1807
        %v1809 = vrot.slane %v1795, %v1808
        %v1810 = vcombine.low %v1802, %v1809
        %v1812 = vunpack.c.l.s4 1966171168
        %v1813 = vunpack.c.0.s8 %v1812
        %v1814 = vlaneseq
        %v1815 = vshrl.u32 %v1814, 7
        %v1816 = vsub.s32 %v1813, %v1815
        %v1817 = vrot.slane %v1810, %v1816
        %v1819 = vlaneseq
        %vm1820 = vcmp.ge.s32.totalorder %v1819, 0
        %vm1821 = vcmp.lt.s32.totalorder %v1819, 512
        %vm1822 = vmand %vm1820, %vm1821
        %1823 = vst.msk [vmem:[%s343] sm:$0xf] %vm1822, %v1817
        %s1824 = scalar_lea.vmem %s348, 16
        %v1825 = vld [vmem:[%s1824] sm:$0x77]
        %v1826 = vld [vmem:[%s1824 + $0x8] sm:$0x77]
        %v1827 = vld [vmem:[%s1] sm:$0xff]
        %v1828 = vld [vmem:[%s1 + $0x8] sm:$0xff]
        %v1829 = vld [vmem:[%s1 + $0x10] sm:$0xff]
        %v1830 = vld [vmem:[%s1 + $0x18] sm:$0xff]
        %1832 = vset.pattern.permute.xlu0 0
        %1833 = vperm.xlu0 %1832, %v1827
        %v1834 = vpop.permute.xlu0 %1833
        %1837 = vset.pattern.permute.xlu0 0
        %1838 = vperm.xlu0 %1837, %v1828
        %v1839 = vpop.permute.xlu0 %1838
        %1842 = vset.pattern.permute.xlu0 0
        %1843 = vperm.xlu0 %1842, %v1829
        %v1844 = vpop.permute.xlu0 %1843
        %1847 = vset.pattern.permute.xlu0 0
        %1848 = vperm.xlu0 %1847, %v1830
        %v1849 = vpop.permute.xlu0 %1848
        %v1853 = vlaneseq
        %v1854 = vshrl.u32 %v1853, 7
        %v1855 = vsub.s32 0, %v1854
        %v1856 = vrot.slane %v1825, %v1855
        %v1857 = vlaneseq
        %v1858 = vshrl.u32 %v1857, 7
        %v1859 = vsub.s32 4, %v1858
        %v1860 = vrot.slane %v1825, %v1859
        %v1861 = vlaneseq
        %v1862 = vshrl.u32 %v1861, 7
        %v1863 = vsub.s32 0, %v1862
        %v1864 = vrot.slane %v1826, %v1863
        %v1865 = vlaneseq
        %v1866 = vshrl.u32 %v1865, 7
        %v1867 = vsub.s32 4, %v1866
        %v1868 = vrot.slane %v1826, %v1867
        %v1873 = vlaneseq
        %v1874 = vshrl.u32 %v1873, 7
        %v1875 = vsub.s32 0, %v1874
        %v1876 = vrot.slane %v1856, %v1875
        %v1877 = vlaneseq
        %v1878 = vshrl.u32 %v1877, 7
        %v1879 = vsub.s32 0, %v1878
        %v1880 = vrot.slane %v1860, %v1879
        %v1881 = vlaneseq
        %v1882 = vshrl.u32 %v1881, 7
        %v1883 = vsub.s32 0, %v1882
        %v1884 = vrot.slane %v1864, %v1883
        %v1885 = vlaneseq
        %v1886 = vshrl.u32 %v1885, 7
        %v1887 = vsub.s32 0, %v1886
        %v1888 = vrot.slane %v1868, %v1887
        %v1889 = vmul.f32 %v1834, %v1876
        %v1890 = vmul.f32 %v1834, %v1880
        %v1891 = vmul.f32 %v1834, %v1884
        %v1892 = vmul.f32 %v1834, %v1888
        %v1893 = vmul.f32 %v1839, %v1876
        %v1894 = vmul.f32 %v1839, %v1880
        %v1895 = vmul.f32 %v1839, %v1884
        %v1896 = vmul.f32 %v1839, %v1888
        %v1897 = vmul.f32 %v1844, %v1876
        %v1898 = vmul.f32 %v1844, %v1880
        %v1899 = vmul.f32 %v1844, %v1884
        %v1900 = vmul.f32 %v1844, %v1888
        %v1901 = vmul.f32 %v1849, %v1876
        %v1902 = vmul.f32 %v1849, %v1880
        %v1903 = vmul.f32 %v1849, %v1884
        %v1904 = vmul.f32 %v1849, %v1888
        %1905 = vset.pattern.permute.xlu0 1
        %1906 = vperm.xlu0 %1905, %v1827
        %v1907 = vpop.permute.xlu0 %1906
        %1909 = vset.pattern.permute.xlu0 1
        %1910 = vperm.xlu0 %1909, %v1828
        %v1911 = vpop.permute.xlu0 %1910
        %1913 = vset.pattern.permute.xlu0 1
        %1914 = vperm.xlu0 %1913, %v1829
        %v1915 = vpop.permute.xlu0 %1914
        %1917 = vset.pattern.permute.xlu0 1
        %1918 = vperm.xlu0 %1917, %v1830
        %v1919 = vpop.permute.xlu0 %1918
        %v1921 = vlaneseq
        %v1922 = vshrl.u32 %v1921, 7
        %v1923 = vsub.s32 1, %v1922
        %v1924 = vrot.slane %v1825, %v1923
        %v1925 = vlaneseq
        %v1926 = vshrl.u32 %v1925, 7
        %v1927 = vsub.s32 5, %v1926
        %v1928 = vrot.slane %v1825, %v1927
        %v1929 = vlaneseq
        %v1930 = vshrl.u32 %v1929, 7
        %v1931 = vsub.s32 1, %v1930
        %v1932 = vrot.slane %v1826, %v1931
        %v1933 = vlaneseq
        %v1934 = vshrl.u32 %v1933, 7
        %v1935 = vsub.s32 5, %v1934
        %v1936 = vrot.slane %v1826, %v1935
        %v1941 = vlaneseq
        %v1942 = vshrl.u32 %v1941, 7
        %v1943 = vsub.s32 1, %v1942
        %v1944 = vrot.slane %v1924, %v1943
        %v1945 = vlaneseq
        %v1946 = vshrl.u32 %v1945, 7
        %v1947 = vsub.s32 1, %v1946
        %v1948 = vrot.slane %v1928, %v1947
        %v1949 = vlaneseq
        %v1950 = vshrl.u32 %v1949, 7
        %v1951 = vsub.s32 1, %v1950
        %v1952 = vrot.slane %v1932, %v1951
        %v1953 = vlaneseq
        %v1954 = vshrl.u32 %v1953, 7
        %v1955 = vsub.s32 1, %v1954
        %v1956 = vrot.slane %v1936, %v1955
        %v1957 = vmul.f32 %v1907, %v1944
        %v1958 = vmul.f32 %v1907, %v1948
        %v1959 = vmul.f32 %v1907, %v1952
        %v1960 = vmul.f32 %v1907, %v1956
        %v1961 = vmul.f32 %v1911, %v1944
        %v1962 = vmul.f32 %v1911, %v1948
        %v1963 = vmul.f32 %v1911, %v1952
        %v1964 = vmul.f32 %v1911, %v1956
        %v1965 = vmul.f32 %v1915, %v1944
        %v1966 = vmul.f32 %v1915, %v1948
        %v1967 = vmul.f32 %v1915, %v1952
        %v1968 = vmul.f32 %v1915, %v1956
        %v1969 = vmul.f32 %v1919, %v1944
        %v1970 = vmul.f32 %v1919, %v1948
        %v1971 = vmul.f32 %v1919, %v1952
        %v1972 = vmul.f32 %v1919, %v1956
        %v1973 = vadd.f32 %v1889, %v1957
        %v1974 = vadd.f32 %v1890, %v1958
        %v1975 = vadd.f32 %v1891, %v1959
        %v1976 = vadd.f32 %v1892, %v1960
        %v1977 = vadd.f32 %v1893, %v1961
        %v1978 = vadd.f32 %v1894, %v1962
        %v1979 = vadd.f32 %v1895, %v1963
        %v1980 = vadd.f32 %v1896, %v1964
        %v1981 = vadd.f32 %v1897, %v1965
        %v1982 = vadd.f32 %v1898, %v1966
        %v1983 = vadd.f32 %v1899, %v1967
        %v1984 = vadd.f32 %v1900, %v1968
        %v1985 = vadd.f32 %v1901, %v1969
        %v1986 = vadd.f32 %v1902, %v1970
        %v1987 = vadd.f32 %v1903, %v1971
        %v1988 = vadd.f32 %v1904, %v1972
        %1989 = vset.pattern.permute.xlu0 2
        %1990 = vperm.xlu0 %1989, %v1827
        %v1991 = vpop.permute.xlu0 %1990
        %1993 = vset.pattern.permute.xlu0 2
        %1994 = vperm.xlu0 %1993, %v1828
        %v1995 = vpop.permute.xlu0 %1994
        %1997 = vset.pattern.permute.xlu0 2
        %1998 = vperm.xlu0 %1997, %v1829
        %v1999 = vpop.permute.xlu0 %1998
        %2001 = vset.pattern.permute.xlu0 2
        %2002 = vperm.xlu0 %2001, %v1830
        %v2003 = vpop.permute.xlu0 %2002
        %v2005 = vlaneseq
        %v2006 = vshrl.u32 %v2005, 7
        %v2007 = vsub.s32 2, %v2006
        %v2008 = vrot.slane %v1825, %v2007
        %v2009 = vlaneseq
        %v2010 = vshrl.u32 %v2009, 7
        %v2011 = vsub.s32 6, %v2010
        %v2012 = vrot.slane %v1825, %v2011
        %v2013 = vlaneseq
        %v2014 = vshrl.u32 %v2013, 7
        %v2015 = vsub.s32 2, %v2014
        %v2016 = vrot.slane %v1826, %v2015
        %v2017 = vlaneseq
        %v2018 = vshrl.u32 %v2017, 7
        %v2019 = vsub.s32 6, %v2018
        %v2020 = vrot.slane %v1826, %v2019
        %v2025 = vlaneseq
        %v2026 = vshrl.u32 %v2025, 7
        %v2027 = vsub.s32 2, %v2026
        %v2028 = vrot.slane %v2008, %v2027
        %v2029 = vlaneseq
        %v2030 = vshrl.u32 %v2029, 7
        %v2031 = vsub.s32 2, %v2030
        %v2032 = vrot.slane %v2012, %v2031
        %v2033 = vlaneseq
        %v2034 = vshrl.u32 %v2033, 7
        %v2035 = vsub.s32 2, %v2034
        %v2036 = vrot.slane %v2016, %v2035
        %v2037 = vlaneseq
        %v2038 = vshrl.u32 %v2037, 7
        %v2039 = vsub.s32 2, %v2038
        %v2040 = vrot.slane %v2020, %v2039
        %v2041 = vmul.f32 %v1991, %v2028
        %v2042 = vmul.f32 %v1991, %v2032
        %v2043 = vmul.f32 %v1991, %v2036
        %v2044 = vmul.f32 %v1991, %v2040
        %v2045 = vmul.f32 %v1995, %v2028
        %v2046 = vmul.f32 %v1995, %v2032
        %v2047 = vmul.f32 %v1995, %v2036
        %v2048 = vmul.f32 %v1995, %v2040
        %v2049 = vmul.f32 %v1999, %v2028
        %v2050 = vmul.f32 %v1999, %v2032
        %v2051 = vmul.f32 %v1999, %v2036
        %v2052 = vmul.f32 %v1999, %v2040
        %v2053 = vmul.f32 %v2003, %v2028
        %v2054 = vmul.f32 %v2003, %v2032
        %v2055 = vmul.f32 %v2003, %v2036
        %v2056 = vmul.f32 %v2003, %v2040
        %v2057 = vadd.f32 %v1973, %v2041
        %v2058 = vadd.f32 %v1974, %v2042
        %v2059 = vadd.f32 %v1975, %v2043
        %v2060 = vadd.f32 %v1976, %v2044
        %v2061 = vadd.f32 %v1977, %v2045
        %v2062 = vadd.f32 %v1978, %v2046
        %v2063 = vadd.f32 %v1979, %v2047
        %v2064 = vadd.f32 %v1980, %v2048
        %v2065 = vadd.f32 %v1981, %v2049
        %v2066 = vadd.f32 %v1982, %v2050
        %v2067 = vadd.f32 %v1983, %v2051
        %v2068 = vadd.f32 %v1984, %v2052
        %v2069 = vadd.f32 %v1985, %v2053
        %v2070 = vadd.f32 %v1986, %v2054
        %v2071 = vadd.f32 %v1987, %v2055
        %v2072 = vadd.f32 %v1988, %v2056
        %v2073 = vld [vmem:[%s2] sm:$0xff]
        %v2074 = vld [vmem:[%s2 + $0x8] sm:$0xff]
        %v2075 = vld [vmem:[%s2 + $0x10] sm:$0xff]
        %v2076 = vld [vmem:[%s2 + $0x18] sm:$0xff]
        %2078 = vset.pattern.permute.xlu0 0
        %2079 = vperm.xlu0 %2078, %v2073
        %v2080 = vpop.permute.xlu0 %2079
        %2083 = vset.pattern.permute.xlu0 0
        %2084 = vperm.xlu0 %2083, %v2074
        %v2085 = vpop.permute.xlu0 %2084
        %2088 = vset.pattern.permute.xlu0 0
        %2089 = vperm.xlu0 %2088, %v2075
        %v2090 = vpop.permute.xlu0 %2089
        %2093 = vset.pattern.permute.xlu0 0
        %2094 = vperm.xlu0 %2093, %v2076
        %v2095 = vpop.permute.xlu0 %2094
        %v2097 = vadd.f32 %v2057, %v2080
        %v2098 = vadd.f32 %v2058, %v2080
        %v2099 = vadd.f32 %v2059, %v2080
        %v2100 = vadd.f32 %v2060, %v2080
        %v2101 = vadd.f32 %v2061, %v2085
        %v2102 = vadd.f32 %v2062, %v2085
        %v2103 = vadd.f32 %v2063, %v2085
        %v2104 = vadd.f32 %v2064, %v2085
        %v2105 = vadd.f32 %v2065, %v2090
        %v2106 = vadd.f32 %v2066, %v2090
        %v2107 = vadd.f32 %v2067, %v2090
        %v2108 = vadd.f32 %v2068, %v2090
        %v2109 = vadd.f32 %v2069, %v2095
        %v2110 = vadd.f32 %v2070, %v2095
        %v2111 = vadd.f32 %v2071, %v2095
        %v2112 = vadd.f32 %v2072, %v2095
        %v2113 = vld [vmem:[%s3] sm:$0xff]
        %v2114 = vld [vmem:[%s3 + $0x8] sm:$0xff]
        %v2115 = vld [vmem:[%s3 + $0x10] sm:$0xff]
        %v2116 = vld [vmem:[%s3 + $0x18] sm:$0xff]
        %v2117 = vld [vmem:[%s4] sm:$0xff]
        %v2118 = vld [vmem:[%s4 + $0x8] sm:$0xff]
        %v2119 = vld [vmem:[%s4 + $0x10] sm:$0xff]
        %v2120 = vld [vmem:[%s4 + $0x18] sm:$0xff]
        %2122 = vset.pattern.permute.xlu0 0
        %2123 = vperm.xlu0 %2122, %v2117
        %v2124 = vpop.permute.xlu0 %2123
        %2127 = vset.pattern.permute.xlu0 0
        %2128 = vperm.xlu0 %2127, %v2118
        %v2129 = vpop.permute.xlu0 %2128
        %2132 = vset.pattern.permute.xlu0 0
        %2133 = vperm.xlu0 %2132, %v2119
        %v2134 = vpop.permute.xlu0 %2133
        %2137 = vset.pattern.permute.xlu0 0
        %2138 = vperm.xlu0 %2137, %v2120
        %v2139 = vpop.permute.xlu0 %2138
        %v2142 = vsel %vm667, %v2113, 0
        %v2145 = vsel %vm667, %v2114, 0
        %v2148 = vsel %vm667, %v2115, 0
        %v2151 = vsel %vm667, %v2116, 0
        %2153 = vmatprep.subr.mxu0 0.0
        %2154 = vmatpush1.msra.mxu0 0.0
        %2155 = vmatprep.subr.mxu0 0.0
        %2156 = vmatpush1.msra.mxu0 0.0
        %2157 = vmatprep.subr.mxu0 0.0
        %2158 = vmatpush1.msra.mxu0 0.0
        %2159 = vmatprep.subr.mxu0 0.0
        %2160 = vmatpush1.msra.mxu0 0.0
        %2161 = vmatprep.subr.mxu0 0.0
        %2162 = vmatpush1.msra.mxu0 0.0
        %2163 = vmatprep.subr.mxu0 0.0
        %2164 = vmatpush1.msra.mxu0 0.0
        %2165 = vmatprep.subr.mxu0 0.0
        %2166 = vmatpush1.msra.mxu0 0.0
        %2167 = vmatprep.subr.mxu0 0.0
        %2168 = vmatpush1.msra.mxu0 0.0
        %2169 = vmatprep.subr.mxu0 0.0
        %2170 = vmatpush1.msra.mxu0 0.0
        %2171 = vmatprep.subr.mxu0 0.0
        %2172 = vmatpush1.msra.mxu0 0.0
        %2173 = vmatprep.subr.mxu0 0.0
        %2174 = vmatpush1.msra.mxu0 0.0
        %2175 = vmatprep.subr.mxu0 0.0
        %2176 = vmatpush1.msra.mxu0 0.0
        %2177 = vmatprep.subr.mxu0 %v2110
        %2178 = vmatpush1.msra.mxu0 %v2109
        %2179 = vmatprep.subr.mxu0 %v2106
        %2180 = vmatpush1.msra.mxu0 %v2105
        %2181 = vmatprep.subr.mxu0 %v2102
        %2182 = vmatpush1.msra.mxu0 %v2101
        %2183 = vmatprep.subr.mxu0 %v2098
        %2184 = vmatpush1.msra.mxu0 %v2097
        %2185 = vmatprep.subr.mxu0 0.0
        %2186 = vmatpush2.msra.mxu0 0.0
        %2187 = vmatprep.subr.mxu0 0.0
        %2188 = vmatpush2.msra.mxu0 0.0
        %2189 = vmatprep.subr.mxu0 0.0
        %2190 = vmatpush2.msra.mxu0 0.0
        %2191 = vmatprep.subr.mxu0 0.0
        %2192 = vmatpush2.msra.mxu0 0.0
        %2193 = vmatprep.subr.mxu0 0.0
        %2194 = vmatpush2.msra.mxu0 0.0
        %2195 = vmatprep.subr.mxu0 0.0
        %2196 = vmatpush2.msra.mxu0 0.0
        %2197 = vmatprep.subr.mxu0 0.0
        %2198 = vmatpush2.msra.mxu0 0.0
        %2199 = vmatprep.subr.mxu0 0.0
        %2200 = vmatpush2.msra.mxu0 0.0
        %2201 = vmatprep.subr.mxu0 0.0
        %2202 = vmatpush2.msra.mxu0 0.0
        %2203 = vmatprep.subr.mxu0 0.0
        %2204 = vmatpush2.msra.mxu0 0.0
        %2205 = vmatprep.subr.mxu0 0.0
        %2206 = vmatpush2.msra.mxu0 0.0
        %2207 = vmatprep.subr.mxu0 0.0
        %2208 = vmatpush2.msra.mxu0 0.0
        %2209 = vmatprep.subr.mxu0 0.0
        %2210 = vmatpush2.msra.mxu0 0.0
        %2211 = vmatprep.subr.mxu0 0.0
        %2212 = vmatpush2.msra.mxu0 0.0
        %2213 = vmatprep.subr.mxu0 0.0
        %2214 = vmatpush2.msra.mxu0 0.0
        %2215 = vmatprep.subr.mxu0 0.0
        %2216 = vmatpush2.msra.mxu0 0.0
        %2217 = vmatprep.mubr.f32.mxu0 0.0
        %2218 = vmatmul.mubr.f32.gmra.mxu0 %v2142
        %v2219 = vpop.f32.mrf.mxu0
        %v2220 = vadd.f32 %v2124, %v2219
        %v2221 = vpop.f32.mrf.mxu0
        %v2222 = vadd.f32 %v2124, %v2221
        %2223 = vmatprep.mubr.f32.mxu0 0.0
        %2224 = vmatmul.mubr.f32.gmra.mxu0 %v2145
        %v2225 = vpop.f32.mrf.mxu0
        %v2226 = vadd.f32 %v2129, %v2225
        %v2227 = vpop.f32.mrf.mxu0
        %v2228 = vadd.f32 %v2129, %v2227
        %2229 = vmatprep.mubr.f32.mxu0 0.0
        %2230 = vmatmul.mubr.f32.gmra.mxu0 %v2148
        %v2231 = vpop.f32.mrf.mxu0
        %v2232 = vadd.f32 %v2134, %v2231
        %v2233 = vpop.f32.mrf.mxu0
        %v2234 = vadd.f32 %v2134, %v2233
        %2235 = vmatprep.mubr.f32.mxu0 0.0
        %2236 = vmatmul.mubr.f32.gmra.mxu0 %v2151
        %v2237 = vpop.f32.mrf.mxu0
        %v2238 = vadd.f32 %v2139, %v2237
        %v2239 = vpop.f32.mrf.mxu0
        %v2240 = vadd.f32 %v2139, %v2239
        %2241 = vdwg.mxu0
        %2242 = vmatprep.subr.mxu0 0.0
        %2243 = vmatpush1.msra.mxu0 0.0
        %2244 = vmatprep.subr.mxu0 0.0
        %2245 = vmatpush1.msra.mxu0 0.0
        %2246 = vmatprep.subr.mxu0 0.0
        %2247 = vmatpush1.msra.mxu0 0.0
        %2248 = vmatprep.subr.mxu0 0.0
        %2249 = vmatpush1.msra.mxu0 0.0
        %2250 = vmatprep.subr.mxu0 0.0
        %2251 = vmatpush1.msra.mxu0 0.0
        %2252 = vmatprep.subr.mxu0 0.0
        %2253 = vmatpush1.msra.mxu0 0.0
        %2254 = vmatprep.subr.mxu0 0.0
        %2255 = vmatpush1.msra.mxu0 0.0
        %2256 = vmatprep.subr.mxu0 0.0
        %2257 = vmatpush1.msra.mxu0 0.0
        %2258 = vmatprep.subr.mxu0 0.0
        %2259 = vmatpush1.msra.mxu0 0.0
        %2260 = vmatprep.subr.mxu0 0.0
        %2261 = vmatpush1.msra.mxu0 0.0
        %2262 = vmatprep.subr.mxu0 0.0
        %2263 = vmatpush1.msra.mxu0 0.0
        %2264 = vmatprep.subr.mxu0 0.0
        %2265 = vmatpush1.msra.mxu0 0.0
        %2266 = vmatprep.subr.mxu0 %v2112
        %2267 = vmatpush1.msra.mxu0 %v2111
        %2268 = vmatprep.subr.mxu0 %v2108
        %2269 = vmatpush1.msra.mxu0 %v2107
        %2270 = vmatprep.subr.mxu0 %v2104
        %2271 = vmatpush1.msra.mxu0 %v2103
        %2272 = vmatprep.subr.mxu0 %v2100
        %2273 = vmatpush1.msra.mxu0 %v2099
        %2274 = vmatprep.subr.mxu0 0.0
        %2275 = vmatpush2.msra.mxu0 0.0
        %2276 = vmatprep.subr.mxu0 0.0
        %2277 = vmatpush2.msra.mxu0 0.0
        %2278 = vmatprep.subr.mxu0 0.0
        %2279 = vmatpush2.msra.mxu0 0.0
        %2280 = vmatprep.subr.mxu0 0.0
        %2281 = vmatpush2.msra.mxu0 0.0
        %2282 = vmatprep.subr.mxu0 0.0
        %2283 = vmatpush2.msra.mxu0 0.0
        %2284 = vmatprep.subr.mxu0 0.0
        %2285 = vmatpush2.msra.mxu0 0.0
        %2286 = vmatprep.subr.mxu0 0.0
        %2287 = vmatpush2.msra.mxu0 0.0
        %2288 = vmatprep.subr.mxu0 0.0
        %2289 = vmatpush2.msra.mxu0 0.0
        %2290 = vmatprep.subr.mxu0 0.0
        %2291 = vmatpush2.msra.mxu0 0.0
        %2292 = vmatprep.subr.mxu0 0.0
        %2293 = vmatpush2.msra.mxu0 0.0
        %2294 = vmatprep.subr.mxu0 0.0
        %2295 = vmatpush2.msra.mxu0 0.0
        %2296 = vmatprep.subr.mxu0 0.0
        %2297 = vmatpush2.msra.mxu0 0.0
        %2298 = vmatprep.subr.mxu0 0.0
        %2299 = vmatpush2.msra.mxu0 0.0
        %2300 = vmatprep.subr.mxu0 0.0
        %2301 = vmatpush2.msra.mxu0 0.0
        %2302 = vmatprep.subr.mxu0 0.0
        %2303 = vmatpush2.msra.mxu0 0.0
        %2304 = vmatprep.subr.mxu0 0.0
        %2305 = vmatpush2.msra.mxu0 0.0
        %2306 = vmatprep.mubr.f32.mxu0 0.0
        %2307 = vmatmul.mubr.f32.gmra.mxu0 %v2142
        %v2308 = vpop.f32.mrf.mxu0
        %v2309 = vadd.f32 %v2124, %v2308
        %v2310 = vpop.f32.mrf.mxu0
        %v2311 = vadd.f32 %v2124, %v2310
        %2312 = vmatprep.mubr.f32.mxu0 0.0
        %2313 = vmatmul.mubr.f32.gmra.mxu0 %v2145
        %v2314 = vpop.f32.mrf.mxu0
        %v2315 = vadd.f32 %v2129, %v2314
        %v2316 = vpop.f32.mrf.mxu0
        %v2317 = vadd.f32 %v2129, %v2316
        %2318 = vmatprep.mubr.f32.mxu0 0.0
        %2319 = vmatmul.mubr.f32.gmra.mxu0 %v2148
        %v2320 = vpop.f32.mrf.mxu0
        %v2321 = vadd.f32 %v2134, %v2320
        %v2322 = vpop.f32.mrf.mxu0
        %v2323 = vadd.f32 %v2134, %v2322
        %2324 = vmatprep.mubr.f32.mxu0 0.0
        %2325 = vmatmul.mubr.f32.gmra.mxu0 %v2151
        %v2326 = vpop.f32.mrf.mxu0
        %v2327 = vadd.f32 %v2139, %v2326
        %v2328 = vpop.f32.mrf.mxu0
        %v2329 = vadd.f32 %v2139, %v2328
        %2330 = vdwg.mxu0
        %v2331 = vtanh.pop %v2220
        %v2332 = vtanh.pop %v2222
        %v2333 = vtanh.pop %v2309
        %v2334 = vtanh.pop %v2311
        %v2335 = vtanh.pop %v2226
        %v2336 = vtanh.pop %v2228
        %v2337 = vtanh.pop %v2315
        %v2338 = vtanh.pop %v2317
        %v2339 = vtanh.pop %v2232
        %v2340 = vtanh.pop %v2234
        %v2341 = vtanh.pop %v2321
        %v2342 = vtanh.pop %v2323
        %v2343 = vtanh.pop %v2238
        %v2344 = vtanh.pop %v2240
        %v2345 = vtanh.pop %v2327
        %v2346 = vtanh.pop %v2329
        %v2347 = vld [vmem:[#allocation3] sm:$0xff]
        %v2348 = vld [vmem:[#allocation3 + $0x8] sm:$0xff]
        %v2349 = vld [vmem:[#allocation3 + $0x10] sm:$0xff]
        %v2350 = vld [vmem:[#allocation3 + $0x18] sm:$0xff]
        %v2351 = vld [vmem:[%s6] sm:$0xff]
        %v2352 = vld [vmem:[%s6 + $0x8] sm:$0xff]
        %v2353 = vld [vmem:[%s6 + $0x10] sm:$0xff]
        %v2354 = vld [vmem:[%s6 + $0x18] sm:$0xff]
        %2356 = vset.pattern.permute.xlu0 0
        %2357 = vperm.xlu0 %2356, %v2351
        %v2358 = vpop.permute.xlu0 %2357
        %2361 = vset.pattern.permute.xlu0 0
        %2362 = vperm.xlu0 %2361, %v2352
        %v2363 = vpop.permute.xlu0 %2362
        %2366 = vset.pattern.permute.xlu0 0
        %2367 = vperm.xlu0 %2366, %v2353
        %v2368 = vpop.permute.xlu0 %2367
        %2371 = vset.pattern.permute.xlu0 0
        %2372 = vperm.xlu0 %2371, %v2354
        %v2373 = vpop.permute.xlu0 %2372
        %v2376 = vsel %vm667, %v2347, 0
        %v2379 = vsel %vm667, %v2348, 0
        %v2382 = vsel %vm667, %v2349, 0
        %v2385 = vsel %vm667, %v2350, 0
        %2387 = vmatprep.subr.mxu0 0.0
        %2388 = vmatpush1.msra.mxu0 0.0
        %2389 = vmatprep.subr.mxu0 0.0
        %2390 = vmatpush1.msra.mxu0 0.0
        %2391 = vmatprep.subr.mxu0 0.0
        %2392 = vmatpush1.msra.mxu0 0.0
        %2393 = vmatprep.subr.mxu0 0.0
        %2394 = vmatpush1.msra.mxu0 0.0
        %2395 = vmatprep.subr.mxu0 0.0
        %2396 = vmatpush1.msra.mxu0 0.0
        %2397 = vmatprep.subr.mxu0 0.0
        %2398 = vmatpush1.msra.mxu0 0.0
        %2399 = vmatprep.subr.mxu0 0.0
        %2400 = vmatpush1.msra.mxu0 0.0
        %2401 = vmatprep.subr.mxu0 0.0
        %2402 = vmatpush1.msra.mxu0 0.0
        %2403 = vmatprep.subr.mxu0 0.0
        %2404 = vmatpush1.msra.mxu0 0.0
        %2405 = vmatprep.subr.mxu0 0.0
        %2406 = vmatpush1.msra.mxu0 0.0
        %2407 = vmatprep.subr.mxu0 0.0
        %2408 = vmatpush1.msra.mxu0 0.0
        %2409 = vmatprep.subr.mxu0 0.0
        %2410 = vmatpush1.msra.mxu0 0.0
        %2411 = vmatprep.subr.mxu0 %v2344
        %2412 = vmatpush1.msra.mxu0 %v2343
        %2413 = vmatprep.subr.mxu0 %v2340
        %2414 = vmatpush1.msra.mxu0 %v2339
        %2415 = vmatprep.subr.mxu0 %v2336
        %2416 = vmatpush1.msra.mxu0 %v2335
        %2417 = vmatprep.subr.mxu0 %v2332
        %2418 = vmatpush1.msra.mxu0 %v2331
        %2419 = vmatprep.subr.mxu0 0.0
        %2420 = vmatpush2.msra.mxu0 0.0
        %2421 = vmatprep.subr.mxu0 0.0
        %2422 = vmatpush2.msra.mxu0 0.0
        %2423 = vmatprep.subr.mxu0 0.0
        %2424 = vmatpush2.msra.mxu0 0.0
        %2425 = vmatprep.subr.mxu0 0.0
        %2426 = vmatpush2.msra.mxu0 0.0
        %2427 = vmatprep.subr.mxu0 0.0
        %2428 = vmatpush2.msra.mxu0 0.0
        %2429 = vmatprep.subr.mxu0 0.0
        %2430 = vmatpush2.msra.mxu0 0.0
        %2431 = vmatprep.subr.mxu0 0.0
        %2432 = vmatpush2.msra.mxu0 0.0
        %2433 = vmatprep.subr.mxu0 0.0
        %2434 = vmatpush2.msra.mxu0 0.0
        %2435 = vmatprep.subr.mxu0 0.0
        %2436 = vmatpush2.msra.mxu0 0.0
        %2437 = vmatprep.subr.mxu0 0.0
        %2438 = vmatpush2.msra.mxu0 0.0
        %2439 = vmatprep.subr.mxu0 0.0
        %2440 = vmatpush2.msra.mxu0 0.0
        %2441 = vmatprep.subr.mxu0 0.0
        %2442 = vmatpush2.msra.mxu0 0.0
        %2443 = vmatprep.subr.mxu0 0.0
        %2444 = vmatpush2.msra.mxu0 0.0
        %2445 = vmatprep.subr.mxu0 0.0
        %2446 = vmatpush2.msra.mxu0 0.0
        %2447 = vmatprep.subr.mxu0 0.0
        %2448 = vmatpush2.msra.mxu0 0.0
        %2449 = vmatprep.subr.mxu0 0.0
        %2450 = vmatpush2.msra.mxu0 0.0
        %2451 = vmatprep.mubr.f32.mxu0 0.0
        %2452 = vmatmul.mubr.f32.gmra.mxu0 %v2376
        %v2453 = vpop.f32.mrf.mxu0
        %v2454 = vadd.f32 %v2358, %v2453
        %v2455 = vpop.f32.mrf.mxu0
        %v2456 = vadd.f32 %v2358, %v2455
        %2457 = vmatprep.mubr.f32.mxu0 0.0
        %2458 = vmatmul.mubr.f32.gmra.mxu0 %v2379
        %v2459 = vpop.f32.mrf.mxu0
        %v2460 = vadd.f32 %v2363, %v2459
        %v2461 = vpop.f32.mrf.mxu0
        %v2462 = vadd.f32 %v2363, %v2461
        %2463 = vmatprep.mubr.f32.mxu0 0.0
        %2464 = vmatmul.mubr.f32.gmra.mxu0 %v2382
        %v2465 = vpop.f32.mrf.mxu0
        %v2466 = vadd.f32 %v2368, %v2465
        %v2467 = vpop.f32.mrf.mxu0
        %v2468 = vadd.f32 %v2368, %v2467
        %2469 = vmatprep.mubr.f32.mxu0 0.0
        %2470 = vmatmul.mubr.f32.gmra.mxu0 %v2385
        %v2471 = vpop.f32.mrf.mxu0
        %v2472 = vadd.f32 %v2373, %v2471
        %v2473 = vpop.f32.mrf.mxu0
        %v2474 = vadd.f32 %v2373, %v2473
        %2475 = vdwg.mxu0
        %2476 = vmatprep.subr.mxu0 0.0
        %2477 = vmatpush1.msra.mxu0 0.0
        %2478 = vmatprep.subr.mxu0 0.0
        %2479 = vmatpush1.msra.mxu0 0.0
        %2480 = vmatprep.subr.mxu0 0.0
        %2481 = vmatpush1.msra.mxu0 0.0
        %2482 = vmatprep.subr.mxu0 0.0
        %2483 = vmatpush1.msra.mxu0 0.0
        %2484 = vmatprep.subr.mxu0 0.0
        %2485 = vmatpush1.msra.mxu0 0.0
        %2486 = vmatprep.subr.mxu0 0.0
        %2487 = vmatpush1.msra.mxu0 0.0
        %2488 = vmatprep.subr.mxu0 0.0
        %2489 = vmatpush1.msra.mxu0 0.0
        %2490 = vmatprep.subr.mxu0 0.0
        %2491 = vmatpush1.msra.mxu0 0.0
        %2492 = vmatprep.subr.mxu0 0.0
        %2493 = vmatpush1.msra.mxu0 0.0
        %2494 = vmatprep.subr.mxu0 0.0
        %2495 = vmatpush1.msra.mxu0 0.0
        %2496 = vmatprep.subr.mxu0 0.0
        %2497 = vmatpush1.msra.mxu0 0.0
        %2498 = vmatprep.subr.mxu0 0.0
        %2499 = vmatpush1.msra.mxu0 0.0
        %2500 = vmatprep.subr.mxu0 %v2346
        %2501 = vmatpush1.msra.mxu0 %v2345
        %2502 = vmatprep.subr.mxu0 %v2342
        %2503 = vmatpush1.msra.mxu0 %v2341
        %2504 = vmatprep.subr.mxu0 %v2338
        %2505 = vmatpush1.msra.mxu0 %v2337
        %2506 = vmatprep.subr.mxu0 %v2334
        %2507 = vmatpush1.msra.mxu0 %v2333
        %2508 = vmatprep.subr.mxu0 0.0
        %2509 = vmatpush2.msra.mxu0 0.0
        %2510 = vmatprep.subr.mxu0 0.0
        %2511 = vmatpush2.msra.mxu0 0.0
        %2512 = vmatprep.subr.mxu0 0.0
        %2513 = vmatpush2.msra.mxu0 0.0
        %2514 = vmatprep.subr.mxu0 0.0
        %2515 = vmatpush2.msra.mxu0 0.0
        %2516 = vmatprep.subr.mxu0 0.0
        %2517 = vmatpush2.msra.mxu0 0.0
        %2518 = vmatprep.subr.mxu0 0.0
        %2519 = vmatpush2.msra.mxu0 0.0
        %2520 = vmatprep.subr.mxu0 0.0
        %2521 = vmatpush2.msra.mxu0 0.0
        %2522 = vmatprep.subr.mxu0 0.0
        %2523 = vmatpush2.msra.mxu0 0.0
        %2524 = vmatprep.subr.mxu0 0.0
        %2525 = vmatpush2.msra.mxu0 0.0
        %2526 = vmatprep.subr.mxu0 0.0
        %2527 = vmatpush2.msra.mxu0 0.0
        %2528 = vmatprep.subr.mxu0 0.0
        %2529 = vmatpush2.msra.mxu0 0.0
        %2530 = vmatprep.subr.mxu0 0.0
        %2531 = vmatpush2.msra.mxu0 0.0
        %2532 = vmatprep.subr.mxu0 0.0
        %2533 = vmatpush2.msra.mxu0 0.0
        %2534 = vmatprep.subr.mxu0 0.0
        %2535 = vmatpush2.msra.mxu0 0.0
        %2536 = vmatprep.subr.mxu0 0.0
        %2537 = vmatpush2.msra.mxu0 0.0
        %2538 = vmatprep.subr.mxu0 0.0
        %2539 = vmatpush2.msra.mxu0 0.0
        %2540 = vmatprep.mubr.f32.mxu0 0.0
        %2541 = vmatmul.mubr.f32.gmra.mxu0 %v2376
        %v2542 = vpop.f32.mrf.mxu0
        %v2543 = vadd.f32 %v2358, %v2542
        %v2544 = vpop.f32.mrf.mxu0
        %v2545 = vadd.f32 %v2358, %v2544
        %2546 = vmatprep.mubr.f32.mxu0 0.0
        %2547 = vmatmul.mubr.f32.gmra.mxu0 %v2379
        %v2548 = vpop.f32.mrf.mxu0
        %v2549 = vadd.f32 %v2363, %v2548
        %v2550 = vpop.f32.mrf.mxu0
        %v2551 = vadd.f32 %v2363, %v2550
        %2552 = vmatprep.mubr.f32.mxu0 0.0
        %2553 = vmatmul.mubr.f32.gmra.mxu0 %v2382
        %v2554 = vpop.f32.mrf.mxu0
        %v2555 = vadd.f32 %v2368, %v2554
        %v2556 = vpop.f32.mrf.mxu0
        %v2557 = vadd.f32 %v2368, %v2556
        %2558 = vmatprep.mubr.f32.mxu0 0.0
        %2559 = vmatmul.mubr.f32.gmra.mxu0 %v2385
        %v2560 = vpop.f32.mrf.mxu0
        %v2561 = vadd.f32 %v2373, %v2560
        %v2562 = vpop.f32.mrf.mxu0
        %v2563 = vadd.f32 %v2373, %v2562
        %2564 = vdwg.mxu0
        %v2565 = vtanh.pop %v2454
        %v2566 = vtanh.pop %v2456
        %v2567 = vtanh.pop %v2543
        %v2568 = vtanh.pop %v2545
        %v2569 = vtanh.pop %v2460
        %v2570 = vtanh.pop %v2462
        %v2571 = vtanh.pop %v2549
        %v2572 = vtanh.pop %v2551
        %v2573 = vtanh.pop %v2466
        %v2574 = vtanh.pop %v2468
        %v2575 = vtanh.pop %v2555
        %v2576 = vtanh.pop %v2557
        %v2577 = vtanh.pop %v2472
        %v2578 = vtanh.pop %v2474
        %v2579 = vtanh.pop %v2561
        %v2580 = vtanh.pop %v2563
        %v2581 = vadd.f32 %v2565, %v2097
        %v2582 = vadd.f32 %v2566, %v2098
        %v2583 = vadd.f32 %v2567, %v2099
        %v2584 = vadd.f32 %v2568, %v2100
        %v2585 = vadd.f32 %v2569, %v2101
        %v2586 = vadd.f32 %v2570, %v2102
        %v2587 = vadd.f32 %v2571, %v2103
        %v2588 = vadd.f32 %v2572, %v2104
        %v2589 = vadd.f32 %v2573, %v2105
        %v2590 = vadd.f32 %v2574, %v2106
        %v2591 = vadd.f32 %v2575, %v2107
        %v2592 = vadd.f32 %v2576, %v2108
        %v2593 = vadd.f32 %v2577, %v2109
        %v2594 = vadd.f32 %v2578, %v2110
        %v2595 = vadd.f32 %v2579, %v2111
        %v2596 = vadd.f32 %v2580, %v2112
        %v2597 = vld [vmem:[%s1124] sm:$0xff]
        %v2598 = vld [vmem:[%s1124 + $0x8] sm:$0xff]
        %v2599 = vld [vmem:[%s1124 + $0x10] sm:$0xff]
        %v2600 = vld [vmem:[%s1124 + $0x18] sm:$0xff]
        %v2601 = vld [vmem:[%s1129] sm:$0xff]
        %v2602 = vld [vmem:[%s1129 + $0x8] sm:$0xff]
        %v2603 = vld [vmem:[%s1129 + $0x10] sm:$0xff]
        %v2604 = vld [vmem:[%s1129 + $0x18] sm:$0xff]
        %2606 = vset.pattern.permute.xlu0 0
        %2607 = vperm.xlu0 %2606, %v2601
        %v2608 = vpop.permute.xlu0 %2607
        %2611 = vset.pattern.permute.xlu0 0
        %2612 = vperm.xlu0 %2611, %v2602
        %v2613 = vpop.permute.xlu0 %2612
        %2616 = vset.pattern.permute.xlu0 0
        %2617 = vperm.xlu0 %2616, %v2603
        %v2618 = vpop.permute.xlu0 %2617
        %2621 = vset.pattern.permute.xlu0 0
        %2622 = vperm.xlu0 %2621, %v2604
        %v2623 = vpop.permute.xlu0 %2622
        %v2626 = vsel %vm667, %v2597, 0
        %v2629 = vsel %vm667, %v2598, 0
        %v2632 = vsel %vm667, %v2599, 0
        %v2635 = vsel %vm667, %v2600, 0
        %2637 = vmatprep.subr.mxu0 0.0
        %2638 = vmatpush1.msra.mxu0 0.0
        %2639 = vmatprep.subr.mxu0 0.0
        %2640 = vmatpush1.msra.mxu0 0.0
        %2641 = vmatprep.subr.mxu0 0.0
        %2642 = vmatpush1.msra.mxu0 0.0
        %2643 = vmatprep.subr.mxu0 0.0
        %2644 = vmatpush1.msra.mxu0 0.0
        %2645 = vmatprep.subr.mxu0 0.0
        %2646 = vmatpush1.msra.mxu0 0.0
        %2647 = vmatprep.subr.mxu0 0.0
        %2648 = vmatpush1.msra.mxu0 0.0
        %2649 = vmatprep.subr.mxu0 0.0
        %2650 = vmatpush1.msra.mxu0 0.0
        %2651 = vmatprep.subr.mxu0 0.0
        %2652 = vmatpush1.msra.mxu0 0.0
        %2653 = vmatprep.subr.mxu0 0.0
        %2654 = vmatpush1.msra.mxu0 0.0
        %2655 = vmatprep.subr.mxu0 0.0
        %2656 = vmatpush1.msra.mxu0 0.0
        %2657 = vmatprep.subr.mxu0 0.0
        %2658 = vmatpush1.msra.mxu0 0.0
        %2659 = vmatprep.subr.mxu0 0.0
        %2660 = vmatpush1.msra.mxu0 0.0
        %2661 = vmatprep.subr.mxu0 %v2594
        %2662 = vmatpush1.msra.mxu0 %v2593
        %2663 = vmatprep.subr.mxu0 %v2590
        %2664 = vmatpush1.msra.mxu0 %v2589
        %2665 = vmatprep.subr.mxu0 %v2586
        %2666 = vmatpush1.msra.mxu0 %v2585
        %2667 = vmatprep.subr.mxu0 %v2582
        %2668 = vmatpush1.msra.mxu0 %v2581
        %2669 = vmatprep.subr.mxu0 0.0
        %2670 = vmatpush2.msra.mxu0 0.0
        %2671 = vmatprep.subr.mxu0 0.0
        %2672 = vmatpush2.msra.mxu0 0.0
        %2673 = vmatprep.subr.mxu0 0.0
        %2674 = vmatpush2.msra.mxu0 0.0
        %2675 = vmatprep.subr.mxu0 0.0
        %2676 = vmatpush2.msra.mxu0 0.0
        %2677 = vmatprep.subr.mxu0 0.0
        %2678 = vmatpush2.msra.mxu0 0.0
        %2679 = vmatprep.subr.mxu0 0.0
        %2680 = vmatpush2.msra.mxu0 0.0
        %2681 = vmatprep.subr.mxu0 0.0
        %2682 = vmatpush2.msra.mxu0 0.0
        %2683 = vmatprep.subr.mxu0 0.0
        %2684 = vmatpush2.msra.mxu0 0.0
        %2685 = vmatprep.subr.mxu0 0.0
        %2686 = vmatpush2.msra.mxu0 0.0
        %2687 = vmatprep.subr.mxu0 0.0
        %2688 = vmatpush2.msra.mxu0 0.0
        %2689 = vmatprep.subr.mxu0 0.0
        %2690 = vmatpush2.msra.mxu0 0.0
        %2691 = vmatprep.subr.mxu0 0.0
        %2692 = vmatpush2.msra.mxu0 0.0
        %2693 = vmatprep.subr.mxu0 0.0
        %2694 = vmatpush2.msra.mxu0 0.0
        %2695 = vmatprep.subr.mxu0 0.0
        %2696 = vmatpush2.msra.mxu0 0.0
        %2697 = vmatprep.subr.mxu0 0.0
        %2698 = vmatpush2.msra.mxu0 0.0
        %2699 = vmatprep.subr.mxu0 0.0
        %2700 = vmatpush2.msra.mxu0 0.0
        %2701 = vmatprep.mubr.f32.mxu0 0.0
        %2702 = vmatmul.mubr.f32.gmra.mxu0 %v2626
        %v2703 = vpop.f32.mrf.mxu0
        %v2704 = vadd.f32 %v2608, %v2703
        %v2705 = vpop.f32.mrf.mxu0
        %v2706 = vadd.f32 %v2608, %v2705
        %2707 = vmatprep.mubr.f32.mxu0 0.0
        %2708 = vmatmul.mubr.f32.gmra.mxu0 %v2629
        %v2709 = vpop.f32.mrf.mxu0
        %v2710 = vadd.f32 %v2613, %v2709
        %v2711 = vpop.f32.mrf.mxu0
        %v2712 = vadd.f32 %v2613, %v2711
        %2713 = vmatprep.mubr.f32.mxu0 0.0
        %2714 = vmatmul.mubr.f32.gmra.mxu0 %v2632
        %v2715 = vpop.f32.mrf.mxu0
        %v2716 = vadd.f32 %v2618, %v2715
        %v2717 = vpop.f32.mrf.mxu0
        %v2718 = vadd.f32 %v2618, %v2717
        %2719 = vmatprep.mubr.f32.mxu0 0.0
        %2720 = vmatmul.mubr.f32.gmra.mxu0 %v2635
        %v2721 = vpop.f32.mrf.mxu0
        %v2722 = vadd.f32 %v2623, %v2721
        %v2723 = vpop.f32.mrf.mxu0
        %v2724 = vadd.f32 %v2623, %v2723
        %2725 = vdwg.mxu0
        %2726 = vmatprep.subr.mxu0 0.0
        %2727 = vmatpush1.msra.mxu0 0.0
        %2728 = vmatprep.subr.mxu0 0.0
        %2729 = vmatpush1.msra.mxu0 0.0
        %2730 = vmatprep.subr.mxu0 0.0
        %2731 = vmatpush1.msra.mxu0 0.0
        %2732 = vmatprep.subr.mxu0 0.0
        %2733 = vmatpush1.msra.mxu0 0.0
        %2734 = vmatprep.subr.mxu0 0.0
        %2735 = vmatpush1.msra.mxu0 0.0
        %2736 = vmatprep.subr.mxu0 0.0
        %2737 = vmatpush1.msra.mxu0 0.0
        %2738 = vmatprep.subr.mxu0 0.0
        %2739 = vmatpush1.msra.mxu0 0.0
        %2740 = vmatprep.subr.mxu0 0.0
        %2741 = vmatpush1.msra.mxu0 0.0
        %2742 = vmatprep.subr.mxu0 0.0
        %2743 = vmatpush1.msra.mxu0 0.0
        %2744 = vmatprep.subr.mxu0 0.0
        %2745 = vmatpush1.msra.mxu0 0.0
        %2746 = vmatprep.subr.mxu0 0.0
        %2747 = vmatpush1.msra.mxu0 0.0
        %2748 = vmatprep.subr.mxu0 0.0
        %2749 = vmatpush1.msra.mxu0 0.0
        %2750 = vmatprep.subr.mxu0 %v2596
        %2751 = vmatpush1.msra.mxu0 %v2595
        %2752 = vmatprep.subr.mxu0 %v2592
        %2753 = vmatpush1.msra.mxu0 %v2591
        %2754 = vmatprep.subr.mxu0 %v2588
        %2755 = vmatpush1.msra.mxu0 %v2587
        %2756 = vmatprep.subr.mxu0 %v2584
        %2757 = vmatpush1.msra.mxu0 %v2583
        %2758 = vmatprep.subr.mxu0 0.0
        %2759 = vmatpush2.msra.mxu0 0.0
        %2760 = vmatprep.subr.mxu0 0.0
        %2761 = vmatpush2.msra.mxu0 0.0
        %2762 = vmatprep.subr.mxu0 0.0
        %2763 = vmatpush2.msra.mxu0 0.0
        %2764 = vmatprep.subr.mxu0 0.0
        %2765 = vmatpush2.msra.mxu0 0.0
        %2766 = vmatprep.subr.mxu0 0.0
        %2767 = vmatpush2.msra.mxu0 0.0
        %2768 = vmatprep.subr.mxu0 0.0
        %2769 = vmatpush2.msra.mxu0 0.0
        %2770 = vmatprep.subr.mxu0 0.0
        %2771 = vmatpush2.msra.mxu0 0.0
        %2772 = vmatprep.subr.mxu0 0.0
        %2773 = vmatpush2.msra.mxu0 0.0
        %2774 = vmatprep.subr.mxu0 0.0
        %2775 = vmatpush2.msra.mxu0 0.0
        %2776 = vmatprep.subr.mxu0 0.0
        %2777 = vmatpush2.msra.mxu0 0.0
        %2778 = vmatprep.subr.mxu0 0.0
        %2779 = vmatpush2.msra.mxu0 0.0
        %2780 = vmatprep.subr.mxu0 0.0
        %2781 = vmatpush2.msra.mxu0 0.0
        %2782 = vmatprep.subr.mxu0 0.0
        %2783 = vmatpush2.msra.mxu0 0.0
        %2784 = vmatprep.subr.mxu0 0.0
        %2785 = vmatpush2.msra.mxu0 0.0
        %2786 = vmatprep.subr.mxu0 0.0
        %2787 = vmatpush2.msra.mxu0 0.0
        %2788 = vmatprep.subr.mxu0 0.0
        %2789 = vmatpush2.msra.mxu0 0.0
        %2790 = vmatprep.mubr.f32.mxu0 0.0
        %2791 = vmatmul.mubr.f32.gmra.mxu0 %v2626
        %v2792 = vpop.f32.mrf.mxu0
        %v2793 = vadd.f32 %v2608, %v2792
        %v2794 = vpop.f32.mrf.mxu0
        %v2795 = vadd.f32 %v2608, %v2794
        %2796 = vmatprep.mubr.f32.mxu0 0.0
        %2797 = vmatmul.mubr.f32.gmra.mxu0 %v2629
        %v2798 = vpop.f32.mrf.mxu0
        %v2799 = vadd.f32 %v2613, %v2798
        %v2800 = vpop.f32.mrf.mxu0
        %v2801 = vadd.f32 %v2613, %v2800
        %2802 = vmatprep.mubr.f32.mxu0 0.0
        %2803 = vmatmul.mubr.f32.gmra.mxu0 %v2632
        %v2804 = vpop.f32.mrf.mxu0
        %v2805 = vadd.f32 %v2618, %v2804
        %v2806 = vpop.f32.mrf.mxu0
        %v2807 = vadd.f32 %v2618, %v2806
        %2808 = vmatprep.mubr.f32.mxu0 0.0
        %2809 = vmatmul.mubr.f32.gmra.mxu0 %v2635
        %v2810 = vpop.f32.mrf.mxu0
        %v2811 = vadd.f32 %v2623, %v2810
        %v2812 = vpop.f32.mrf.mxu0
        %v2813 = vadd.f32 %v2623, %v2812
        %2814 = vdwg.mxu0
        %v2815 = vtanh.pop %v2704
        %v2816 = vtanh.pop %v2706
        %v2817 = vtanh.pop %v2793
        %v2818 = vtanh.pop %v2795
        %v2819 = vtanh.pop %v2710
        %v2820 = vtanh.pop %v2712
        %v2821 = vtanh.pop %v2799
        %v2822 = vtanh.pop %v2801
        %v2823 = vtanh.pop %v2716
        %v2824 = vtanh.pop %v2718
        %v2825 = vtanh.pop %v2805
        %v2826 = vtanh.pop %v2807
        %v2827 = vtanh.pop %v2722
        %v2828 = vtanh.pop %v2724
        %v2829 = vtanh.pop %v2811
        %v2830 = vtanh.pop %v2813
        %v2831 = vld [vmem:[%s1360] sm:$0xff]
        %v2832 = vld [vmem:[%s1360 + $0x8] sm:$0xff]
        %v2833 = vld [vmem:[%s1360 + $0x10] sm:$0xff]
        %v2834 = vld [vmem:[%s1360 + $0x18] sm:$0xff]
        %v2835 = vld [vmem:[%s1365] sm:$0xff]
        %v2836 = vld [vmem:[%s1365 + $0x8] sm:$0xff]
        %v2837 = vld [vmem:[%s1365 + $0x10] sm:$0xff]
        %v2838 = vld [vmem:[%s1365 + $0x18] sm:$0xff]
        %2840 = vset.pattern.permute.xlu0 0
        %2841 = vperm.xlu0 %2840, %v2835
        %v2842 = vpop.permute.xlu0 %2841
        %2845 = vset.pattern.permute.xlu0 0
        %2846 = vperm.xlu0 %2845, %v2836
        %v2847 = vpop.permute.xlu0 %2846
        %2850 = vset.pattern.permute.xlu0 0
        %2851 = vperm.xlu0 %2850, %v2837
        %v2852 = vpop.permute.xlu0 %2851
        %2855 = vset.pattern.permute.xlu0 0
        %2856 = vperm.xlu0 %2855, %v2838
        %v2857 = vpop.permute.xlu0 %2856
        %v2860 = vsel %vm667, %v2831, 0
        %v2863 = vsel %vm667, %v2832, 0
        %v2866 = vsel %vm667, %v2833, 0
        %v2869 = vsel %vm667, %v2834, 0
        %2871 = vmatprep.subr.mxu0 0.0
        %2872 = vmatpush1.msra.mxu0 0.0
        %2873 = vmatprep.subr.mxu0 0.0
        %2874 = vmatpush1.msra.mxu0 0.0
        %2875 = vmatprep.subr.mxu0 0.0
        %2876 = vmatpush1.msra.mxu0 0.0
        %2877 = vmatprep.subr.mxu0 0.0
        %2878 = vmatpush1.msra.mxu0 0.0
        %2879 = vmatprep.subr.mxu0 0.0
        %2880 = vmatpush1.msra.mxu0 0.0
        %2881 = vmatprep.subr.mxu0 0.0
        %2882 = vmatpush1.msra.mxu0 0.0
        %2883 = vmatprep.subr.mxu0 0.0
        %2884 = vmatpush1.msra.mxu0 0.0
        %2885 = vmatprep.subr.mxu0 0.0
        %2886 = vmatpush1.msra.mxu0 0.0
        %2887 = vmatprep.subr.mxu0 0.0
        %2888 = vmatpush1.msra.mxu0 0.0
        %2889 = vmatprep.subr.mxu0 0.0
        %2890 = vmatpush1.msra.mxu0 0.0
        %2891 = vmatprep.subr.mxu0 0.0
        %2892 = vmatpush1.msra.mxu0 0.0
        %2893 = vmatprep.subr.mxu0 0.0
        %2894 = vmatpush1.msra.mxu0 0.0
        %2895 = vmatprep.subr.mxu0 %v2828
        %2896 = vmatpush1.msra.mxu0 %v2827
        %2897 = vmatprep.subr.mxu0 %v2824
        %2898 = vmatpush1.msra.mxu0 %v2823
        %2899 = vmatprep.subr.mxu0 %v2820
        %2900 = vmatpush1.msra.mxu0 %v2819
        %2901 = vmatprep.subr.mxu0 %v2816
        %2902 = vmatpush1.msra.mxu0 %v2815
        %2903 = vmatprep.subr.mxu0 0.0
        %2904 = vmatpush2.msra.mxu0 0.0
        %2905 = vmatprep.subr.mxu0 0.0
        %2906 = vmatpush2.msra.mxu0 0.0
        %2907 = vmatprep.subr.mxu0 0.0
        %2908 = vmatpush2.msra.mxu0 0.0
        %2909 = vmatprep.subr.mxu0 0.0
        %2910 = vmatpush2.msra.mxu0 0.0
        %2911 = vmatprep.subr.mxu0 0.0
        %2912 = vmatpush2.msra.mxu0 0.0
        %2913 = vmatprep.subr.mxu0 0.0
        %2914 = vmatpush2.msra.mxu0 0.0
        %2915 = vmatprep.subr.mxu0 0.0
        %2916 = vmatpush2.msra.mxu0 0.0
        %2917 = vmatprep.subr.mxu0 0.0
        %2918 = vmatpush2.msra.mxu0 0.0
        %2919 = vmatprep.subr.mxu0 0.0
        %2920 = vmatpush2.msra.mxu0 0.0
        %2921 = vmatprep.subr.mxu0 0.0
        %2922 = vmatpush2.msra.mxu0 0.0
        %2923 = vmatprep.subr.mxu0 0.0
        %2924 = vmatpush2.msra.mxu0 0.0
        %2925 = vmatprep.subr.mxu0 0.0
        %2926 = vmatpush2.msra.mxu0 0.0
        %2927 = vmatprep.subr.mxu0 0.0
        %2928 = vmatpush2.msra.mxu0 0.0
        %2929 = vmatprep.subr.mxu0 0.0
        %2930 = vmatpush2.msra.mxu0 0.0
        %2931 = vmatprep.subr.mxu0 0.0
        %2932 = vmatpush2.msra.mxu0 0.0
        %2933 = vmatprep.subr.mxu0 0.0
        %2934 = vmatpush2.msra.mxu0 0.0
        %2935 = vmatprep.mubr.f32.mxu0 0.0
        %2936 = vmatmul.mubr.f32.gmra.mxu0 %v2860
        %v2937 = vpop.f32.mrf.mxu0
        %v2938 = vadd.f32 %v2842, %v2937
        %v2939 = vpop.f32.mrf.mxu0
        %v2940 = vadd.f32 %v2842, %v2939
        %2941 = vmatprep.mubr.f32.mxu0 0.0
        %2942 = vmatmul.mubr.f32.gmra.mxu0 %v2863
        %v2943 = vpop.f32.mrf.mxu0
        %v2944 = vadd.f32 %v2847, %v2943
        %v2945 = vpop.f32.mrf.mxu0
        %v2946 = vadd.f32 %v2847, %v2945
        %2947 = vmatprep.mubr.f32.mxu0 0.0
        %2948 = vmatmul.mubr.f32.gmra.mxu0 %v2866
        %v2949 = vpop.f32.mrf.mxu0
        %v2950 = vadd.f32 %v2852, %v2949
        %v2951 = vpop.f32.mrf.mxu0
        %v2952 = vadd.f32 %v2852, %v2951
        %2953 = vmatprep.mubr.f32.mxu0 0.0
        %2954 = vmatmul.mubr.f32.gmra.mxu0 %v2869
        %v2955 = vpop.f32.mrf.mxu0
        %v2956 = vadd.f32 %v2857, %v2955
        %v2957 = vpop.f32.mrf.mxu0
        %v2958 = vadd.f32 %v2857, %v2957
        %2959 = vdwg.mxu0
        %2960 = vmatprep.subr.mxu0 0.0
        %2961 = vmatpush1.msra.mxu0 0.0
        %2962 = vmatprep.subr.mxu0 0.0
        %2963 = vmatpush1.msra.mxu0 0.0
        %2964 = vmatprep.subr.mxu0 0.0
        %2965 = vmatpush1.msra.mxu0 0.0
        %2966 = vmatprep.subr.mxu0 0.0
        %2967 = vmatpush1.msra.mxu0 0.0
        %2968 = vmatprep.subr.mxu0 0.0
        %2969 = vmatpush1.msra.mxu0 0.0
        %2970 = vmatprep.subr.mxu0 0.0
        %2971 = vmatpush1.msra.mxu0 0.0
        %2972 = vmatprep.subr.mxu0 0.0
        %2973 = vmatpush1.msra.mxu0 0.0
        %2974 = vmatprep.subr.mxu0 0.0
        %2975 = vmatpush1.msra.mxu0 0.0
        %2976 = vmatprep.subr.mxu0 0.0
        %2977 = vmatpush1.msra.mxu0 0.0
        %2978 = vmatprep.subr.mxu0 0.0
        %2979 = vmatpush1.msra.mxu0 0.0
        %2980 = vmatprep.subr.mxu0 0.0
        %2981 = vmatpush1.msra.mxu0 0.0
        %2982 = vmatprep.subr.mxu0 0.0
        %2983 = vmatpush1.msra.mxu0 0.0
        %2984 = vmatprep.subr.mxu0 %v2830
        %2985 = vmatpush1.msra.mxu0 %v2829
        %2986 = vmatprep.subr.mxu0 %v2826
        %2987 = vmatpush1.msra.mxu0 %v2825
        %2988 = vmatprep.subr.mxu0 %v2822
        %2989 = vmatpush1.msra.mxu0 %v2821
        %2990 = vmatprep.subr.mxu0 %v2818
        %2991 = vmatpush1.msra.mxu0 %v2817
        %2992 = vmatprep.subr.mxu0 0.0
        %2993 = vmatpush2.msra.mxu0 0.0
        %2994 = vmatprep.subr.mxu0 0.0
        %2995 = vmatpush2.msra.mxu0 0.0
        %2996 = vmatprep.subr.mxu0 0.0
        %2997 = vmatpush2.msra.mxu0 0.0
        %2998 = vmatprep.subr.mxu0 0.0
        %2999 = vmatpush2.msra.mxu0 0.0
        %3000 = vmatprep.subr.mxu0 0.0
        %3001 = vmatpush2.msra.mxu0 0.0
        %3002 = vmatprep.subr.mxu0 0.0
        %3003 = vmatpush2.msra.mxu0 0.0
        %3004 = vmatprep.subr.mxu0 0.0
        %3005 = vmatpush2.msra.mxu0 0.0
        %3006 = vmatprep.subr.mxu0 0.0
        %3007 = vmatpush2.msra.mxu0 0.0
        %3008 = vmatprep.subr.mxu0 0.0
        %3009 = vmatpush2.msra.mxu0 0.0
        %3010 = vmatprep.subr.mxu0 0.0
        %3011 = vmatpush2.msra.mxu0 0.0
        %3012 = vmatprep.subr.mxu0 0.0
        %3013 = vmatpush2.msra.mxu0 0.0
        %3014 = vmatprep.subr.mxu0 0.0
        %3015 = vmatpush2.msra.mxu0 0.0
        %3016 = vmatprep.subr.mxu0 0.0
        %3017 = vmatpush2.msra.mxu0 0.0
        %3018 = vmatprep.subr.mxu0 0.0
        %3019 = vmatpush2.msra.mxu0 0.0
        %3020 = vmatprep.subr.mxu0 0.0
        %3021 = vmatpush2.msra.mxu0 0.0
        %3022 = vmatprep.subr.mxu0 0.0
        %3023 = vmatpush2.msra.mxu0 0.0
        %3024 = vmatprep.mubr.f32.mxu0 0.0
        %3025 = vmatmul.mubr.f32.gmra.mxu0 %v2860
        %v3026 = vpop.f32.mrf.mxu0
        %v3027 = vadd.f32 %v2842, %v3026
        %v3028 = vpop.f32.mrf.mxu0
        %v3029 = vadd.f32 %v2842, %v3028
        %3030 = vmatprep.mubr.f32.mxu0 0.0
        %3031 = vmatmul.mubr.f32.gmra.mxu0 %v2863
        %v3032 = vpop.f32.mrf.mxu0
        %v3033 = vadd.f32 %v2847, %v3032
        %v3034 = vpop.f32.mrf.mxu0
        %v3035 = vadd.f32 %v2847, %v3034
        %3036 = vmatprep.mubr.f32.mxu0 0.0
        %3037 = vmatmul.mubr.f32.gmra.mxu0 %v2866
        %v3038 = vpop.f32.mrf.mxu0
        %v3039 = vadd.f32 %v2852, %v3038
        %v3040 = vpop.f32.mrf.mxu0
        %v3041 = vadd.f32 %v2852, %v3040
        %3042 = vmatprep.mubr.f32.mxu0 0.0
        %3043 = vmatmul.mubr.f32.gmra.mxu0 %v2869
        %v3044 = vpop.f32.mrf.mxu0
        %v3045 = vadd.f32 %v2857, %v3044
        %v3046 = vpop.f32.mrf.mxu0
        %v3047 = vadd.f32 %v2857, %v3046
        %3048 = vdwg.mxu0
        %v3049 = vtanh.pop %v2938
        %v3050 = vtanh.pop %v2940
        %v3051 = vtanh.pop %v3027
        %v3052 = vtanh.pop %v3029
        %v3053 = vtanh.pop %v2944
        %v3054 = vtanh.pop %v2946
        %v3055 = vtanh.pop %v3033
        %v3056 = vtanh.pop %v3035
        %v3057 = vtanh.pop %v2950
        %v3058 = vtanh.pop %v2952
        %v3059 = vtanh.pop %v3039
        %v3060 = vtanh.pop %v3041
        %v3061 = vtanh.pop %v2956
        %v3062 = vtanh.pop %v2958
        %v3063 = vtanh.pop %v3045
        %v3064 = vtanh.pop %v3047
        %v3065 = vadd.f32 %v3049, %v2581
        %v3066 = vadd.f32 %v3050, %v2582
        %v3067 = vadd.f32 %v3051, %v2583
        %v3068 = vadd.f32 %v3052, %v2584
        %v3069 = vadd.f32 %v3053, %v2585
        %v3070 = vadd.f32 %v3054, %v2586
        %v3071 = vadd.f32 %v3055, %v2587
        %v3072 = vadd.f32 %v3056, %v2588
        %v3073 = vadd.f32 %v3057, %v2589
        %v3074 = vadd.f32 %v3058, %v2590
        %v3075 = vadd.f32 %v3059, %v2591
        %v3076 = vadd.f32 %v3060, %v2592
        %v3077 = vadd.f32 %v3061, %v2593
        %v3078 = vadd.f32 %v3062, %v2594
        %v3079 = vadd.f32 %v3063, %v2595
        %v3080 = vadd.f32 %v3064, %v2596
        %v3081 = vld [vmem:[%s7] sm:$0xff]
        %v3082 = vld [vmem:[%s7 + $0x8] sm:$0xff]
        %v3083 = vld [vmem:[%s7 + $0x10] sm:$0xff]
        %v3084 = vld [vmem:[%s7 + $0x18] sm:$0xff]
        %3086 = vset.pattern.permute.xlu0 0
        %3087 = vperm.xlu0 %3086, %v3081
        %v3088 = vpop.permute.xlu0 %3087
        %3091 = vset.pattern.permute.xlu0 0
        %3092 = vperm.xlu0 %3091, %v3082
        %v3093 = vpop.permute.xlu0 %3092
        %3096 = vset.pattern.permute.xlu0 0
        %3097 = vperm.xlu0 %3096, %v3083
        %v3098 = vpop.permute.xlu0 %3097
        %3101 = vset.pattern.permute.xlu0 0
        %3102 = vperm.xlu0 %3101, %v3084
        %v3103 = vpop.permute.xlu0 %3102
        %v3105 = vmul.f32 %v3065, %v3088
        %v3106 = vmul.f32 %v3066, %v3088
        %v3107 = vmul.f32 %v3067, %v3088
        %v3108 = vmul.f32 %v3068, %v3088
        %v3109 = vmul.f32 %v3069, %v3093
        %v3110 = vmul.f32 %v3070, %v3093
        %v3111 = vmul.f32 %v3071, %v3093
        %v3112 = vmul.f32 %v3072, %v3093
        %v3113 = vmul.f32 %v3073, %v3098
        %v3114 = vmul.f32 %v3074, %v3098
        %v3115 = vmul.f32 %v3075, %v3098
        %v3116 = vmul.f32 %v3076, %v3098
        %v3117 = vmul.f32 %v3077, %v3103
        %v3118 = vmul.f32 %v3078, %v3103
        %v3119 = vmul.f32 %v3079, %v3103
        %v3120 = vmul.f32 %v3080, %v3103
        %v3121 = vadd.f32 %v3105, %v3109
        %v3122 = vadd.f32 %v3121, %v3113
        %v3123 = vadd.f32 %v3122, %v3117
        %v3124 = vrot.slane %v3123, 4
        %v3125 = vadd.f32 %v3123, %v3124
        %v3126 = vrot.slane %v3125, 2
        %v3127 = vadd.f32 %v3125, %v3126
        %v3128 = vrot.slane %v3127, 1
        %v3129 = vadd.f32 %v3127, %v3128
        %v3130 = vadd.f32 %v3106, %v3110
        %v3131 = vadd.f32 %v3130, %v3114
        %v3132 = vadd.f32 %v3131, %v3118
        %v3133 = vrot.slane %v3132, 4
        %v3134 = vadd.f32 %v3132, %v3133
        %v3135 = vrot.slane %v3134, 2
        %v3136 = vadd.f32 %v3134, %v3135
        %v3137 = vrot.slane %v3136, 1
        %v3138 = vadd.f32 %v3136, %v3137
        %v3139 = vadd.f32 %v3107, %v3111
        %v3140 = vadd.f32 %v3139, %v3115
        %v3141 = vadd.f32 %v3140, %v3119
        %v3142 = vrot.slane %v3141, 4
        %v3143 = vadd.f32 %v3141, %v3142
        %v3144 = vrot.slane %v3143, 2
        %v3145 = vadd.f32 %v3143, %v3144
        %v3146 = vrot.slane %v3145, 1
        %v3147 = vadd.f32 %v3145, %v3146
        %v3148 = vadd.f32 %v3108, %v3112
        %v3149 = vadd.f32 %v3148, %v3116
        %v3150 = vadd.f32 %v3149, %v3120
        %v3151 = vrot.slane %v3150, 4
        %v3152 = vadd.f32 %v3150, %v3151
        %v3153 = vrot.slane %v3152, 2
        %v3154 = vadd.f32 %v3152, %v3153
        %v3155 = vrot.slane %v3154, 1
        %v3156 = vadd.f32 %v3154, %v3155
        %v3157 = vld [vmem:[#allocation2] sm:$0x1]
        %3159 = vset.pattern.permute.xlu0 0
        %3160 = vperm.xlu0 %3159, %v3157
        %v3161 = vpop.permute.xlu0 %3160
        %v3163 = vlaneseq
        %v3164 = vshrl.u32 %v3163, 7
        %v3165 = vsub.s32 0, %v3164
        %v3166 = vrot.slane %v3161, %v3165
        %v3167 = vadd.f32 %v3129, %v3166
        %v3168 = vadd.f32 %v3138, %v3166
        %v3169 = vadd.f32 %v3147, %v3166
        %v3170 = vadd.f32 %v3156, %v3166
        %v3171 = vmul.f32 %v3167, %v1856
        %v3172 = vmul.f32 %v3168, %v1860
        %v3173 = vmul.f32 %v3169, %v1864
        %v3174 = vmul.f32 %v3170, %v1868
        %v3175 = vmul.f32 %v3171, %v1924
        %v3176 = vmul.f32 %v3172, %v1928
        %v3177 = vmul.f32 %v3173, %v1932
        %v3178 = vmul.f32 %v3174, %v1936
        %v3179 = vmul.f32 %v3175, %v2008
        %v3180 = vmul.f32 %v3176, %v2012
        %v3181 = vmul.f32 %v3177, %v2016
        %v3182 = vmul.f32 %v3178, %v2020
        %v3183 = vsub.f32 1.0, %v1825
        %v3184 = vsub.f32 1.0, %v1826
        %v3187 = vlaneseq
        %v3188 = vshrl.u32 %v3187, 7
        %v3189 = vsub.s32 0, %v3188
        %v3190 = vrot.slane %v3183, %v3189
        %v3191 = vlaneseq
        %v3192 = vshrl.u32 %v3191, 7
        %v3193 = vsub.s32 4, %v3192
        %v3194 = vrot.slane %v3183, %v3193
        %v3195 = vlaneseq
        %v3196 = vshrl.u32 %v3195, 7
        %v3197 = vsub.s32 0, %v3196
        %v3198 = vrot.slane %v3184, %v3197
        %v3199 = vlaneseq
        %v3200 = vshrl.u32 %v3199, 7
        %v3201 = vsub.s32 4, %v3200
        %v3202 = vrot.slane %v3184, %v3201
        %v3207 = vmul.f32 %v3179, %v3190
        %v3208 = vmul.f32 %v3180, %v3194
        %v3209 = vmul.f32 %v3181, %v3198
        %v3210 = vmul.f32 %v3182, %v3202
        %v3211 = vlaneseq
        %v3212 = vshrl.u32 %v3211, 7
        %v3213 = vsub.s32 1, %v3212
        %v3214 = vrot.slane %v3183, %v3213
        %v3215 = vlaneseq
        %v3216 = vshrl.u32 %v3215, 7
        %v3217 = vsub.s32 5, %v3216
        %v3218 = vrot.slane %v3183, %v3217
        %v3219 = vlaneseq
        %v3220 = vshrl.u32 %v3219, 7
        %v3221 = vsub.s32 1, %v3220
        %v3222 = vrot.slane %v3184, %v3221
        %v3223 = vlaneseq
        %v3224 = vshrl.u32 %v3223, 7
        %v3225 = vsub.s32 5, %v3224
        %v3226 = vrot.slane %v3184, %v3225
        %v3231 = vmul.f32 %v3207, %v3214
        %v3232 = vmul.f32 %v3208, %v3218
        %v3233 = vmul.f32 %v3209, %v3222
        %v3234 = vmul.f32 %v3210, %v3226
        %v3235 = vlaneseq
        %v3236 = vshrl.u32 %v3235, 7
        %v3237 = vsub.s32 2, %v3236
        %v3238 = vrot.slane %v3183, %v3237
        %v3239 = vlaneseq
        %v3240 = vshrl.u32 %v3239, 7
        %v3241 = vsub.s32 6, %v3240
        %v3242 = vrot.slane %v3183, %v3241
        %v3243 = vlaneseq
        %v3244 = vshrl.u32 %v3243, 7
        %v3245 = vsub.s32 2, %v3244
        %v3246 = vrot.slane %v3184, %v3245
        %v3247 = vlaneseq
        %v3248 = vshrl.u32 %v3247, 7
        %v3249 = vsub.s32 6, %v3248
        %v3250 = vrot.slane %v3184, %v3249
        %v3255 = vmul.f32 %v3231, %v3238
        %v3256 = vmul.f32 %v3232, %v3242
        %v3257 = vmul.f32 %v3233, %v3246
        %v3258 = vmul.f32 %v3234, %v3250
        %v3263 = vcombine.low %v3255, %v3256
        %v3264 = vcombine.low %v3257, %v3258
        %v3266 = vunpack.c.l.s4 1966171168
        %v3267 = vunpack.c.0.s8 %v3266
        %v3268 = vlaneseq
        %v3269 = vshrl.u32 %v3268, 7
        %v3270 = vsub.s32 %v3267, %v3269
        %v3271 = vrot.slane %v3263, %v3270
        %v3273 = vunpack.c.l.s4 1966171168
        %v3274 = vunpack.c.0.s8 %v3273
        %v3275 = vlaneseq
        %v3276 = vshrl.u32 %v3275, 7
        %v3277 = vsub.s32 %v3274, %v3276
        %v3278 = vrot.slane %v3264, %v3277
        %v3279 = vcombine.low %v3271, %v3278
        %v3281 = vunpack.c.l.s4 1966171168
        %v3282 = vunpack.c.0.s8 %v3281
        %v3283 = vlaneseq
        %v3284 = vshrl.u32 %v3283, 7
        %v3285 = vsub.s32 %v3282, %v3284
        %v3286 = vrot.slane %v3279, %v3285
        %s3288 = scalar_lea.vmem %s343, 4 [#allocation6]
        %3289 = vst.msk [vmem:[%s3288] sm:$0xf] %vm1822, %v3286
        %s3290 = scalar_lea.vmem %s348, 32
        %v3291 = vld [vmem:[%s3290] sm:$0x77]
        %v3292 = vld [vmem:[%s3290 + $0x8] sm:$0x77]
        %v3293 = vld [vmem:[%s1] sm:$0xff]
        %v3294 = vld [vmem:[%s1 + $0x8] sm:$0xff]
        %v3295 = vld [vmem:[%s1 + $0x10] sm:$0xff]
        %v3296 = vld [vmem:[%s1 + $0x18] sm:$0xff]
        %3298 = vset.pattern.permute.xlu0 0
        %3299 = vperm.xlu0 %3298, %v3293
        %v3300 = vpop.permute.xlu0 %3299
        %3303 = vset.pattern.permute.xlu0 0
        %3304 = vperm.xlu0 %3303, %v3294
        %v3305 = vpop.permute.xlu0 %3304
        %3308 = vset.pattern.permute.xlu0 0
        %3309 = vperm.xlu0 %3308, %v3295
        %v3310 = vpop.permute.xlu0 %3309
        %3313 = vset.pattern.permute.xlu0 0
        %3314 = vperm.xlu0 %3313, %v3296
        %v3315 = vpop.permute.xlu0 %3314
        %v3319 = vlaneseq
        %v3320 = vshrl.u32 %v3319, 7
        %v3321 = vsub.s32 0, %v3320
        %v3322 = vrot.slane %v3291, %v3321
        %v3323 = vlaneseq
        %v3324 = vshrl.u32 %v3323, 7
        %v3325 = vsub.s32 4, %v3324
        %v3326 = vrot.slane %v3291, %v3325
        %v3327 = vlaneseq
        %v3328 = vshrl.u32 %v3327, 7
        %v3329 = vsub.s32 0, %v3328
        %v3330 = vrot.slane %v3292, %v3329
        %v3331 = vlaneseq
        %v3332 = vshrl.u32 %v3331, 7
        %v3333 = vsub.s32 4, %v3332
        %v3334 = vrot.slane %v3292, %v3333
        %v3339 = vlaneseq
        %v3340 = vshrl.u32 %v3339, 7
        %v3341 = vsub.s32 0, %v3340
        %v3342 = vrot.slane %v3322, %v3341
        %v3343 = vlaneseq
        %v3344 = vshrl.u32 %v3343, 7
        %v3345 = vsub.s32 0, %v3344
        %v3346 = vrot.slane %v3326, %v3345
        %v3347 = vlaneseq
        %v3348 = vshrl.u32 %v3347, 7
        %v3349 = vsub.s32 0, %v3348
        %v3350 = vrot.slane %v3330, %v3349
        %v3351 = vlaneseq
        %v3352 = vshrl.u32 %v3351, 7
        %v3353 = vsub.s32 0, %v3352
        %v3354 = vrot.slane %v3334, %v3353
        %v3355 = vmul.f32 %v3300, %v3342
        %v3356 = vmul.f32 %v3300, %v3346
        %v3357 = vmul.f32 %v3300, %v3350
        %v3358 = vmul.f32 %v3300, %v3354
        %v3359 = vmul.f32 %v3305, %v3342
        %v3360 = vmul.f32 %v3305, %v3346
        %v3361 = vmul.f32 %v3305, %v3350
        %v3362 = vmul.f32 %v3305, %v3354
        %v3363 = vmul.f32 %v3310, %v3342
        %v3364 = vmul.f32 %v3310, %v3346
        %v3365 = vmul.f32 %v3310, %v3350
        %v3366 = vmul.f32 %v3310, %v3354
        %v3367 = vmul.f32 %v3315, %v3342
        %v3368 = vmul.f32 %v3315, %v3346
        %v3369 = vmul.f32 %v3315, %v3350
        %v3370 = vmul.f32 %v3315, %v3354
        %3371 = vset.pattern.permute.xlu0 1
        %3372 = vperm.xlu0 %3371, %v3293
        %v3373 = vpop.permute.xlu0 %3372
        %3375 = vset.pattern.permute.xlu0 1
        %3376 = vperm.xlu0 %3375, %v3294
        %v3377 = vpop.permute.xlu0 %3376
        %3379 = vset.pattern.permute.xlu0 1
        %3380 = vperm.xlu0 %3379, %v3295
        %v3381 = vpop.permute.xlu0 %3380
        %3383 = vset.pattern.permute.xlu0 1
        %3384 = vperm.xlu0 %3383, %v3296
        %v3385 = vpop.permute.xlu0 %3384
        %v3387 = vlaneseq
        %v3388 = vshrl.u32 %v3387, 7
        %v3389 = vsub.s32 1, %v3388
        %v3390 = vrot.slane %v3291, %v3389
        %v3391 = vlaneseq
        %v3392 = vshrl.u32 %v3391, 7
        %v3393 = vsub.s32 5, %v3392
        %v3394 = vrot.slane %v3291, %v3393
        %v3395 = vlaneseq
        %v3396 = vshrl.u32 %v3395, 7
        %v3397 = vsub.s32 1, %v3396
        %v3398 = vrot.slane %v3292, %v3397
        %v3399 = vlaneseq
        %v3400 = vshrl.u32 %v3399, 7
        %v3401 = vsub.s32 5, %v3400
        %v3402 = vrot.slane %v3292, %v3401
        %v3407 = vlaneseq
        %v3408 = vshrl.u32 %v3407, 7
        %v3409 = vsub.s32 1, %v3408
        %v3410 = vrot.slane %v3390, %v3409
        %v3411 = vlaneseq
        %v3412 = vshrl.u32 %v3411, 7
        %v3413 = vsub.s32 1, %v3412
        %v3414 = vrot.slane %v3394, %v3413
        %v3415 = vlaneseq
        %v3416 = vshrl.u32 %v3415, 7
        %v3417 = vsub.s32 1, %v3416
        %v3418 = vrot.slane %v3398, %v3417
        %v3419 = vlaneseq
        %v3420 = vshrl.u32 %v3419, 7
        %v3421 = vsub.s32 1, %v3420
        %v3422 = vrot.slane %v3402, %v3421
        %v3423 = vmul.f32 %v3373, %v3410
        %v3424 = vmul.f32 %v3373, %v3414
        %v3425 = vmul.f32 %v3373, %v3418
        %v3426 = vmul.f32 %v3373, %v3422
        %v3427 = vmul.f32 %v3377, %v3410
        %v3428 = vmul.f32 %v3377, %v3414
        %v3429 = vmul.f32 %v3377, %v3418
        %v3430 = vmul.f32 %v3377, %v3422
        %v3431 = vmul.f32 %v3381, %v3410
        %v3432 = vmul.f32 %v3381, %v3414
        %v3433 = vmul.f32 %v3381, %v3418
        %v3434 = vmul.f32 %v3381, %v3422
        %v3435 = vmul.f32 %v3385, %v3410
        %v3436 = vmul.f32 %v3385, %v3414
        %v3437 = vmul.f32 %v3385, %v3418
        %v3438 = vmul.f32 %v3385, %v3422
        %v3439 = vadd.f32 %v3355, %v3423
        %v3440 = vadd.f32 %v3356, %v3424
        %v3441 = vadd.f32 %v3357, %v3425
        %v3442 = vadd.f32 %v3358, %v3426
        %v3443 = vadd.f32 %v3359, %v3427
        %v3444 = vadd.f32 %v3360, %v3428
        %v3445 = vadd.f32 %v3361, %v3429
        %v3446 = vadd.f32 %v3362, %v3430
        %v3447 = vadd.f32 %v3363, %v3431
        %v3448 = vadd.f32 %v3364, %v3432
        %v3449 = vadd.f32 %v3365, %v3433
        %v3450 = vadd.f32 %v3366, %v3434
        %v3451 = vadd.f32 %v3367, %v3435
        %v3452 = vadd.f32 %v3368, %v3436
        %v3453 = vadd.f32 %v3369, %v3437
        %v3454 = vadd.f32 %v3370, %v3438
        %3455 = vset.pattern.permute.xlu0 2
        %3456 = vperm.xlu0 %3455, %v3293
        %v3457 = vpop.permute.xlu0 %3456
        %3459 = vset.pattern.permute.xlu0 2
        %3460 = vperm.xlu0 %3459, %v3294
        %v3461 = vpop.permute.xlu0 %3460
        %3463 = vset.pattern.permute.xlu0 2
        %3464 = vperm.xlu0 %3463, %v3295
        %v3465 = vpop.permute.xlu0 %3464
        %3467 = vset.pattern.permute.xlu0 2
        %3468 = vperm.xlu0 %3467, %v3296
        %v3469 = vpop.permute.xlu0 %3468
        %v3471 = vlaneseq
        %v3472 = vshrl.u32 %v3471, 7
        %v3473 = vsub.s32 2, %v3472
        %v3474 = vrot.slane %v3291, %v3473
        %v3475 = vlaneseq
        %v3476 = vshrl.u32 %v3475, 7
        %v3477 = vsub.s32 6, %v3476
        %v3478 = vrot.slane %v3291, %v3477
        %v3479 = vlaneseq
        %v3480 = vshrl.u32 %v3479, 7
        %v3481 = vsub.s32 2, %v3480
        %v3482 = vrot.slane %v3292, %v3481
        %v3483 = vlaneseq
        %v3484 = vshrl.u32 %v3483, 7
        %v3485 = vsub.s32 6, %v3484
        %v3486 = vrot.slane %v3292, %v3485
        %v3491 = vlaneseq
        %v3492 = vshrl.u32 %v3491, 7
        %v3493 = vsub.s32 2, %v3492
        %v3494 = vrot.slane %v3474, %v3493
        %v3495 = vlaneseq
        %v3496 = vshrl.u32 %v3495, 7
        %v3497 = vsub.s32 2, %v3496
        %v3498 = vrot.slane %v3478, %v3497
        %v3499 = vlaneseq
        %v3500 = vshrl.u32 %v3499, 7
        %v3501 = vsub.s32 2, %v3500
        %v3502 = vrot.slane %v3482, %v3501
        %v3503 = vlaneseq
        %v3504 = vshrl.u32 %v3503, 7
        %v3505 = vsub.s32 2, %v3504
        %v3506 = vrot.slane %v3486, %v3505
        %v3507 = vmul.f32 %v3457, %v3494
        %v3508 = vmul.f32 %v3457, %v3498
        %v3509 = vmul.f32 %v3457, %v3502
        %v3510 = vmul.f32 %v3457, %v3506
        %v3511 = vmul.f32 %v3461, %v3494
        %v3512 = vmul.f32 %v3461, %v3498
        %v3513 = vmul.f32 %v3461, %v3502
        %v3514 = vmul.f32 %v3461, %v3506
        %v3515 = vmul.f32 %v3465, %v3494
        %v3516 = vmul.f32 %v3465, %v3498
        %v3517 = vmul.f32 %v3465, %v3502
        %v3518 = vmul.f32 %v3465, %v3506
        %v3519 = vmul.f32 %v3469, %v3494
        %v3520 = vmul.f32 %v3469, %v3498
        %v3521 = vmul.f32 %v3469, %v3502
        %v3522 = vmul.f32 %v3469, %v3506
        %v3523 = vadd.f32 %v3439, %v3507
        %v3524 = vadd.f32 %v3440, %v3508
        %v3525 = vadd.f32 %v3441, %v3509
        %v3526 = vadd.f32 %v3442, %v3510
        %v3527 = vadd.f32 %v3443, %v3511
        %v3528 = vadd.f32 %v3444, %v3512
        %v3529 = vadd.f32 %v3445, %v3513
        %v3530 = vadd.f32 %v3446, %v3514
        %v3531 = vadd.f32 %v3447, %v3515
        %v3532 = vadd.f32 %v3448, %v3516
        %v3533 = vadd.f32 %v3449, %v3517
        %v3534 = vadd.f32 %v3450, %v3518
        %v3535 = vadd.f32 %v3451, %v3519
        %v3536 = vadd.f32 %v3452, %v3520
        %v3537 = vadd.f32 %v3453, %v3521
        %v3538 = vadd.f32 %v3454, %v3522
        %v3539 = vld [vmem:[%s2] sm:$0xff]
        %v3540 = vld [vmem:[%s2 + $0x8] sm:$0xff]
        %v3541 = vld [vmem:[%s2 + $0x10] sm:$0xff]
        %v3542 = vld [vmem:[%s2 + $0x18] sm:$0xff]
        %3544 = vset.pattern.permute.xlu0 0
        %3545 = vperm.xlu0 %3544, %v3539
        %v3546 = vpop.permute.xlu0 %3545
        %3549 = vset.pattern.permute.xlu0 0
        %3550 = vperm.xlu0 %3549, %v3540
        %v3551 = vpop.permute.xlu0 %3550
        %3554 = vset.pattern.permute.xlu0 0
        %3555 = vperm.xlu0 %3554, %v3541
        %v3556 = vpop.permute.xlu0 %3555
        %3559 = vset.pattern.permute.xlu0 0
        %3560 = vperm.xlu0 %3559, %v3542
        %v3561 = vpop.permute.xlu0 %3560
        %v3563 = vadd.f32 %v3523, %v3546
        %v3564 = vadd.f32 %v3524, %v3546
        %v3565 = vadd.f32 %v3525, %v3546
        %v3566 = vadd.f32 %v3526, %v3546
        %v3567 = vadd.f32 %v3527, %v3551
        %v3568 = vadd.f32 %v3528, %v3551
        %v3569 = vadd.f32 %v3529, %v3551
        %v3570 = vadd.f32 %v3530, %v3551
        %v3571 = vadd.f32 %v3531, %v3556
        %v3572 = vadd.f32 %v3532, %v3556
        %v3573 = vadd.f32 %v3533, %v3556
        %v3574 = vadd.f32 %v3534, %v3556
        %v3575 = vadd.f32 %v3535, %v3561
        %v3576 = vadd.f32 %v3536, %v3561
        %v3577 = vadd.f32 %v3537, %v3561
        %v3578 = vadd.f32 %v3538, %v3561
        %v3579 = vld [vmem:[%s3] sm:$0xff]
        %v3580 = vld [vmem:[%s3 + $0x8] sm:$0xff]
        %v3581 = vld [vmem:[%s3 + $0x10] sm:$0xff]
        %v3582 = vld [vmem:[%s3 + $0x18] sm:$0xff]
        %v3583 = vld [vmem:[%s4] sm:$0xff]
        %v3584 = vld [vmem:[%s4 + $0x8] sm:$0xff]
        %v3585 = vld [vmem:[%s4 + $0x10] sm:$0xff]
        %v3586 = vld [vmem:[%s4 + $0x18] sm:$0xff]
        %3588 = vset.pattern.permute.xlu0 0
        %3589 = vperm.xlu0 %3588, %v3583
        %v3590 = vpop.permute.xlu0 %3589
        %3593 = vset.pattern.permute.xlu0 0
        %3594 = vperm.xlu0 %3593, %v3584
        %v3595 = vpop.permute.xlu0 %3594
        %3598 = vset.pattern.permute.xlu0 0
        %3599 = vperm.xlu0 %3598, %v3585
        %v3600 = vpop.permute.xlu0 %3599
        %3603 = vset.pattern.permute.xlu0 0
        %3604 = vperm.xlu0 %3603, %v3586
        %v3605 = vpop.permute.xlu0 %3604
        %v3608 = vsel %vm667, %v3579, 0
        %v3611 = vsel %vm667, %v3580, 0
        %v3614 = vsel %vm667, %v3581, 0
        %v3617 = vsel %vm667, %v3582, 0
        %3619 = vmatprep.subr.mxu0 0.0
        %3620 = vmatpush1.msra.mxu0 0.0
        %3621 = vmatprep.subr.mxu0 0.0
        %3622 = vmatpush1.msra.mxu0 0.0
        %3623 = vmatprep.subr.mxu0 0.0
        %3624 = vmatpush1.msra.mxu0 0.0
        %3625 = vmatprep.subr.mxu0 0.0
        %3626 = vmatpush1.msra.mxu0 0.0
        %3627 = vmatprep.subr.mxu0 0.0
        %3628 = vmatpush1.msra.mxu0 0.0
        %3629 = vmatprep.subr.mxu0 0.0
        %3630 = vmatpush1.msra.mxu0 0.0
        %3631 = vmatprep.subr.mxu0 0.0
        %3632 = vmatpush1.msra.mxu0 0.0
        %3633 = vmatprep.subr.mxu0 0.0
        %3634 = vmatpush1.msra.mxu0 0.0
        %3635 = vmatprep.subr.mxu0 0.0
        %3636 = vmatpush1.msra.mxu0 0.0
        %3637 = vmatprep.subr.mxu0 0.0
        %3638 = vmatpush1.msra.mxu0 0.0
        %3639 = vmatprep.subr.mxu0 0.0
        %3640 = vmatpush1.msra.mxu0 0.0
        %3641 = vmatprep.subr.mxu0 0.0
        %3642 = vmatpush1.msra.mxu0 0.0
        %3643 = vmatprep.subr.mxu0 %v3576
        %3644 = vmatpush1.msra.mxu0 %v3575
        %3645 = vmatprep.subr.mxu0 %v3572
        %3646 = vmatpush1.msra.mxu0 %v3571
        %3647 = vmatprep.subr.mxu0 %v3568
        %3648 = vmatpush1.msra.mxu0 %v3567
        %3649 = vmatprep.subr.mxu0 %v3564
        %3650 = vmatpush1.msra.mxu0 %v3563
        %3651 = vmatprep.subr.mxu0 0.0
        %3652 = vmatpush2.msra.mxu0 0.0
        %3653 = vmatprep.subr.mxu0 0.0
        %3654 = vmatpush2.msra.mxu0 0.0
        %3655 = vmatprep.subr.mxu0 0.0
        %3656 = vmatpush2.msra.mxu0 0.0
        %3657 = vmatprep.subr.mxu0 0.0
        %3658 = vmatpush2.msra.mxu0 0.0
        %3659 = vmatprep.subr.mxu0 0.0
        %3660 = vmatpush2.msra.mxu0 0.0
        %3661 = vmatprep.subr.mxu0 0.0
        %3662 = vmatpush2.msra.mxu0 0.0
        %3663 = vmatprep.subr.mxu0 0.0
        %3664 = vmatpush2.msra.mxu0 0.0
        %3665 = vmatprep.subr.mxu0 0.0
        %3666 = vmatpush2.msra.mxu0 0.0
        %3667 = vmatprep.subr.mxu0 0.0
        %3668 = vmatpush2.msra.mxu0 0.0
        %3669 = vmatprep.subr.mxu0 0.0
        %3670 = vmatpush2.msra.mxu0 0.0
        %3671 = vmatprep.subr.mxu0 0.0
        %3672 = vmatpush2.msra.mxu0 0.0
        %3673 = vmatprep.subr.mxu0 0.0
        %3674 = vmatpush2.msra.mxu0 0.0
        %3675 = vmatprep.subr.mxu0 0.0
        %3676 = vmatpush2.msra.mxu0 0.0
        %3677 = vmatprep.subr.mxu0 0.0
        %3678 = vmatpush2.msra.mxu0 0.0
        %3679 = vmatprep.subr.mxu0 0.0
        %3680 = vmatpush2.msra.mxu0 0.0
        %3681 = vmatprep.subr.mxu0 0.0
        %3682 = vmatpush2.msra.mxu0 0.0
        %3683 = vmatprep.mubr.f32.mxu0 0.0
        %3684 = vmatmul.mubr.f32.gmra.mxu0 %v3608
        %v3685 = vpop.f32.mrf.mxu0
        %v3686 = vadd.f32 %v3590, %v3685
        %v3687 = vpop.f32.mrf.mxu0
        %v3688 = vadd.f32 %v3590, %v3687
        %3689 = vmatprep.mubr.f32.mxu0 0.0
        %3690 = vmatmul.mubr.f32.gmra.mxu0 %v3611
        %v3691 = vpop.f32.mrf.mxu0
        %v3692 = vadd.f32 %v3595, %v3691
        %v3693 = vpop.f32.mrf.mxu0
        %v3694 = vadd.f32 %v3595, %v3693
        %3695 = vmatprep.mubr.f32.mxu0 0.0
        %3696 = vmatmul.mubr.f32.gmra.mxu0 %v3614
        %v3697 = vpop.f32.mrf.mxu0
        %v3698 = vadd.f32 %v3600, %v3697
        %v3699 = vpop.f32.mrf.mxu0
        %v3700 = vadd.f32 %v3600, %v3699
        %3701 = vmatprep.mubr.f32.mxu0 0.0
        %3702 = vmatmul.mubr.f32.gmra.mxu0 %v3617
        %v3703 = vpop.f32.mrf.mxu0
        %v3704 = vadd.f32 %v3605, %v3703
        %v3705 = vpop.f32.mrf.mxu0
        %v3706 = vadd.f32 %v3605, %v3705
        %3707 = vdwg.mxu0
        %3708 = vmatprep.subr.mxu0 0.0
        %3709 = vmatpush1.msra.mxu0 0.0
        %3710 = vmatprep.subr.mxu0 0.0
        %3711 = vmatpush1.msra.mxu0 0.0
        %3712 = vmatprep.subr.mxu0 0.0
        %3713 = vmatpush1.msra.mxu0 0.0
        %3714 = vmatprep.subr.mxu0 0.0
        %3715 = vmatpush1.msra.mxu0 0.0
        %3716 = vmatprep.subr.mxu0 0.0
        %3717 = vmatpush1.msra.mxu0 0.0
        %3718 = vmatprep.subr.mxu0 0.0
        %3719 = vmatpush1.msra.mxu0 0.0
        %3720 = vmatprep.subr.mxu0 0.0
        %3721 = vmatpush1.msra.mxu0 0.0
        %3722 = vmatprep.subr.mxu0 0.0
        %3723 = vmatpush1.msra.mxu0 0.0
        %3724 = vmatprep.subr.mxu0 0.0
        %3725 = vmatpush1.msra.mxu0 0.0
        %3726 = vmatprep.subr.mxu0 0.0
        %3727 = vmatpush1.msra.mxu0 0.0
        %3728 = vmatprep.subr.mxu0 0.0
        %3729 = vmatpush1.msra.mxu0 0.0
        %3730 = vmatprep.subr.mxu0 0.0
        %3731 = vmatpush1.msra.mxu0 0.0
        %3732 = vmatprep.subr.mxu0 %v3578
        %3733 = vmatpush1.msra.mxu0 %v3577
        %3734 = vmatprep.subr.mxu0 %v3574
        %3735 = vmatpush1.msra.mxu0 %v3573
        %3736 = vmatprep.subr.mxu0 %v3570
        %3737 = vmatpush1.msra.mxu0 %v3569
        %3738 = vmatprep.subr.mxu0 %v3566
        %3739 = vmatpush1.msra.mxu0 %v3565
        %3740 = vmatprep.subr.mxu0 0.0
        %3741 = vmatpush2.msra.mxu0 0.0
        %3742 = vmatprep.subr.mxu0 0.0
        %3743 = vmatpush2.msra.mxu0 0.0
        %3744 = vmatprep.subr.mxu0 0.0
        %3745 = vmatpush2.msra.mxu0 0.0
        %3746 = vmatprep.subr.mxu0 0.0
        %3747 = vmatpush2.msra.mxu0 0.0
        %3748 = vmatprep.subr.mxu0 0.0
        %3749 = vmatpush2.msra.mxu0 0.0
        %3750 = vmatprep.subr.mxu0 0.0
        %3751 = vmatpush2.msra.mxu0 0.0
        %3752 = vmatprep.subr.mxu0 0.0
        %3753 = vmatpush2.msra.mxu0 0.0
        %3754 = vmatprep.subr.mxu0 0.0
        %3755 = vmatpush2.msra.mxu0 0.0
        %3756 = vmatprep.subr.mxu0 0.0
        %3757 = vmatpush2.msra.mxu0 0.0
        %3758 = vmatprep.subr.mxu0 0.0
        %3759 = vmatpush2.msra.mxu0 0.0
        %3760 = vmatprep.subr.mxu0 0.0
        %3761 = vmatpush2.msra.mxu0 0.0
        %3762 = vmatprep.subr.mxu0 0.0
        %3763 = vmatpush2.msra.mxu0 0.0
        %3764 = vmatprep.subr.mxu0 0.0
        %3765 = vmatpush2.msra.mxu0 0.0
        %3766 = vmatprep.subr.mxu0 0.0
        %3767 = vmatpush2.msra.mxu0 0.0
        %3768 = vmatprep.subr.mxu0 0.0
        %3769 = vmatpush2.msra.mxu0 0.0
        %3770 = vmatprep.subr.mxu0 0.0
        %3771 = vmatpush2.msra.mxu0 0.0
        %3772 = vmatprep.mubr.f32.mxu0 0.0
        %3773 = vmatmul.mubr.f32.gmra.mxu0 %v3608
        %v3774 = vpop.f32.mrf.mxu0
        %v3775 = vadd.f32 %v3590, %v3774
        %v3776 = vpop.f32.mrf.mxu0
        %v3777 = vadd.f32 %v3590, %v3776
        %3778 = vmatprep.mubr.f32.mxu0 0.0
        %3779 = vmatmul.mubr.f32.gmra.mxu0 %v3611
        %v3780 = vpop.f32.mrf.mxu0
        %v3781 = vadd.f32 %v3595, %v3780
        %v3782 = vpop.f32.mrf.mxu0
        %v3783 = vadd.f32 %v3595, %v3782
        %3784 = vmatprep.mubr.f32.mxu0 0.0
        %3785 = vmatmul.mubr.f32.gmra.mxu0 %v3614
        %v3786 = vpop.f32.mrf.mxu0
        %v3787 = vadd.f32 %v3600, %v3786
        %v3788 = vpop.f32.mrf.mxu0
        %v3789 = vadd.f32 %v3600, %v3788
        %3790 = vmatprep.mubr.f32.mxu0 0.0
        %3791 = vmatmul.mubr.f32.gmra.mxu0 %v3617
        %v3792 = vpop.f32.mrf.mxu0
        %v3793 = vadd.f32 %v3605, %v3792
        %v3794 = vpop.f32.mrf.mxu0
        %v3795 = vadd.f32 %v3605, %v3794
        %3796 = vdwg.mxu0
        %v3797 = vtanh.pop %v3686
        %v3798 = vtanh.pop %v3688
        %v3799 = vtanh.pop %v3775
        %v3800 = vtanh.pop %v3777
        %v3801 = vtanh.pop %v3692
        %v3802 = vtanh.pop %v3694
        %v3803 = vtanh.pop %v3781
        %v3804 = vtanh.pop %v3783
        %v3805 = vtanh.pop %v3698
        %v3806 = vtanh.pop %v3700
        %v3807 = vtanh.pop %v3787
        %v3808 = vtanh.pop %v3789
        %v3809 = vtanh.pop %v3704
        %v3810 = vtanh.pop %v3706
        %v3811 = vtanh.pop %v3793
        %v3812 = vtanh.pop %v3795
        %v3813 = vld [vmem:[#allocation3] sm:$0xff]
        %v3814 = vld [vmem:[#allocation3 + $0x8] sm:$0xff]
        %v3815 = vld [vmem:[#allocation3 + $0x10] sm:$0xff]
        %v3816 = vld [vmem:[#allocation3 + $0x18] sm:$0xff]
        %v3817 = vld [vmem:[%s6] sm:$0xff]
        %v3818 = vld [vmem:[%s6 + $0x8] sm:$0xff]
        %v3819 = vld [vmem:[%s6 + $0x10] sm:$0xff]
        %v3820 = vld [vmem:[%s6 + $0x18] sm:$0xff]
        %3822 = vset.pattern.permute.xlu0 0
        %3823 = vperm.xlu0 %3822, %v3817
        %v3824 = vpop.permute.xlu0 %3823
        %3827 = vset.pattern.permute.xlu0 0
        %3828 = vperm.xlu0 %3827, %v3818
        %v3829 = vpop.permute.xlu0 %3828
        %3832 = vset.pattern.permute.xlu0 0
        %3833 = vperm.xlu0 %3832, %v3819
        %v3834 = vpop.permute.xlu0 %3833
        %3837 = vset.pattern.permute.xlu0 0
        %3838 = vperm.xlu0 %3837, %v3820
        %v3839 = vpop.permute.xlu0 %3838
        %v3842 = vsel %vm667, %v3813, 0
        %v3845 = vsel %vm667, %v3814, 0
        %v3848 = vsel %vm667, %v3815, 0
        %v3851 = vsel %vm667, %v3816, 0
        %3853 = vmatprep.subr.mxu0 0.0
        %3854 = vmatpush1.msra.mxu0 0.0
        %3855 = vmatprep.subr.mxu0 0.0
        %3856 = vmatpush1.msra.mxu0 0.0
        %3857 = vmatprep.subr.mxu0 0.0
        %3858 = vmatpush1.msra.mxu0 0.0
        %3859 = vmatprep.subr.mxu0 0.0
        %3860 = vmatpush1.msra.mxu0 0.0
        %3861 = vmatprep.subr.mxu0 0.0
        %3862 = vmatpush1.msra.mxu0 0.0
        %3863 = vmatprep.subr.mxu0 0.0
        %3864 = vmatpush1.msra.mxu0 0.0
        %3865 = vmatprep.subr.mxu0 0.0
        %3866 = vmatpush1.msra.mxu0 0.0
        %3867 = vmatprep.subr.mxu0 0.0
        %3868 = vmatpush1.msra.mxu0 0.0
        %3869 = vmatprep.subr.mxu0 0.0
        %3870 = vmatpush1.msra.mxu0 0.0
        %3871 = vmatprep.subr.mxu0 0.0
        %3872 = vmatpush1.msra.mxu0 0.0
        %3873 = vmatprep.subr.mxu0 0.0
        %3874 = vmatpush1.msra.mxu0 0.0
        %3875 = vmatprep.subr.mxu0 0.0
        %3876 = vmatpush1.msra.mxu0 0.0
        %3877 = vmatprep.subr.mxu0 %v3810
        %3878 = vmatpush1.msra.mxu0 %v3809
        %3879 = vmatprep.subr.mxu0 %v3806
        %3880 = vmatpush1.msra.mxu0 %v3805
        %3881 = vmatprep.subr.mxu0 %v3802
        %3882 = vmatpush1.msra.mxu0 %v3801
        %3883 = vmatprep.subr.mxu0 %v3798
        %3884 = vmatpush1.msra.mxu0 %v3797
        %3885 = vmatprep.subr.mxu0 0.0
        %3886 = vmatpush2.msra.mxu0 0.0
        %3887 = vmatprep.subr.mxu0 0.0
        %3888 = vmatpush2.msra.mxu0 0.0
        %3889 = vmatprep.subr.mxu0 0.0
        %3890 = vmatpush2.msra.mxu0 0.0
        %3891 = vmatprep.subr.mxu0 0.0
        %3892 = vmatpush2.msra.mxu0 0.0
        %3893 = vmatprep.subr.mxu0 0.0
        %3894 = vmatpush2.msra.mxu0 0.0
        %3895 = vmatprep.subr.mxu0 0.0
        %3896 = vmatpush2.msra.mxu0 0.0
        %3897 = vmatprep.subr.mxu0 0.0
        %3898 = vmatpush2.msra.mxu0 0.0
        %3899 = vmatprep.subr.mxu0 0.0
        %3900 = vmatpush2.msra.mxu0 0.0
        %3901 = vmatprep.subr.mxu0 0.0
        %3902 = vmatpush2.msra.mxu0 0.0
        %3903 = vmatprep.subr.mxu0 0.0
        %3904 = vmatpush2.msra.mxu0 0.0
        %3905 = vmatprep.subr.mxu0 0.0
        %3906 = vmatpush2.msra.mxu0 0.0
        %3907 = vmatprep.subr.mxu0 0.0
        %3908 = vmatpush2.msra.mxu0 0.0
        %3909 = vmatprep.subr.mxu0 0.0
        %3910 = vmatpush2.msra.mxu0 0.0
        %3911 = vmatprep.subr.mxu0 0.0
        %3912 = vmatpush2.msra.mxu0 0.0
        %3913 = vmatprep.subr.mxu0 0.0
        %3914 = vmatpush2.msra.mxu0 0.0
        %3915 = vmatprep.subr.mxu0 0.0
        %3916 = vmatpush2.msra.mxu0 0.0
        %3917 = vmatprep.mubr.f32.mxu0 0.0
        %3918 = vmatmul.mubr.f32.gmra.mxu0 %v3842
        %v3919 = vpop.f32.mrf.mxu0
        %v3920 = vadd.f32 %v3824, %v3919
        %v3921 = vpop.f32.mrf.mxu0
        %v3922 = vadd.f32 %v3824, %v3921
        %3923 = vmatprep.mubr.f32.mxu0 0.0
        %3924 = vmatmul.mubr.f32.gmra.mxu0 %v3845
        %v3925 = vpop.f32.mrf.mxu0
        %v3926 = vadd.f32 %v3829, %v3925
        %v3927 = vpop.f32.mrf.mxu0
        %v3928 = vadd.f32 %v3829, %v3927
        %3929 = vmatprep.mubr.f32.mxu0 0.0
        %3930 = vmatmul.mubr.f32.gmra.mxu0 %v3848
        %v3931 = vpop.f32.mrf.mxu0
        %v3932 = vadd.f32 %v3834, %v3931
        %v3933 = vpop.f32.mrf.mxu0
        %v3934 = vadd.f32 %v3834, %v3933
        %3935 = vmatprep.mubr.f32.mxu0 0.0
        %3936 = vmatmul.mubr.f32.gmra.mxu0 %v3851
        %v3937 = vpop.f32.mrf.mxu0
        %v3938 = vadd.f32 %v3839, %v3937
        %v3939 = vpop.f32.mrf.mxu0
        %v3940 = vadd.f32 %v3839, %v3939
        %3941 = vdwg.mxu0
        %3942 = vmatprep.subr.mxu0 0.0
        %3943 = vmatpush1.msra.mxu0 0.0
        %3944 = vmatprep.subr.mxu0 0.0
        %3945 = vmatpush1.msra.mxu0 0.0
        %3946 = vmatprep.subr.mxu0 0.0
        %3947 = vmatpush1.msra.mxu0 0.0
        %3948 = vmatprep.subr.mxu0 0.0
        %3949 = vmatpush1.msra.mxu0 0.0
        %3950 = vmatprep.subr.mxu0 0.0
        %3951 = vmatpush1.msra.mxu0 0.0
        %3952 = vmatprep.subr.mxu0 0.0
        %3953 = vmatpush1.msra.mxu0 0.0
        %3954 = vmatprep.subr.mxu0 0.0
        %3955 = vmatpush1.msra.mxu0 0.0
        %3956 = vmatprep.subr.mxu0 0.0
        %3957 = vmatpush1.msra.mxu0 0.0
        %3958 = vmatprep.subr.mxu0 0.0
        %3959 = vmatpush1.msra.mxu0 0.0
        %3960 = vmatprep.subr.mxu0 0.0
        %3961 = vmatpush1.msra.mxu0 0.0
        %3962 = vmatprep.subr.mxu0 0.0
        %3963 = vmatpush1.msra.mxu0 0.0
        %3964 = vmatprep.subr.mxu0 0.0
        %3965 = vmatpush1.msra.mxu0 0.0
        %3966 = vmatprep.subr.mxu0 %v3812
        %3967 = vmatpush1.msra.mxu0 %v3811
        %3968 = vmatprep.subr.mxu0 %v3808
        %3969 = vmatpush1.msra.mxu0 %v3807
        %3970 = vmatprep.subr.mxu0 %v3804
        %3971 = vmatpush1.msra.mxu0 %v3803
        %3972 = vmatprep.subr.mxu0 %v3800
        %3973 = vmatpush1.msra.mxu0 %v3799
        %3974 = vmatprep.subr.mxu0 0.0
        %3975 = vmatpush2.msra.mxu0 0.0
        %3976 = vmatprep.subr.mxu0 0.0
        %3977 = vmatpush2.msra.mxu0 0.0
        %3978 = vmatprep.subr.mxu0 0.0
        %3979 = vmatpush2.msra.mxu0 0.0
        %3980 = vmatprep.subr.mxu0 0.0
        %3981 = vmatpush2.msra.mxu0 0.0
        %3982 = vmatprep.subr.mxu0 0.0
        %3983 = vmatpush2.msra.mxu0 0.0
        %3984 = vmatprep.subr.mxu0 0.0
        %3985 = vmatpush2.msra.mxu0 0.0
        %3986 = vmatprep.subr.mxu0 0.0
        %3987 = vmatpush2.msra.mxu0 0.0
        %3988 = vmatprep.subr.mxu0 0.0
        %3989 = vmatpush2.msra.mxu0 0.0
        %3990 = vmatprep.subr.mxu0 0.0
        %3991 = vmatpush2.msra.mxu0 0.0
        %3992 = vmatprep.subr.mxu0 0.0
        %3993 = vmatpush2.msra.mxu0 0.0
        %3994 = vmatprep.subr.mxu0 0.0
        %3995 = vmatpush2.msra.mxu0 0.0
        %3996 = vmatprep.subr.mxu0 0.0
        %3997 = vmatpush2.msra.mxu0 0.0
        %3998 = vmatprep.subr.mxu0 0.0
        %3999 = vmatpush2.msra.mxu0 0.0
        %4000 = vmatprep.subr.mxu0 0.0
        %4001 = vmatpush2.msra.mxu0 0.0
        %4002 = vmatprep.subr.mxu0 0.0
        %4003 = vmatpush2.msra.mxu0 0.0
        %4004 = vmatprep.subr.mxu0 0.0
        %4005 = vmatpush2.msra.mxu0 0.0
        %4006 = vmatprep.mubr.f32.mxu0 0.0
        %4007 = vmatmul.mubr.f32.gmra.mxu0 %v3842
        %v4008 = vpop.f32.mrf.mxu0
        %v4009 = vadd.f32 %v3824, %v4008
        %v4010 = vpop.f32.mrf.mxu0
        %v4011 = vadd.f32 %v3824, %v4010
        %4012 = vmatprep.mubr.f32.mxu0 0.0
        %4013 = vmatmul.mubr.f32.gmra.mxu0 %v3845
        %v4014 = vpop.f32.mrf.mxu0
        %v4015 = vadd.f32 %v3829, %v4014
        %v4016 = vpop.f32.mrf.mxu0
        %v4017 = vadd.f32 %v3829, %v4016
        %4018 = vmatprep.mubr.f32.mxu0 0.0
        %4019 = vmatmul.mubr.f32.gmra.mxu0 %v3848
        %v4020 = vpop.f32.mrf.mxu0
        %v4021 = vadd.f32 %v3834, %v4020
        %v4022 = vpop.f32.mrf.mxu0
        %v4023 = vadd.f32 %v3834, %v4022
        %4024 = vmatprep.mubr.f32.mxu0 0.0
        %4025 = vmatmul.mubr.f32.gmra.mxu0 %v3851
        %v4026 = vpop.f32.mrf.mxu0
        %v4027 = vadd.f32 %v3839, %v4026
        %v4028 = vpop.f32.mrf.mxu0
        %v4029 = vadd.f32 %v3839, %v4028
        %4030 = vdwg.mxu0
        %v4031 = vtanh.pop %v3920
        %v4032 = vtanh.pop %v3922
        %v4033 = vtanh.pop %v4009
        %v4034 = vtanh.pop %v4011
        %v4035 = vtanh.pop %v3926
        %v4036 = vtanh.pop %v3928
        %v4037 = vtanh.pop %v4015
        %v4038 = vtanh.pop %v4017
        %v4039 = vtanh.pop %v3932
        %v4040 = vtanh.pop %v3934
        %v4041 = vtanh.pop %v4021
        %v4042 = vtanh.pop %v4023
        %v4043 = vtanh.pop %v3938
        %v4044 = vtanh.pop %v3940
        %v4045 = vtanh.pop %v4027
        %v4046 = vtanh.pop %v4029
        %v4047 = vadd.f32 %v4031, %v3563
        %v4048 = vadd.f32 %v4032, %v3564
        %v4049 = vadd.f32 %v4033, %v3565
        %v4050 = vadd.f32 %v4034, %v3566
        %v4051 = vadd.f32 %v4035, %v3567
        %v4052 = vadd.f32 %v4036, %v3568
        %v4053 = vadd.f32 %v4037, %v3569
        %v4054 = vadd.f32 %v4038, %v3570
        %v4055 = vadd.f32 %v4039, %v3571
        %v4056 = vadd.f32 %v4040, %v3572
        %v4057 = vadd.f32 %v4041, %v3573
        %v4058 = vadd.f32 %v4042, %v3574
        %v4059 = vadd.f32 %v4043, %v3575
        %v4060 = vadd.f32 %v4044, %v3576
        %v4061 = vadd.f32 %v4045, %v3577
        %v4062 = vadd.f32 %v4046, %v3578
        %v4063 = vld [vmem:[%s1124] sm:$0xff]
        %v4064 = vld [vmem:[%s1124 + $0x8] sm:$0xff]
        %v4065 = vld [vmem:[%s1124 + $0x10] sm:$0xff]
        %v4066 = vld [vmem:[%s1124 + $0x18] sm:$0xff]
        %v4067 = vld [vmem:[%s1129] sm:$0xff]
        %v4068 = vld [vmem:[%s1129 + $0x8] sm:$0xff]
        %v4069 = vld [vmem:[%s1129 + $0x10] sm:$0xff]
        %v4070 = vld [vmem:[%s1129 + $0x18] sm:$0xff]
        %4072 = vset.pattern.permute.xlu0 0
        %4073 = vperm.xlu0 %4072, %v4067
        %v4074 = vpop.permute.xlu0 %4073
        %4077 = vset.pattern.permute.xlu0 0
        %4078 = vperm.xlu0 %4077, %v4068
        %v4079 = vpop.permute.xlu0 %4078
        %4082 = vset.pattern.permute.xlu0 0
        %4083 = vperm.xlu0 %4082, %v4069
        %v4084 = vpop.permute.xlu0 %4083
        %4087 = vset.pattern.permute.xlu0 0
        %4088 = vperm.xlu0 %4087, %v4070
        %v4089 = vpop.permute.xlu0 %4088
        %v4092 = vsel %vm667, %v4063, 0
        %v4095 = vsel %vm667, %v4064, 0
        %v4098 = vsel %vm667, %v4065, 0
        %v4101 = vsel %vm667, %v4066, 0
        %4103 = vmatprep.subr.mxu0 0.0
        %4104 = vmatpush1.msra.mxu0 0.0
        %4105 = vmatprep.subr.mxu0 0.0
        %4106 = vmatpush1.msra.mxu0 0.0
        %4107 = vmatprep.subr.mxu0 0.0
        %4108 = vmatpush1.msra.mxu0 0.0
        %4109 = vmatprep.subr.mxu0 0.0
        %4110 = vmatpush1.msra.mxu0 0.0
        %4111 = vmatprep.subr.mxu0 0.0
        %4112 = vmatpush1.msra.mxu0 0.0
        %4113 = vmatprep.subr.mxu0 0.0
        %4114 = vmatpush1.msra.mxu0 0.0
        %4115 = vmatprep.subr.mxu0 0.0
        %4116 = vmatpush1.msra.mxu0 0.0
        %4117 = vmatprep.subr.mxu0 0.0
        %4118 = vmatpush1.msra.mxu0 0.0
        %4119 = vmatprep.subr.mxu0 0.0
        %4120 = vmatpush1.msra.mxu0 0.0
        %4121 = vmatprep.subr.mxu0 0.0
        %4122 = vmatpush1.msra.mxu0 0.0
        %4123 = vmatprep.subr.mxu0 0.0
        %4124 = vmatpush1.msra.mxu0 0.0
        %4125 = vmatprep.subr.mxu0 0.0
        %4126 = vmatpush1.msra.mxu0 0.0
        %4127 = vmatprep.subr.mxu0 %v4060
        %4128 = vmatpush1.msra.mxu0 %v4059
        %4129 = vmatprep.subr.mxu0 %v4056
        %4130 = vmatpush1.msra.mxu0 %v4055
        %4131 = vmatprep.subr.mxu0 %v4052
        %4132 = vmatpush1.msra.mxu0 %v4051
        %4133 = vmatprep.subr.mxu0 %v4048
        %4134 = vmatpush1.msra.mxu0 %v4047
        %4135 = vmatprep.subr.mxu0 0.0
        %4136 = vmatpush2.msra.mxu0 0.0
        %4137 = vmatprep.subr.mxu0 0.0
        %4138 = vmatpush2.msra.mxu0 0.0
        %4139 = vmatprep.subr.mxu0 0.0
        %4140 = vmatpush2.msra.mxu0 0.0
        %4141 = vmatprep.subr.mxu0 0.0
        %4142 = vmatpush2.msra.mxu0 0.0
        %4143 = vmatprep.subr.mxu0 0.0
        %4144 = vmatpush2.msra.mxu0 0.0
        %4145 = vmatprep.subr.mxu0 0.0
        %4146 = vmatpush2.msra.mxu0 0.0
        %4147 = vmatprep.subr.mxu0 0.0
        %4148 = vmatpush2.msra.mxu0 0.0
        %4149 = vmatprep.subr.mxu0 0.0
        %4150 = vmatpush2.msra.mxu0 0.0
        %4151 = vmatprep.subr.mxu0 0.0
        %4152 = vmatpush2.msra.mxu0 0.0
        %4153 = vmatprep.subr.mxu0 0.0
        %4154 = vmatpush2.msra.mxu0 0.0
        %4155 = vmatprep.subr.mxu0 0.0
        %4156 = vmatpush2.msra.mxu0 0.0
        %4157 = vmatprep.subr.mxu0 0.0
        %4158 = vmatpush2.msra.mxu0 0.0
        %4159 = vmatprep.subr.mxu0 0.0
        %4160 = vmatpush2.msra.mxu0 0.0
        %4161 = vmatprep.subr.mxu0 0.0
        %4162 = vmatpush2.msra.mxu0 0.0
        %4163 = vmatprep.subr.mxu0 0.0
        %4164 = vmatpush2.msra.mxu0 0.0
        %4165 = vmatprep.subr.mxu0 0.0
        %4166 = vmatpush2.msra.mxu0 0.0
        %4167 = vmatprep.mubr.f32.mxu0 0.0
        %4168 = vmatmul.mubr.f32.gmra.mxu0 %v4092
        %v4169 = vpop.f32.mrf.mxu0
        %v4170 = vadd.f32 %v4074, %v4169
        %v4171 = vpop.f32.mrf.mxu0
        %v4172 = vadd.f32 %v4074, %v4171
        %4173 = vmatprep.mubr.f32.mxu0 0.0
        %4174 = vmatmul.mubr.f32.gmra.mxu0 %v4095
        %v4175 = vpop.f32.mrf.mxu0
        %v4176 = vadd.f32 %v4079, %v4175
        %v4177 = vpop.f32.mrf.mxu0
        %v4178 = vadd.f32 %v4079, %v4177
        %4179 = vmatprep.mubr.f32.mxu0 0.0
        %4180 = vmatmul.mubr.f32.gmra.mxu0 %v4098
        %v4181 = vpop.f32.mrf.mxu0
        %v4182 = vadd.f32 %v4084, %v4181
        %v4183 = vpop.f32.mrf.mxu0
        %v4184 = vadd.f32 %v4084, %v4183
        %4185 = vmatprep.mubr.f32.mxu0 0.0
        %4186 = vmatmul.mubr.f32.gmra.mxu0 %v4101
        %v4187 = vpop.f32.mrf.mxu0
        %v4188 = vadd.f32 %v4089, %v4187
        %v4189 = vpop.f32.mrf.mxu0
        %v4190 = vadd.f32 %v4089, %v4189
        %4191 = vdwg.mxu0
        %4192 = vmatprep.subr.mxu0 0.0
        %4193 = vmatpush1.msra.mxu0 0.0
        %4194 = vmatprep.subr.mxu0 0.0
        %4195 = vmatpush1.msra.mxu0 0.0
        %4196 = vmatprep.subr.mxu0 0.0
        %4197 = vmatpush1.msra.mxu0 0.0
        %4198 = vmatprep.subr.mxu0 0.0
        %4199 = vmatpush1.msra.mxu0 0.0
        %4200 = vmatprep.subr.mxu0 0.0
        %4201 = vmatpush1.msra.mxu0 0.0
        %4202 = vmatprep.subr.mxu0 0.0
        %4203 = vmatpush1.msra.mxu0 0.0
        %4204 = vmatprep.subr.mxu0 0.0
        %4205 = vmatpush1.msra.mxu0 0.0
        %4206 = vmatprep.subr.mxu0 0.0
        %4207 = vmatpush1.msra.mxu0 0.0
        %4208 = vmatprep.subr.mxu0 0.0
        %4209 = vmatpush1.msra.mxu0 0.0
        %4210 = vmatprep.subr.mxu0 0.0
        %4211 = vmatpush1.msra.mxu0 0.0
        %4212 = vmatprep.subr.mxu0 0.0
        %4213 = vmatpush1.msra.mxu0 0.0
        %4214 = vmatprep.subr.mxu0 0.0
        %4215 = vmatpush1.msra.mxu0 0.0
        %4216 = vmatprep.subr.mxu0 %v4062
        %4217 = vmatpush1.msra.mxu0 %v4061
        %4218 = vmatprep.subr.mxu0 %v4058
        %4219 = vmatpush1.msra.mxu0 %v4057
        %4220 = vmatprep.subr.mxu0 %v4054
        %4221 = vmatpush1.msra.mxu0 %v4053
        %4222 = vmatprep.subr.mxu0 %v4050
        %4223 = vmatpush1.msra.mxu0 %v4049
        %4224 = vmatprep.subr.mxu0 0.0
        %4225 = vmatpush2.msra.mxu0 0.0
        %4226 = vmatprep.subr.mxu0 0.0
        %4227 = vmatpush2.msra.mxu0 0.0
        %4228 = vmatprep.subr.mxu0 0.0
        %4229 = vmatpush2.msra.mxu0 0.0
        %4230 = vmatprep.subr.mxu0 0.0
        %4231 = vmatpush2.msra.mxu0 0.0
        %4232 = vmatprep.subr.mxu0 0.0
        %4233 = vmatpush2.msra.mxu0 0.0
        %4234 = vmatprep.subr.mxu0 0.0
        %4235 = vmatpush2.msra.mxu0 0.0
        %4236 = vmatprep.subr.mxu0 0.0
        %4237 = vmatpush2.msra.mxu0 0.0
        %4238 = vmatprep.subr.mxu0 0.0
        %4239 = vmatpush2.msra.mxu0 0.0
        %4240 = vmatprep.subr.mxu0 0.0
        %4241 = vmatpush2.msra.mxu0 0.0
        %4242 = vmatprep.subr.mxu0 0.0
        %4243 = vmatpush2.msra.mxu0 0.0
        %4244 = vmatprep.subr.mxu0 0.0
        %4245 = vmatpush2.msra.mxu0 0.0
        %4246 = vmatprep.subr.mxu0 0.0
        %4247 = vmatpush2.msra.mxu0 0.0
        %4248 = vmatprep.subr.mxu0 0.0
        %4249 = vmatpush2.msra.mxu0 0.0
        %4250 = vmatprep.subr.mxu0 0.0
        %4251 = vmatpush2.msra.mxu0 0.0
        %4252 = vmatprep.subr.mxu0 0.0
        %4253 = vmatpush2.msra.mxu0 0.0
        %4254 = vmatprep.subr.mxu0 0.0
        %4255 = vmatpush2.msra.mxu0 0.0
        %4256 = vmatprep.mubr.f32.mxu0 0.0
        %4257 = vmatmul.mubr.f32.gmra.mxu0 %v4092
        %v4258 = vpop.f32.mrf.mxu0
        %v4259 = vadd.f32 %v4074, %v4258
        %v4260 = vpop.f32.mrf.mxu0
        %v4261 = vadd.f32 %v4074, %v4260
        %4262 = vmatprep.mubr.f32.mxu0 0.0
        %4263 = vmatmul.mubr.f32.gmra.mxu0 %v4095
        %v4264 = vpop.f32.mrf.mxu0
        %v4265 = vadd.f32 %v4079, %v4264
        %v4266 = vpop.f32.mrf.mxu0
        %v4267 = vadd.f32 %v4079, %v4266
        %4268 = vmatprep.mubr.f32.mxu0 0.0
        %4269 = vmatmul.mubr.f32.gmra.mxu0 %v4098
        %v4270 = vpop.f32.mrf.mxu0
        %v4271 = vadd.f32 %v4084, %v4270
        %v4272 = vpop.f32.mrf.mxu0
        %v4273 = vadd.f32 %v4084, %v4272
        %4274 = vmatprep.mubr.f32.mxu0 0.0
        %4275 = vmatmul.mubr.f32.gmra.mxu0 %v4101
        %v4276 = vpop.f32.mrf.mxu0
        %v4277 = vadd.f32 %v4089, %v4276
        %v4278 = vpop.f32.mrf.mxu0
        %v4279 = vadd.f32 %v4089, %v4278
        %4280 = vdwg.mxu0
        %v4281 = vtanh.pop %v4170
        %v4282 = vtanh.pop %v4172
        %v4283 = vtanh.pop %v4259
        %v4284 = vtanh.pop %v4261
        %v4285 = vtanh.pop %v4176
        %v4286 = vtanh.pop %v4178
        %v4287 = vtanh.pop %v4265
        %v4288 = vtanh.pop %v4267
        %v4289 = vtanh.pop %v4182
        %v4290 = vtanh.pop %v4184
        %v4291 = vtanh.pop %v4271
        %v4292 = vtanh.pop %v4273
        %v4293 = vtanh.pop %v4188
        %v4294 = vtanh.pop %v4190
        %v4295 = vtanh.pop %v4277
        %v4296 = vtanh.pop %v4279
        %v4297 = vld [vmem:[%s1360] sm:$0xff]
        %v4298 = vld [vmem:[%s1360 + $0x8] sm:$0xff]
        %v4299 = vld [vmem:[%s1360 + $0x10] sm:$0xff]
        %v4300 = vld [vmem:[%s1360 + $0x18] sm:$0xff]
        %v4301 = vld [vmem:[%s1365] sm:$0xff]
        %v4302 = vld [vmem:[%s1365 + $0x8] sm:$0xff]
        %v4303 = vld [vmem:[%s1365 + $0x10] sm:$0xff]
        %v4304 = vld [vmem:[%s1365 + $0x18] sm:$0xff]
        %4306 = vset.pattern.permute.xlu0 0
        %4307 = vperm.xlu0 %4306, %v4301
        %v4308 = vpop.permute.xlu0 %4307
        %4311 = vset.pattern.permute.xlu0 0
        %4312 = vperm.xlu0 %4311, %v4302
        %v4313 = vpop.permute.xlu0 %4312
        %4316 = vset.pattern.permute.xlu0 0
        %4317 = vperm.xlu0 %4316, %v4303
        %v4318 = vpop.permute.xlu0 %4317
        %4321 = vset.pattern.permute.xlu0 0
        %4322 = vperm.xlu0 %4321, %v4304
        %v4323 = vpop.permute.xlu0 %4322
        %v4326 = vsel %vm667, %v4297, 0
        %v4329 = vsel %vm667, %v4298, 0
        %v4332 = vsel %vm667, %v4299, 0
        %v4335 = vsel %vm667, %v4300, 0
        %4337 = vmatprep.subr.mxu0 0.0
        %4338 = vmatpush1.msra.mxu0 0.0
        %4339 = vmatprep.subr.mxu0 0.0
        %4340 = vmatpush1.msra.mxu0 0.0
        %4341 = vmatprep.subr.mxu0 0.0
        %4342 = vmatpush1.msra.mxu0 0.0
        %4343 = vmatprep.subr.mxu0 0.0
        %4344 = vmatpush1.msra.mxu0 0.0
        %4345 = vmatprep.subr.mxu0 0.0
        %4346 = vmatpush1.msra.mxu0 0.0
        %4347 = vmatprep.subr.mxu0 0.0
        %4348 = vmatpush1.msra.mxu0 0.0
        %4349 = vmatprep.subr.mxu0 0.0
        %4350 = vmatpush1.msra.mxu0 0.0
        %4351 = vmatprep.subr.mxu0 0.0
        %4352 = vmatpush1.msra.mxu0 0.0
        %4353 = vmatprep.subr.mxu0 0.0
        %4354 = vmatpush1.msra.mxu0 0.0
        %4355 = vmatprep.subr.mxu0 0.0
        %4356 = vmatpush1.msra.mxu0 0.0
        %4357 = vmatprep.subr.mxu0 0.0
        %4358 = vmatpush1.msra.mxu0 0.0
        %4359 = vmatprep.subr.mxu0 0.0
        %4360 = vmatpush1.msra.mxu0 0.0
        %4361 = vmatprep.subr.mxu0 %v4294
        %4362 = vmatpush1.msra.mxu0 %v4293
        %4363 = vmatprep.subr.mxu0 %v4290
        %4364 = vmatpush1.msra.mxu0 %v4289
        %4365 = vmatprep.subr.mxu0 %v4286
        %4366 = vmatpush1.msra.mxu0 %v4285
        %4367 = vmatprep.subr.mxu0 %v4282
        %4368 = vmatpush1.msra.mxu0 %v4281
        %4369 = vmatprep.subr.mxu0 0.0
        %4370 = vmatpush2.msra.mxu0 0.0
        %4371 = vmatprep.subr.mxu0 0.0
        %4372 = vmatpush2.msra.mxu0 0.0
        %4373 = vmatprep.subr.mxu0 0.0
        %4374 = vmatpush2.msra.mxu0 0.0
        %4375 = vmatprep.subr.mxu0 0.0
        %4376 = vmatpush2.msra.mxu0 0.0
        %4377 = vmatprep.subr.mxu0 0.0
        %4378 = vmatpush2.msra.mxu0 0.0
        %4379 = vmatprep.subr.mxu0 0.0
        %4380 = vmatpush2.msra.mxu0 0.0
        %4381 = vmatprep.subr.mxu0 0.0
        %4382 = vmatpush2.msra.mxu0 0.0
        %4383 = vmatprep.subr.mxu0 0.0
        %4384 = vmatpush2.msra.mxu0 0.0
        %4385 = vmatprep.subr.mxu0 0.0
        %4386 = vmatpush2.msra.mxu0 0.0
        %4387 = vmatprep.subr.mxu0 0.0
        %4388 = vmatpush2.msra.mxu0 0.0
        %4389 = vmatprep.subr.mxu0 0.0
        %4390 = vmatpush2.msra.mxu0 0.0
        %4391 = vmatprep.subr.mxu0 0.0
        %4392 = vmatpush2.msra.mxu0 0.0
        %4393 = vmatprep.subr.mxu0 0.0
        %4394 = vmatpush2.msra.mxu0 0.0
        %4395 = vmatprep.subr.mxu0 0.0
        %4396 = vmatpush2.msra.mxu0 0.0
        %4397 = vmatprep.subr.mxu0 0.0
        %4398 = vmatpush2.msra.mxu0 0.0
        %4399 = vmatprep.subr.mxu0 0.0
        %4400 = vmatpush2.msra.mxu0 0.0
        %4401 = vmatprep.mubr.f32.mxu0 0.0
        %4402 = vmatmul.mubr.f32.gmra.mxu0 %v4326
        %v4403 = vpop.f32.mrf.mxu0
        %v4404 = vadd.f32 %v4308, %v4403
        %v4405 = vpop.f32.mrf.mxu0
        %v4406 = vadd.f32 %v4308, %v4405
        %4407 = vmatprep.mubr.f32.mxu0 0.0
        %4408 = vmatmul.mubr.f32.gmra.mxu0 %v4329
        %v4409 = vpop.f32.mrf.mxu0
        %v4410 = vadd.f32 %v4313, %v4409
        %v4411 = vpop.f32.mrf.mxu0
        %v4412 = vadd.f32 %v4313, %v4411
        %4413 = vmatprep.mubr.f32.mxu0 0.0
        %4414 = vmatmul.mubr.f32.gmra.mxu0 %v4332
        %v4415 = vpop.f32.mrf.mxu0
        %v4416 = vadd.f32 %v4318, %v4415
        %v4417 = vpop.f32.mrf.mxu0
        %v4418 = vadd.f32 %v4318, %v4417
        %4419 = vmatprep.mubr.f32.mxu0 0.0
        %4420 = vmatmul.mubr.f32.gmra.mxu0 %v4335
        %v4421 = vpop.f32.mrf.mxu0
        %v4422 = vadd.f32 %v4323, %v4421
        %v4423 = vpop.f32.mrf.mxu0
        %v4424 = vadd.f32 %v4323, %v4423
        %4425 = vdwg.mxu0
        %4426 = vmatprep.subr.mxu0 0.0
        %4427 = vmatpush1.msra.mxu0 0.0
        %4428 = vmatprep.subr.mxu0 0.0
        %4429 = vmatpush1.msra.mxu0 0.0
        %4430 = vmatprep.subr.mxu0 0.0
        %4431 = vmatpush1.msra.mxu0 0.0
        %4432 = vmatprep.subr.mxu0 0.0
        %4433 = vmatpush1.msra.mxu0 0.0
        %4434 = vmatprep.subr.mxu0 0.0
        %4435 = vmatpush1.msra.mxu0 0.0
        %4436 = vmatprep.subr.mxu0 0.0
        %4437 = vmatpush1.msra.mxu0 0.0
        %4438 = vmatprep.subr.mxu0 0.0
        %4439 = vmatpush1.msra.mxu0 0.0
        %4440 = vmatprep.subr.mxu0 0.0
        %4441 = vmatpush1.msra.mxu0 0.0
        %4442 = vmatprep.subr.mxu0 0.0
        %4443 = vmatpush1.msra.mxu0 0.0
        %4444 = vmatprep.subr.mxu0 0.0
        %4445 = vmatpush1.msra.mxu0 0.0
        %4446 = vmatprep.subr.mxu0 0.0
        %4447 = vmatpush1.msra.mxu0 0.0
        %4448 = vmatprep.subr.mxu0 0.0
        %4449 = vmatpush1.msra.mxu0 0.0
        %4450 = vmatprep.subr.mxu0 %v4296
        %4451 = vmatpush1.msra.mxu0 %v4295
        %4452 = vmatprep.subr.mxu0 %v4292
        %4453 = vmatpush1.msra.mxu0 %v4291
        %4454 = vmatprep.subr.mxu0 %v4288
        %4455 = vmatpush1.msra.mxu0 %v4287
        %4456 = vmatprep.subr.mxu0 %v4284
        %4457 = vmatpush1.msra.mxu0 %v4283
        %4458 = vmatprep.subr.mxu0 0.0
        %4459 = vmatpush2.msra.mxu0 0.0
        %4460 = vmatprep.subr.mxu0 0.0
        %4461 = vmatpush2.msra.mxu0 0.0
        %4462 = vmatprep.subr.mxu0 0.0
        %4463 = vmatpush2.msra.mxu0 0.0
        %4464 = vmatprep.subr.mxu0 0.0
        %4465 = vmatpush2.msra.mxu0 0.0
        %4466 = vmatprep.subr.mxu0 0.0
        %4467 = vmatpush2.msra.mxu0 0.0
        %4468 = vmatprep.subr.mxu0 0.0
        %4469 = vmatpush2.msra.mxu0 0.0
        %4470 = vmatprep.subr.mxu0 0.0
        %4471 = vmatpush2.msra.mxu0 0.0
        %4472 = vmatprep.subr.mxu0 0.0
        %4473 = vmatpush2.msra.mxu0 0.0
        %4474 = vmatprep.subr.mxu0 0.0
        %4475 = vmatpush2.msra.mxu0 0.0
        %4476 = vmatprep.subr.mxu0 0.0
        %4477 = vmatpush2.msra.mxu0 0.0
        %4478 = vmatprep.subr.mxu0 0.0
        %4479 = vmatpush2.msra.mxu0 0.0
        %4480 = vmatprep.subr.mxu0 0.0
        %4481 = vmatpush2.msra.mxu0 0.0
        %4482 = vmatprep.subr.mxu0 0.0
        %4483 = vmatpush2.msra.mxu0 0.0
        %4484 = vmatprep.subr.mxu0 0.0
        %4485 = vmatpush2.msra.mxu0 0.0
        %4486 = vmatprep.subr.mxu0 0.0
        %4487 = vmatpush2.msra.mxu0 0.0
        %4488 = vmatprep.subr.mxu0 0.0
        %4489 = vmatpush2.msra.mxu0 0.0
        %4490 = vmatprep.mubr.f32.mxu0 0.0
        %4491 = vmatmul.mubr.f32.gmra.mxu0 %v4326
        %v4492 = vpop.f32.mrf.mxu0
        %v4493 = vadd.f32 %v4308, %v4492
        %v4494 = vpop.f32.mrf.mxu0
        %v4495 = vadd.f32 %v4308, %v4494
        %4496 = vmatprep.mubr.f32.mxu0 0.0
        %4497 = vmatmul.mubr.f32.gmra.mxu0 %v4329
        %v4498 = vpop.f32.mrf.mxu0
        %v4499 = vadd.f32 %v4313, %v4498
        %v4500 = vpop.f32.mrf.mxu0
        %v4501 = vadd.f32 %v4313, %v4500
        %4502 = vmatprep.mubr.f32.mxu0 0.0
        %4503 = vmatmul.mubr.f32.gmra.mxu0 %v4332
        %v4504 = vpop.f32.mrf.mxu0
        %v4505 = vadd.f32 %v4318, %v4504
        %v4506 = vpop.f32.mrf.mxu0
        %v4507 = vadd.f32 %v4318, %v4506
        %4508 = vmatprep.mubr.f32.mxu0 0.0
        %4509 = vmatmul.mubr.f32.gmra.mxu0 %v4335
        %v4510 = vpop.f32.mrf.mxu0
        %v4511 = vadd.f32 %v4323, %v4510
        %v4512 = vpop.f32.mrf.mxu0
        %v4513 = vadd.f32 %v4323, %v4512
        %4514 = vdwg.mxu0
        %v4515 = vtanh.pop %v4404
        %v4516 = vtanh.pop %v4406
        %v4517 = vtanh.pop %v4493
        %v4518 = vtanh.pop %v4495
        %v4519 = vtanh.pop %v4410
        %v4520 = vtanh.pop %v4412
        %v4521 = vtanh.pop %v4499
        %v4522 = vtanh.pop %v4501
        %v4523 = vtanh.pop %v4416
        %v4524 = vtanh.pop %v4418
        %v4525 = vtanh.pop %v4505
        %v4526 = vtanh.pop %v4507
        %v4527 = vtanh.pop %v4422
        %v4528 = vtanh.pop %v4424
        %v4529 = vtanh.pop %v4511
        %v4530 = vtanh.pop %v4513
        %v4531 = vadd.f32 %v4515, %v4047
        %v4532 = vadd.f32 %v4516, %v4048
        %v4533 = vadd.f32 %v4517, %v4049
        %v4534 = vadd.f32 %v4518, %v4050
        %v4535 = vadd.f32 %v4519, %v4051
        %v4536 = vadd.f32 %v4520, %v4052
        %v4537 = vadd.f32 %v4521, %v4053
        %v4538 = vadd.f32 %v4522, %v4054
        %v4539 = vadd.f32 %v4523, %v4055
        %v4540 = vadd.f32 %v4524, %v4056
        %v4541 = vadd.f32 %v4525, %v4057
        %v4542 = vadd.f32 %v4526, %v4058
        %v4543 = vadd.f32 %v4527, %v4059
        %v4544 = vadd.f32 %v4528, %v4060
        %v4545 = vadd.f32 %v4529, %v4061
        %v4546 = vadd.f32 %v4530, %v4062
        %v4547 = vld [vmem:[%s7] sm:$0xff]
        %v4548 = vld [vmem:[%s7 + $0x8] sm:$0xff]
        %v4549 = vld [vmem:[%s7 + $0x10] sm:$0xff]
        %v4550 = vld [vmem:[%s7 + $0x18] sm:$0xff]
        %4552 = vset.pattern.permute.xlu0 0
        %4553 = vperm.xlu0 %4552, %v4547
        %v4554 = vpop.permute.xlu0 %4553
        %4557 = vset.pattern.permute.xlu0 0
        %4558 = vperm.xlu0 %4557, %v4548
        %v4559 = vpop.permute.xlu0 %4558
        %4562 = vset.pattern.permute.xlu0 0
        %4563 = vperm.xlu0 %4562, %v4549
        %v4564 = vpop.permute.xlu0 %4563
        %4567 = vset.pattern.permute.xlu0 0
        %4568 = vperm.xlu0 %4567, %v4550
        %v4569 = vpop.permute.xlu0 %4568
        %v4571 = vmul.f32 %v4531, %v4554
        %v4572 = vmul.f32 %v4532, %v4554
        %v4573 = vmul.f32 %v4533, %v4554
        %v4574 = vmul.f32 %v4534, %v4554
        %v4575 = vmul.f32 %v4535, %v4559
        %v4576 = vmul.f32 %v4536, %v4559
        %v4577 = vmul.f32 %v4537, %v4559
        %v4578 = vmul.f32 %v4538, %v4559
        %v4579 = vmul.f32 %v4539, %v4564
        %v4580 = vmul.f32 %v4540, %v4564
        %v4581 = vmul.f32 %v4541, %v4564
        %v4582 = vmul.f32 %v4542, %v4564
        %v4583 = vmul.f32 %v4543, %v4569
        %v4584 = vmul.f32 %v4544, %v4569
        %v4585 = vmul.f32 %v4545, %v4569
        %v4586 = vmul.f32 %v4546, %v4569
        %v4587 = vadd.f32 %v4571, %v4575
        %v4588 = vadd.f32 %v4587, %v4579
        %v4589 = vadd.f32 %v4588, %v4583
        %v4590 = vrot.slane %v4589, 4
        %v4591 = vadd.f32 %v4589, %v4590
        %v4592 = vrot.slane %v4591, 2
        %v4593 = vadd.f32 %v4591, %v4592
        %v4594 = vrot.slane %v4593, 1
        %v4595 = vadd.f32 %v4593, %v4594
        %v4596 = vadd.f32 %v4572, %v4576
        %v4597 = vadd.f32 %v4596, %v4580
        %v4598 = vadd.f32 %v4597, %v4584
        %v4599 = vrot.slane %v4598, 4
        %v4600 = vadd.f32 %v4598, %v4599
        %v4601 = vrot.slane %v4600, 2
        %v4602 = vadd.f32 %v4600, %v4601
        %v4603 = vrot.slane %v4602, 1
        %v4604 = vadd.f32 %v4602, %v4603
        %v4605 = vadd.f32 %v4573, %v4577
        %v4606 = vadd.f32 %v4605, %v4581
        %v4607 = vadd.f32 %v4606, %v4585
        %v4608 = vrot.slane %v4607, 4
        %v4609 = vadd.f32 %v4607, %v4608
        %v4610 = vrot.slane %v4609, 2
        %v4611 = vadd.f32 %v4609, %v4610
        %v4612 = vrot.slane %v4611, 1
        %v4613 = vadd.f32 %v4611, %v4612
        %v4614 = vadd.f32 %v4574, %v4578
        %v4615 = vadd.f32 %v4614, %v4582
        %v4616 = vadd.f32 %v4615, %v4586
        %v4617 = vrot.slane %v4616, 4
        %v4618 = vadd.f32 %v4616, %v4617
        %v4619 = vrot.slane %v4618, 2
        %v4620 = vadd.f32 %v4618, %v4619
        %v4621 = vrot.slane %v4620, 1
        %v4622 = vadd.f32 %v4620, %v4621
        %v4623 = vld [vmem:[#allocation2] sm:$0x1]
        %4625 = vset.pattern.permute.xlu0 0
        %4626 = vperm.xlu0 %4625, %v4623
        %v4627 = vpop.permute.xlu0 %4626
        %v4629 = vlaneseq
        %v4630 = vshrl.u32 %v4629, 7
        %v4631 = vsub.s32 0, %v4630
        %v4632 = vrot.slane %v4627, %v4631
        %v4633 = vadd.f32 %v4595, %v4632
        %v4634 = vadd.f32 %v4604, %v4632
        %v4635 = vadd.f32 %v4613, %v4632
        %v4636 = vadd.f32 %v4622, %v4632
        %v4637 = vmul.f32 %v4633, %v3322
        %v4638 = vmul.f32 %v4634, %v3326
        %v4639 = vmul.f32 %v4635, %v3330
        %v4640 = vmul.f32 %v4636, %v3334
        %v4641 = vmul.f32 %v4637, %v3390
        %v4642 = vmul.f32 %v4638, %v3394
        %v4643 = vmul.f32 %v4639, %v3398
        %v4644 = vmul.f32 %v4640, %v3402
        %v4645 = vmul.f32 %v4641, %v3474
        %v4646 = vmul.f32 %v4642, %v3478
        %v4647 = vmul.f32 %v4643, %v3482
        %v4648 = vmul.f32 %v4644, %v3486
        %v4649 = vsub.f32 1.0, %v3291
        %v4650 = vsub.f32 1.0, %v3292
        %v4653 = vlaneseq
        %v4654 = vshrl.u32 %v4653, 7
        %v4655 = vsub.s32 0, %v4654
        %v4656 = vrot.slane %v4649, %v4655
        %v4657 = vlaneseq
        %v4658 = vshrl.u32 %v4657, 7
        %v4659 = vsub.s32 4, %v4658
        %v4660 = vrot.slane %v4649, %v4659
        %v4661 = vlaneseq
        %v4662 = vshrl.u32 %v4661, 7
        %v4663 = vsub.s32 0, %v4662
        %v4664 = vrot.slane %v4650, %v4663
        %v4665 = vlaneseq
        %v4666 = vshrl.u32 %v4665, 7
        %v4667 = vsub.s32 4, %v4666
        %v4668 = vrot.slane %v4650, %v4667
        %v4673 = vmul.f32 %v4645, %v4656
        %v4674 = vmul.f32 %v4646, %v4660
        %v4675 = vmul.f32 %v4647, %v4664
        %v4676 = vmul.f32 %v4648, %v4668
        %v4677 = vlaneseq
        %v4678 = vshrl.u32 %v4677, 7
        %v4679 = vsub.s32 1, %v4678
        %v4680 = vrot.slane %v4649, %v4679
        %v4681 = vlaneseq
        %v4682 = vshrl.u32 %v4681, 7
        %v4683 = vsub.s32 5, %v4682
        %v4684 = vrot.slane %v4649, %v4683
        %v4685 = vlaneseq
        %v4686 = vshrl.u32 %v4685, 7
        %v4687 = vsub.s32 1, %v4686
        %v4688 = vrot.slane %v4650, %v4687
        %v4689 = vlaneseq
        %v4690 = vshrl.u32 %v4689, 7
        %v4691 = vsub.s32 5, %v4690
        %v4692 = vrot.slane %v4650, %v4691
        %v4697 = vmul.f32 %v4673, %v4680
        %v4698 = vmul.f32 %v4674, %v4684
        %v4699 = vmul.f32 %v4675, %v4688
        %v4700 = vmul.f32 %v4676, %v4692
        %v4701 = vlaneseq
        %v4702 = vshrl.u32 %v4701, 7
        %v4703 = vsub.s32 2, %v4702
        %v4704 = vrot.slane %v4649, %v4703
        %v4705 = vlaneseq
        %v4706 = vshrl.u32 %v4705, 7
        %v4707 = vsub.s32 6, %v4706
        %v4708 = vrot.slane %v4649, %v4707
        %v4709 = vlaneseq
        %v4710 = vshrl.u32 %v4709, 7
        %v4711 = vsub.s32 2, %v4710
        %v4712 = vrot.slane %v4650, %v4711
        %v4713 = vlaneseq
        %v4714 = vshrl.u32 %v4713, 7
        %v4715 = vsub.s32 6, %v4714
        %v4716 = vrot.slane %v4650, %v4715
        %v4721 = vmul.f32 %v4697, %v4704
        %v4722 = vmul.f32 %v4698, %v4708
        %v4723 = vmul.f32 %v4699, %v4712
        %v4724 = vmul.f32 %v4700, %v4716
        %v4729 = vcombine.low %v4721, %v4722
        %v4730 = vcombine.low %v4723, %v4724
        %v4732 = vunpack.c.l.s4 1966171168
        %v4733 = vunpack.c.0.s8 %v4732
        %v4734 = vlaneseq
        %v4735 = vshrl.u32 %v4734, 7
        %v4736 = vsub.s32 %v4733, %v4735
        %v4737 = vrot.slane %v4729, %v4736
        %v4739 = vunpack.c.l.s4 1966171168
        %v4740 = vunpack.c.0.s8 %v4739
        %v4741 = vlaneseq
        %v4742 = vshrl.u32 %v4741, 7
        %v4743 = vsub.s32 %v4740, %v4742
        %v4744 = vrot.slane %v4730, %v4743
        %v4745 = vcombine.low %v4737, %v4744
        %v4747 = vunpack.c.l.s4 1966171168
        %v4748 = vunpack.c.0.s8 %v4747
        %v4749 = vlaneseq
        %v4750 = vshrl.u32 %v4749, 7
        %v4751 = vsub.s32 %v4748, %v4750
        %v4752 = vrot.slane %v4745, %v4751
        %s4754 = scalar_lea.vmem %s343, 8 [#allocation6]
        %4755 = vst.msk [vmem:[%s4754] sm:$0xf] %vm1822, %v4752
        %s4756 = scalar_lea.vmem %s348, 48
        %v4757 = vld [vmem:[%s4756] sm:$0x77]
        %v4758 = vld [vmem:[%s4756 + $0x8] sm:$0x77]
        %v4759 = vld [vmem:[%s1] sm:$0xff]
        %v4760 = vld [vmem:[%s1 + $0x8] sm:$0xff]
        %v4761 = vld [vmem:[%s1 + $0x10] sm:$0xff]
        %v4762 = vld [vmem:[%s1 + $0x18] sm:$0xff]
        %4764 = vset.pattern.permute.xlu0 0
        %4765 = vperm.xlu0 %4764, %v4759
        %v4766 = vpop.permute.xlu0 %4765
        %4769 = vset.pattern.permute.xlu0 0
        %4770 = vperm.xlu0 %4769, %v4760
        %v4771 = vpop.permute.xlu0 %4770
        %4774 = vset.pattern.permute.xlu0 0
        %4775 = vperm.xlu0 %4774, %v4761
        %v4776 = vpop.permute.xlu0 %4775
        %4779 = vset.pattern.permute.xlu0 0
        %4780 = vperm.xlu0 %4779, %v4762
        %v4781 = vpop.permute.xlu0 %4780
        %v4785 = vlaneseq
        %v4786 = vshrl.u32 %v4785, 7
        %v4787 = vsub.s32 0, %v4786
        %v4788 = vrot.slane %v4757, %v4787
        %v4789 = vlaneseq
        %v4790 = vshrl.u32 %v4789, 7
        %v4791 = vsub.s32 4, %v4790
        %v4792 = vrot.slane %v4757, %v4791
        %v4793 = vlaneseq
        %v4794 = vshrl.u32 %v4793, 7
        %v4795 = vsub.s32 0, %v4794
        %v4796 = vrot.slane %v4758, %v4795
        %v4797 = vlaneseq
        %v4798 = vshrl.u32 %v4797, 7
        %v4799 = vsub.s32 4, %v4798
        %v4800 = vrot.slane %v4758, %v4799
        %v4805 = vlaneseq
        %v4806 = vshrl.u32 %v4805, 7
        %v4807 = vsub.s32 0, %v4806
        %v4808 = vrot.slane %v4788, %v4807
        %v4809 = vlaneseq
        %v4810 = vshrl.u32 %v4809, 7
        %v4811 = vsub.s32 0, %v4810
        %v4812 = vrot.slane %v4792, %v4811
        %v4813 = vlaneseq
        %v4814 = vshrl.u32 %v4813, 7
        %v4815 = vsub.s32 0, %v4814
        %v4816 = vrot.slane %v4796, %v4815
        %v4817 = vlaneseq
        %v4818 = vshrl.u32 %v4817, 7
        %v4819 = vsub.s32 0, %v4818
        %v4820 = vrot.slane %v4800, %v4819
        %v4821 = vmul.f32 %v4766, %v4808
        %v4822 = vmul.f32 %v4766, %v4812
        %v4823 = vmul.f32 %v4766, %v4816
        %v4824 = vmul.f32 %v4766, %v4820
        %v4825 = vmul.f32 %v4771, %v4808
        %v4826 = vmul.f32 %v4771, %v4812
        %v4827 = vmul.f32 %v4771, %v4816
        %v4828 = vmul.f32 %v4771, %v4820
        %v4829 = vmul.f32 %v4776, %v4808
        %v4830 = vmul.f32 %v4776, %v4812
        %v4831 = vmul.f32 %v4776, %v4816
        %v4832 = vmul.f32 %v4776, %v4820
        %v4833 = vmul.f32 %v4781, %v4808
        %v4834 = vmul.f32 %v4781, %v4812
        %v4835 = vmul.f32 %v4781, %v4816
        %v4836 = vmul.f32 %v4781, %v4820
        %4837 = vset.pattern.permute.xlu0 1
        %4838 = vperm.xlu0 %4837, %v4759
        %v4839 = vpop.permute.xlu0 %4838
        %4841 = vset.pattern.permute.xlu0 1
        %4842 = vperm.xlu0 %4841, %v4760
        %v4843 = vpop.permute.xlu0 %4842
        %4845 = vset.pattern.permute.xlu0 1
        %4846 = vperm.xlu0 %4845, %v4761
        %v4847 = vpop.permute.xlu0 %4846
        %4849 = vset.pattern.permute.xlu0 1
        %4850 = vperm.xlu0 %4849, %v4762
        %v4851 = vpop.permute.xlu0 %4850
        %v4853 = vlaneseq
        %v4854 = vshrl.u32 %v4853, 7
        %v4855 = vsub.s32 1, %v4854
        %v4856 = vrot.slane %v4757, %v4855
        %v4857 = vlaneseq
        %v4858 = vshrl.u32 %v4857, 7
        %v4859 = vsub.s32 5, %v4858
        %v4860 = vrot.slane %v4757, %v4859
        %v4861 = vlaneseq
        %v4862 = vshrl.u32 %v4861, 7
        %v4863 = vsub.s32 1, %v4862
        %v4864 = vrot.slane %v4758, %v4863
        %v4865 = vlaneseq
        %v4866 = vshrl.u32 %v4865, 7
        %v4867 = vsub.s32 5, %v4866
        %v4868 = vrot.slane %v4758, %v4867
        %v4873 = vlaneseq
        %v4874 = vshrl.u32 %v4873, 7
        %v4875 = vsub.s32 1, %v4874
        %v4876 = vrot.slane %v4856, %v4875
        %v4877 = vlaneseq
        %v4878 = vshrl.u32 %v4877, 7
        %v4879 = vsub.s32 1, %v4878
        %v4880 = vrot.slane %v4860, %v4879
        %v4881 = vlaneseq
        %v4882 = vshrl.u32 %v4881, 7
        %v4883 = vsub.s32 1, %v4882
        %v4884 = vrot.slane %v4864, %v4883
        %v4885 = vlaneseq
        %v4886 = vshrl.u32 %v4885, 7
        %v4887 = vsub.s32 1, %v4886
        %v4888 = vrot.slane %v4868, %v4887
        %v4889 = vmul.f32 %v4839, %v4876
        %v4890 = vmul.f32 %v4839, %v4880
        %v4891 = vmul.f32 %v4839, %v4884
        %v4892 = vmul.f32 %v4839, %v4888
        %v4893 = vmul.f32 %v4843, %v4876
        %v4894 = vmul.f32 %v4843, %v4880
        %v4895 = vmul.f32 %v4843, %v4884
        %v4896 = vmul.f32 %v4843, %v4888
        %v4897 = vmul.f32 %v4847, %v4876
        %v4898 = vmul.f32 %v4847, %v4880
        %v4899 = vmul.f32 %v4847, %v4884
        %v4900 = vmul.f32 %v4847, %v4888
        %v4901 = vmul.f32 %v4851, %v4876
        %v4902 = vmul.f32 %v4851, %v4880
        %v4903 = vmul.f32 %v4851, %v4884
        %v4904 = vmul.f32 %v4851, %v4888
        %v4905 = vadd.f32 %v4821, %v4889
        %v4906 = vadd.f32 %v4822, %v4890
        %v4907 = vadd.f32 %v4823, %v4891
        %v4908 = vadd.f32 %v4824, %v4892
        %v4909 = vadd.f32 %v4825, %v4893
        %v4910 = vadd.f32 %v4826, %v4894
        %v4911 = vadd.f32 %v4827, %v4895
        %v4912 = vadd.f32 %v4828, %v4896
        %v4913 = vadd.f32 %v4829, %v4897
        %v4914 = vadd.f32 %v4830, %v4898
        %v4915 = vadd.f32 %v4831, %v4899
        %v4916 = vadd.f32 %v4832, %v4900
        %v4917 = vadd.f32 %v4833, %v4901
        %v4918 = vadd.f32 %v4834, %v4902
        %v4919 = vadd.f32 %v4835, %v4903
        %v4920 = vadd.f32 %v4836, %v4904
        %4921 = vset.pattern.permute.xlu0 2
        %4922 = vperm.xlu0 %4921, %v4759
        %v4923 = vpop.permute.xlu0 %4922
        %4925 = vset.pattern.permute.xlu0 2
        %4926 = vperm.xlu0 %4925, %v4760
        %v4927 = vpop.permute.xlu0 %4926
        %4929 = vset.pattern.permute.xlu0 2
        %4930 = vperm.xlu0 %4929, %v4761
        %v4931 = vpop.permute.xlu0 %4930
        %4933 = vset.pattern.permute.xlu0 2
        %4934 = vperm.xlu0 %4933, %v4762
        %v4935 = vpop.permute.xlu0 %4934
        %v4937 = vlaneseq
        %v4938 = vshrl.u32 %v4937, 7
        %v4939 = vsub.s32 2, %v4938
        %v4940 = vrot.slane %v4757, %v4939
        %v4941 = vlaneseq
        %v4942 = vshrl.u32 %v4941, 7
        %v4943 = vsub.s32 6, %v4942
        %v4944 = vrot.slane %v4757, %v4943
        %v4945 = vlaneseq
        %v4946 = vshrl.u32 %v4945, 7
        %v4947 = vsub.s32 2, %v4946
        %v4948 = vrot.slane %v4758, %v4947
        %v4949 = vlaneseq
        %v4950 = vshrl.u32 %v4949, 7
        %v4951 = vsub.s32 6, %v4950
        %v4952 = vrot.slane %v4758, %v4951
        %v4957 = vlaneseq
        %v4958 = vshrl.u32 %v4957, 7
        %v4959 = vsub.s32 2, %v4958
        %v4960 = vrot.slane %v4940, %v4959
        %v4961 = vlaneseq
        %v4962 = vshrl.u32 %v4961, 7
        %v4963 = vsub.s32 2, %v4962
        %v4964 = vrot.slane %v4944, %v4963
        %v4965 = vlaneseq
        %v4966 = vshrl.u32 %v4965, 7
        %v4967 = vsub.s32 2, %v4966
        %v4968 = vrot.slane %v4948, %v4967
        %v4969 = vlaneseq
        %v4970 = vshrl.u32 %v4969, 7
        %v4971 = vsub.s32 2, %v4970
        %v4972 = vrot.slane %v4952, %v4971
        %v4973 = vmul.f32 %v4923, %v4960
        %v4974 = vmul.f32 %v4923, %v4964
        %v4975 = vmul.f32 %v4923, %v4968
        %v4976 = vmul.f32 %v4923, %v4972
        %v4977 = vmul.f32 %v4927, %v4960
        %v4978 = vmul.f32 %v4927, %v4964
        %v4979 = vmul.f32 %v4927, %v4968
        %v4980 = vmul.f32 %v4927, %v4972
        %v4981 = vmul.f32 %v4931, %v4960
        %v4982 = vmul.f32 %v4931, %v4964
        %v4983 = vmul.f32 %v4931, %v4968
        %v4984 = vmul.f32 %v4931, %v4972
        %v4985 = vmul.f32 %v4935, %v4960
        %v4986 = vmul.f32 %v4935, %v4964
        %v4987 = vmul.f32 %v4935, %v4968
        %v4988 = vmul.f32 %v4935, %v4972
        %v4989 = vadd.f32 %v4905, %v4973
        %v4990 = vadd.f32 %v4906, %v4974
        %v4991 = vadd.f32 %v4907, %v4975
        %v4992 = vadd.f32 %v4908, %v4976
        %v4993 = vadd.f32 %v4909, %v4977
        %v4994 = vadd.f32 %v4910, %v4978
        %v4995 = vadd.f32 %v4911, %v4979
        %v4996 = vadd.f32 %v4912, %v4980
        %v4997 = vadd.f32 %v4913, %v4981
        %v4998 = vadd.f32 %v4914, %v4982
        %v4999 = vadd.f32 %v4915, %v4983
        %v5000 = vadd.f32 %v4916, %v4984
        %v5001 = vadd.f32 %v4917, %v4985
        %v5002 = vadd.f32 %v4918, %v4986
        %v5003 = vadd.f32 %v4919, %v4987
        %v5004 = vadd.f32 %v4920, %v4988
        %v5005 = vld [vmem:[%s2] sm:$0xff]
        %v5006 = vld [vmem:[%s2 + $0x8] sm:$0xff]
        %v5007 = vld [vmem:[%s2 + $0x10] sm:$0xff]
        %v5008 = vld [vmem:[%s2 + $0x18] sm:$0xff]
        %5010 = vset.pattern.permute.xlu0 0
        %5011 = vperm.xlu0 %5010, %v5005
        %v5012 = vpop.permute.xlu0 %5011
        %5015 = vset.pattern.permute.xlu0 0
        %5016 = vperm.xlu0 %5015, %v5006
        %v5017 = vpop.permute.xlu0 %5016
        %5020 = vset.pattern.permute.xlu0 0
        %5021 = vperm.xlu0 %5020, %v5007
        %v5022 = vpop.permute.xlu0 %5021
        %5025 = vset.pattern.permute.xlu0 0
        %5026 = vperm.xlu0 %5025, %v5008
        %v5027 = vpop.permute.xlu0 %5026
        %v5029 = vadd.f32 %v4989, %v5012
        %v5030 = vadd.f32 %v4990, %v5012
        %v5031 = vadd.f32 %v4991, %v5012
        %v5032 = vadd.f32 %v4992, %v5012
        %v5033 = vadd.f32 %v4993, %v5017
        %v5034 = vadd.f32 %v4994, %v5017
        %v5035 = vadd.f32 %v4995, %v5017
        %v5036 = vadd.f32 %v4996, %v5017
        %v5037 = vadd.f32 %v4997, %v5022
        %v5038 = vadd.f32 %v4998, %v5022
        %v5039 = vadd.f32 %v4999, %v5022
        %v5040 = vadd.f32 %v5000, %v5022
        %v5041 = vadd.f32 %v5001, %v5027
        %v5042 = vadd.f32 %v5002, %v5027
        %v5043 = vadd.f32 %v5003, %v5027
        %v5044 = vadd.f32 %v5004, %v5027
        %v5045 = vld [vmem:[%s3] sm:$0xff]
        %v5046 = vld [vmem:[%s3 + $0x8] sm:$0xff]
        %v5047 = vld [vmem:[%s3 + $0x10] sm:$0xff]
        %v5048 = vld [vmem:[%s3 + $0x18] sm:$0xff]
        %v5049 = vld [vmem:[%s4] sm:$0xff]
        %v5050 = vld [vmem:[%s4 + $0x8] sm:$0xff]
        %v5051 = vld [vmem:[%s4 + $0x10] sm:$0xff]
        %v5052 = vld [vmem:[%s4 + $0x18] sm:$0xff]
        %5054 = vset.pattern.permute.xlu0 0
        %5055 = vperm.xlu0 %5054, %v5049
        %v5056 = vpop.permute.xlu0 %5055
        %5059 = vset.pattern.permute.xlu0 0
        %5060 = vperm.xlu0 %5059, %v5050
        %v5061 = vpop.permute.xlu0 %5060
        %5064 = vset.pattern.permute.xlu0 0
        %5065 = vperm.xlu0 %5064, %v5051
        %v5066 = vpop.permute.xlu0 %5065
        %5069 = vset.pattern.permute.xlu0 0
        %5070 = vperm.xlu0 %5069, %v5052
        %v5071 = vpop.permute.xlu0 %5070
        %v5074 = vsel %vm667, %v5045, 0
        %v5077 = vsel %vm667, %v5046, 0
        %v5080 = vsel %vm667, %v5047, 0
        %v5083 = vsel %vm667, %v5048, 0
        %5085 = vmatprep.subr.mxu0 0.0
        %5086 = vmatpush1.msra.mxu0 0.0
        %5087 = vmatprep.subr.mxu0 0.0
        %5088 = vmatpush1.msra.mxu0 0.0
        %5089 = vmatprep.subr.mxu0 0.0
        %5090 = vmatpush1.msra.mxu0 0.0
        %5091 = vmatprep.subr.mxu0 0.0
        %5092 = vmatpush1.msra.mxu0 0.0
        %5093 = vmatprep.subr.mxu0 0.0
        %5094 = vmatpush1.msra.mxu0 0.0
        %5095 = vmatprep.subr.mxu0 0.0
        %5096 = vmatpush1.msra.mxu0 0.0
        %5097 = vmatprep.subr.mxu0 0.0
        %5098 = vmatpush1.msra.mxu0 0.0
        %5099 = vmatprep.subr.mxu0 0.0
        %5100 = vmatpush1.msra.mxu0 0.0
        %5101 = vmatprep.subr.mxu0 0.0
        %5102 = vmatpush1.msra.mxu0 0.0
        %5103 = vmatprep.subr.mxu0 0.0
        %5104 = vmatpush1.msra.mxu0 0.0
        %5105 = vmatprep.subr.mxu0 0.0
        %5106 = vmatpush1.msra.mxu0 0.0
        %5107 = vmatprep.subr.mxu0 0.0
        %5108 = vmatpush1.msra.mxu0 0.0
        %5109 = vmatprep.subr.mxu0 %v5042
        %5110 = vmatpush1.msra.mxu0 %v5041
        %5111 = vmatprep.subr.mxu0 %v5038
        %5112 = vmatpush1.msra.mxu0 %v5037
        %5113 = vmatprep.subr.mxu0 %v5034
        %5114 = vmatpush1.msra.mxu0 %v5033
        %5115 = vmatprep.subr.mxu0 %v5030
        %5116 = vmatpush1.msra.mxu0 %v5029
        %5117 = vmatprep.subr.mxu0 0.0
        %5118 = vmatpush2.msra.mxu0 0.0
        %5119 = vmatprep.subr.mxu0 0.0
        %5120 = vmatpush2.msra.mxu0 0.0
        %5121 = vmatprep.subr.mxu0 0.0
        %5122 = vmatpush2.msra.mxu0 0.0
        %5123 = vmatprep.subr.mxu0 0.0
        %5124 = vmatpush2.msra.mxu0 0.0
        %5125 = vmatprep.subr.mxu0 0.0
        %5126 = vmatpush2.msra.mxu0 0.0
        %5127 = vmatprep.subr.mxu0 0.0
        %5128 = vmatpush2.msra.mxu0 0.0
        %5129 = vmatprep.subr.mxu0 0.0
        %5130 = vmatpush2.msra.mxu0 0.0
        %5131 = vmatprep.subr.mxu0 0.0
        %5132 = vmatpush2.msra.mxu0 0.0
        %5133 = vmatprep.subr.mxu0 0.0
        %5134 = vmatpush2.msra.mxu0 0.0
        %5135 = vmatprep.subr.mxu0 0.0
        %5136 = vmatpush2.msra.mxu0 0.0
        %5137 = vmatprep.subr.mxu0 0.0
        %5138 = vmatpush2.msra.mxu0 0.0
        %5139 = vmatprep.subr.mxu0 0.0
        %5140 = vmatpush2.msra.mxu0 0.0
        %5141 = vmatprep.subr.mxu0 0.0
        %5142 = vmatpush2.msra.mxu0 0.0
        %5143 = vmatprep.subr.mxu0 0.0
        %5144 = vmatpush2.msra.mxu0 0.0
        %5145 = vmatprep.subr.mxu0 0.0
        %5146 = vmatpush2.msra.mxu0 0.0
        %5147 = vmatprep.subr.mxu0 0.0
        %5148 = vmatpush2.msra.mxu0 0.0
        %5149 = vmatprep.mubr.f32.mxu0 0.0
        %5150 = vmatmul.mubr.f32.gmra.mxu0 %v5074
        %v5151 = vpop.f32.mrf.mxu0
        %v5152 = vadd.f32 %v5056, %v5151
        %v5153 = vpop.f32.mrf.mxu0
        %v5154 = vadd.f32 %v5056, %v5153
        %5155 = vmatprep.mubr.f32.mxu0 0.0
        %5156 = vmatmul.mubr.f32.gmra.mxu0 %v5077
        %v5157 = vpop.f32.mrf.mxu0
        %v5158 = vadd.f32 %v5061, %v5157
        %v5159 = vpop.f32.mrf.mxu0
        %v5160 = vadd.f32 %v5061, %v5159
        %5161 = vmatprep.mubr.f32.mxu0 0.0
        %5162 = vmatmul.mubr.f32.gmra.mxu0 %v5080
        %v5163 = vpop.f32.mrf.mxu0
        %v5164 = vadd.f32 %v5066, %v5163
        %v5165 = vpop.f32.mrf.mxu0
        %v5166 = vadd.f32 %v5066, %v5165
        %5167 = vmatprep.mubr.f32.mxu0 0.0
        %5168 = vmatmul.mubr.f32.gmra.mxu0 %v5083
        %v5169 = vpop.f32.mrf.mxu0
        %v5170 = vadd.f32 %v5071, %v5169
        %v5171 = vpop.f32.mrf.mxu0
        %v5172 = vadd.f32 %v5071, %v5171
        %5173 = vdwg.mxu0
        %5174 = vmatprep.subr.mxu0 0.0
        %5175 = vmatpush1.msra.mxu0 0.0
        %5176 = vmatprep.subr.mxu0 0.0
        %5177 = vmatpush1.msra.mxu0 0.0
        %5178 = vmatprep.subr.mxu0 0.0
        %5179 = vmatpush1.msra.mxu0 0.0
        %5180 = vmatprep.subr.mxu0 0.0
        %5181 = vmatpush1.msra.mxu0 0.0
        %5182 = vmatprep.subr.mxu0 0.0
        %5183 = vmatpush1.msra.mxu0 0.0
        %5184 = vmatprep.subr.mxu0 0.0
        %5185 = vmatpush1.msra.mxu0 0.0
        %5186 = vmatprep.subr.mxu0 0.0
        %5187 = vmatpush1.msra.mxu0 0.0
        %5188 = vmatprep.subr.mxu0 0.0
        %5189 = vmatpush1.msra.mxu0 0.0
        %5190 = vmatprep.subr.mxu0 0.0
        %5191 = vmatpush1.msra.mxu0 0.0
        %5192 = vmatprep.subr.mxu0 0.0
        %5193 = vmatpush1.msra.mxu0 0.0
        %5194 = vmatprep.subr.mxu0 0.0
        %5195 = vmatpush1.msra.mxu0 0.0
        %5196 = vmatprep.subr.mxu0 0.0
        %5197 = vmatpush1.msra.mxu0 0.0
        %5198 = vmatprep.subr.mxu0 %v5044
        %5199 = vmatpush1.msra.mxu0 %v5043
        %5200 = vmatprep.subr.mxu0 %v5040
        %5201 = vmatpush1.msra.mxu0 %v5039
        %5202 = vmatprep.subr.mxu0 %v5036
        %5203 = vmatpush1.msra.mxu0 %v5035
        %5204 = vmatprep.subr.mxu0 %v5032
        %5205 = vmatpush1.msra.mxu0 %v5031
        %5206 = vmatprep.subr.mxu0 0.0
        %5207 = vmatpush2.msra.mxu0 0.0
        %5208 = vmatprep.subr.mxu0 0.0
        %5209 = vmatpush2.msra.mxu0 0.0
        %5210 = vmatprep.subr.mxu0 0.0
        %5211 = vmatpush2.msra.mxu0 0.0
        %5212 = vmatprep.subr.mxu0 0.0
        %5213 = vmatpush2.msra.mxu0 0.0
        %5214 = vmatprep.subr.mxu0 0.0
        %5215 = vmatpush2.msra.mxu0 0.0
        %5216 = vmatprep.subr.mxu0 0.0
        %5217 = vmatpush2.msra.mxu0 0.0
        %5218 = vmatprep.subr.mxu0 0.0
        %5219 = vmatpush2.msra.mxu0 0.0
        %5220 = vmatprep.subr.mxu0 0.0
        %5221 = vmatpush2.msra.mxu0 0.0
        %5222 = vmatprep.subr.mxu0 0.0
        %5223 = vmatpush2.msra.mxu0 0.0
        %5224 = vmatprep.subr.mxu0 0.0
        %5225 = vmatpush2.msra.mxu0 0.0
        %5226 = vmatprep.subr.mxu0 0.0
        %5227 = vmatpush2.msra.mxu0 0.0
        %5228 = vmatprep.subr.mxu0 0.0
        %5229 = vmatpush2.msra.mxu0 0.0
        %5230 = vmatprep.subr.mxu0 0.0
        %5231 = vmatpush2.msra.mxu0 0.0
        %5232 = vmatprep.subr.mxu0 0.0
        %5233 = vmatpush2.msra.mxu0 0.0
        %5234 = vmatprep.subr.mxu0 0.0
        %5235 = vmatpush2.msra.mxu0 0.0
        %5236 = vmatprep.subr.mxu0 0.0
        %5237 = vmatpush2.msra.mxu0 0.0
        %5238 = vmatprep.mubr.f32.mxu0 0.0
        %5239 = vmatmul.mubr.f32.gmra.mxu0 %v5074
        %v5240 = vpop.f32.mrf.mxu0
        %v5241 = vadd.f32 %v5056, %v5240
        %v5242 = vpop.f32.mrf.mxu0
        %v5243 = vadd.f32 %v5056, %v5242
        %5244 = vmatprep.mubr.f32.mxu0 0.0
        %5245 = vmatmul.mubr.f32.gmra.mxu0 %v5077
        %v5246 = vpop.f32.mrf.mxu0
        %v5247 = vadd.f32 %v5061, %v5246
        %v5248 = vpop.f32.mrf.mxu0
        %v5249 = vadd.f32 %v5061, %v5248
        %5250 = vmatprep.mubr.f32.mxu0 0.0
        %5251 = vmatmul.mubr.f32.gmra.mxu0 %v5080
        %v5252 = vpop.f32.mrf.mxu0
        %v5253 = vadd.f32 %v5066, %v5252
        %v5254 = vpop.f32.mrf.mxu0
        %v5255 = vadd.f32 %v5066, %v5254
        %5256 = vmatprep.mubr.f32.mxu0 0.0
        %5257 = vmatmul.mubr.f32.gmra.mxu0 %v5083
        %v5258 = vpop.f32.mrf.mxu0
        %v5259 = vadd.f32 %v5071, %v5258
        %v5260 = vpop.f32.mrf.mxu0
        %v5261 = vadd.f32 %v5071, %v5260
        %5262 = vdwg.mxu0
        %v5263 = vtanh.pop %v5152
        %v5264 = vtanh.pop %v5154
        %v5265 = vtanh.pop %v5241
        %v5266 = vtanh.pop %v5243
        %v5267 = vtanh.pop %v5158
        %v5268 = vtanh.pop %v5160
        %v5269 = vtanh.pop %v5247
        %v5270 = vtanh.pop %v5249
        %v5271 = vtanh.pop %v5164
        %v5272 = vtanh.pop %v5166
        %v5273 = vtanh.pop %v5253
        %v5274 = vtanh.pop %v5255
        %v5275 = vtanh.pop %v5170
        %v5276 = vtanh.pop %v5172
        %v5277 = vtanh.pop %v5259
        %v5278 = vtanh.pop %v5261
        %v5279 = vld [vmem:[#allocation3] sm:$0xff]
        %v5280 = vld [vmem:[#allocation3 + $0x8] sm:$0xff]
        %v5281 = vld [vmem:[#allocation3 + $0x10] sm:$0xff]
        %v5282 = vld [vmem:[#allocation3 + $0x18] sm:$0xff]
        %v5283 = vld [vmem:[%s6] sm:$0xff]
        %v5284 = vld [vmem:[%s6 + $0x8] sm:$0xff]
        %v5285 = vld [vmem:[%s6 + $0x10] sm:$0xff]
        %v5286 = vld [vmem:[%s6 + $0x18] sm:$0xff]
        %5288 = vset.pattern.permute.xlu0 0
        %5289 = vperm.xlu0 %5288, %v5283
        %v5290 = vpop.permute.xlu0 %5289
        %5293 = vset.pattern.permute.xlu0 0
        %5294 = vperm.xlu0 %5293, %v5284
        %v5295 = vpop.permute.xlu0 %5294
        %5298 = vset.pattern.permute.xlu0 0
        %5299 = vperm.xlu0 %5298, %v5285
        %v5300 = vpop.permute.xlu0 %5299
        %5303 = vset.pattern.permute.xlu0 0
        %5304 = vperm.xlu0 %5303, %v5286
        %v5305 = vpop.permute.xlu0 %5304
        %v5308 = vsel %vm667, %v5279, 0
        %v5311 = vsel %vm667, %v5280, 0
        %v5314 = vsel %vm667, %v5281, 0
        %v5317 = vsel %vm667, %v5282, 0
        %5319 = vmatprep.subr.mxu0 0.0
        %5320 = vmatpush1.msra.mxu0 0.0
        %5321 = vmatprep.subr.mxu0 0.0
        %5322 = vmatpush1.msra.mxu0 0.0
        %5323 = vmatprep.subr.mxu0 0.0
        %5324 = vmatpush1.msra.mxu0 0.0
        %5325 = vmatprep.subr.mxu0 0.0
        %5326 = vmatpush1.msra.mxu0 0.0
        %5327 = vmatprep.subr.mxu0 0.0
        %5328 = vmatpush1.msra.mxu0 0.0
        %5329 = vmatprep.subr.mxu0 0.0
        %5330 = vmatpush1.msra.mxu0 0.0
        %5331 = vmatprep.subr.mxu0 0.0
        %5332 = vmatpush1.msra.mxu0 0.0
        %5333 = vmatprep.subr.mxu0 0.0
        %5334 = vmatpush1.msra.mxu0 0.0
        %5335 = vmatprep.subr.mxu0 0.0
        %5336 = vmatpush1.msra.mxu0 0.0
        %5337 = vmatprep.subr.mxu0 0.0
        %5338 = vmatpush1.msra.mxu0 0.0
        %5339 = vmatprep.subr.mxu0 0.0
        %5340 = vmatpush1.msra.mxu0 0.0
        %5341 = vmatprep.subr.mxu0 0.0
        %5342 = vmatpush1.msra.mxu0 0.0
        %5343 = vmatprep.subr.mxu0 %v5276
        %5344 = vmatpush1.msra.mxu0 %v5275
        %5345 = vmatprep.subr.mxu0 %v5272
        %5346 = vmatpush1.msra.mxu0 %v5271
        %5347 = vmatprep.subr.mxu0 %v5268
        %5348 = vmatpush1.msra.mxu0 %v5267
        %5349 = vmatprep.subr.mxu0 %v5264
        %5350 = vmatpush1.msra.mxu0 %v5263
        %5351 = vmatprep.subr.mxu0 0.0
        %5352 = vmatpush2.msra.mxu0 0.0
        %5353 = vmatprep.subr.mxu0 0.0
        %5354 = vmatpush2.msra.mxu0 0.0
        %5355 = vmatprep.subr.mxu0 0.0
        %5356 = vmatpush2.msra.mxu0 0.0
        %5357 = vmatprep.subr.mxu0 0.0
        %5358 = vmatpush2.msra.mxu0 0.0
        %5359 = vmatprep.subr.mxu0 0.0
        %5360 = vmatpush2.msra.mxu0 0.0
        %5361 = vmatprep.subr.mxu0 0.0
        %5362 = vmatpush2.msra.mxu0 0.0
        %5363 = vmatprep.subr.mxu0 0.0
        %5364 = vmatpush2.msra.mxu0 0.0
        %5365 = vmatprep.subr.mxu0 0.0
        %5366 = vmatpush2.msra.mxu0 0.0
        %5367 = vmatprep.subr.mxu0 0.0
        %5368 = vmatpush2.msra.mxu0 0.0
        %5369 = vmatprep.subr.mxu0 0.0
        %5370 = vmatpush2.msra.mxu0 0.0
        %5371 = vmatprep.subr.mxu0 0.0
        %5372 = vmatpush2.msra.mxu0 0.0
        %5373 = vmatprep.subr.mxu0 0.0
        %5374 = vmatpush2.msra.mxu0 0.0
        %5375 = vmatprep.subr.mxu0 0.0
        %5376 = vmatpush2.msra.mxu0 0.0
        %5377 = vmatprep.subr.mxu0 0.0
        %5378 = vmatpush2.msra.mxu0 0.0
        %5379 = vmatprep.subr.mxu0 0.0
        %5380 = vmatpush2.msra.mxu0 0.0
        %5381 = vmatprep.subr.mxu0 0.0
        %5382 = vmatpush2.msra.mxu0 0.0
        %5383 = vmatprep.mubr.f32.mxu0 0.0
        %5384 = vmatmul.mubr.f32.gmra.mxu0 %v5308
        %v5385 = vpop.f32.mrf.mxu0
        %v5386 = vadd.f32 %v5290, %v5385
        %v5387 = vpop.f32.mrf.mxu0
        %v5388 = vadd.f32 %v5290, %v5387
        %5389 = vmatprep.mubr.f32.mxu0 0.0
        %5390 = vmatmul.mubr.f32.gmra.mxu0 %v5311
        %v5391 = vpop.f32.mrf.mxu0
        %v5392 = vadd.f32 %v5295, %v5391
        %v5393 = vpop.f32.mrf.mxu0
        %v5394 = vadd.f32 %v5295, %v5393
        %5395 = vmatprep.mubr.f32.mxu0 0.0
        %5396 = vmatmul.mubr.f32.gmra.mxu0 %v5314
        %v5397 = vpop.f32.mrf.mxu0
        %v5398 = vadd.f32 %v5300, %v5397
        %v5399 = vpop.f32.mrf.mxu0
        %v5400 = vadd.f32 %v5300, %v5399
        %5401 = vmatprep.mubr.f32.mxu0 0.0
        %5402 = vmatmul.mubr.f32.gmra.mxu0 %v5317
        %v5403 = vpop.f32.mrf.mxu0
        %v5404 = vadd.f32 %v5305, %v5403
        %v5405 = vpop.f32.mrf.mxu0
        %v5406 = vadd.f32 %v5305, %v5405
        %5407 = vdwg.mxu0
        %5408 = vmatprep.subr.mxu0 0.0
        %5409 = vmatpush1.msra.mxu0 0.0
        %5410 = vmatprep.subr.mxu0 0.0
        %5411 = vmatpush1.msra.mxu0 0.0
        %5412 = vmatprep.subr.mxu0 0.0
        %5413 = vmatpush1.msra.mxu0 0.0
        %5414 = vmatprep.subr.mxu0 0.0
        %5415 = vmatpush1.msra.mxu0 0.0
        %5416 = vmatprep.subr.mxu0 0.0
        %5417 = vmatpush1.msra.mxu0 0.0
        %5418 = vmatprep.subr.mxu0 0.0
        %5419 = vmatpush1.msra.mxu0 0.0
        %5420 = vmatprep.subr.mxu0 0.0
        %5421 = vmatpush1.msra.mxu0 0.0
        %5422 = vmatprep.subr.mxu0 0.0
        %5423 = vmatpush1.msra.mxu0 0.0
        %5424 = vmatprep.subr.mxu0 0.0
        %5425 = vmatpush1.msra.mxu0 0.0
        %5426 = vmatprep.subr.mxu0 0.0
        %5427 = vmatpush1.msra.mxu0 0.0
        %5428 = vmatprep.subr.mxu0 0.0
        %5429 = vmatpush1.msra.mxu0 0.0
        %5430 = vmatprep.subr.mxu0 0.0
        %5431 = vmatpush1.msra.mxu0 0.0
        %5432 = vmatprep.subr.mxu0 %v5278
        %5433 = vmatpush1.msra.mxu0 %v5277
        %5434 = vmatprep.subr.mxu0 %v5274
        %5435 = vmatpush1.msra.mxu0 %v5273
        %5436 = vmatprep.subr.mxu0 %v5270
        %5437 = vmatpush1.msra.mxu0 %v5269
        %5438 = vmatprep.subr.mxu0 %v5266
        %5439 = vmatpush1.msra.mxu0 %v5265
        %5440 = vmatprep.subr.mxu0 0.0
        %5441 = vmatpush2.msra.mxu0 0.0
        %5442 = vmatprep.subr.mxu0 0.0
        %5443 = vmatpush2.msra.mxu0 0.0
        %5444 = vmatprep.subr.mxu0 0.0
        %5445 = vmatpush2.msra.mxu0 0.0
        %5446 = vmatprep.subr.mxu0 0.0
        %5447 = vmatpush2.msra.mxu0 0.0
        %5448 = vmatprep.subr.mxu0 0.0
        %5449 = vmatpush2.msra.mxu0 0.0
        %5450 = vmatprep.subr.mxu0 0.0
        %5451 = vmatpush2.msra.mxu0 0.0
        %5452 = vmatprep.subr.mxu0 0.0
        %5453 = vmatpush2.msra.mxu0 0.0
        %5454 = vmatprep.subr.mxu0 0.0
        %5455 = vmatpush2.msra.mxu0 0.0
        %5456 = vmatprep.subr.mxu0 0.0
        %5457 = vmatpush2.msra.mxu0 0.0
        %5458 = vmatprep.subr.mxu0 0.0
        %5459 = vmatpush2.msra.mxu0 0.0
        %5460 = vmatprep.subr.mxu0 0.0
        %5461 = vmatpush2.msra.mxu0 0.0
        %5462 = vmatprep.subr.mxu0 0.0
        %5463 = vmatpush2.msra.mxu0 0.0
        %5464 = vmatprep.subr.mxu0 0.0
        %5465 = vmatpush2.msra.mxu0 0.0
        %5466 = vmatprep.subr.mxu0 0.0
        %5467 = vmatpush2.msra.mxu0 0.0
        %5468 = vmatprep.subr.mxu0 0.0
        %5469 = vmatpush2.msra.mxu0 0.0
        %5470 = vmatprep.subr.mxu0 0.0
        %5471 = vmatpush2.msra.mxu0 0.0
        %5472 = vmatprep.mubr.f32.mxu0 0.0
        %5473 = vmatmul.mubr.f32.gmra.mxu0 %v5308
        %v5474 = vpop.f32.mrf.mxu0
        %v5475 = vadd.f32 %v5290, %v5474
        %v5476 = vpop.f32.mrf.mxu0
        %v5477 = vadd.f32 %v5290, %v5476
        %5478 = vmatprep.mubr.f32.mxu0 0.0
        %5479 = vmatmul.mubr.f32.gmra.mxu0 %v5311
        %v5480 = vpop.f32.mrf.mxu0
        %v5481 = vadd.f32 %v5295, %v5480
        %v5482 = vpop.f32.mrf.mxu0
        %v5483 = vadd.f32 %v5295, %v5482
        %5484 = vmatprep.mubr.f32.mxu0 0.0
        %5485 = vmatmul.mubr.f32.gmra.mxu0 %v5314
        %v5486 = vpop.f32.mrf.mxu0
        %v5487 = vadd.f32 %v5300, %v5486
        %v5488 = vpop.f32.mrf.mxu0
        %v5489 = vadd.f32 %v5300, %v5488
        %5490 = vmatprep.mubr.f32.mxu0 0.0
        %5491 = vmatmul.mubr.f32.gmra.mxu0 %v5317
        %v5492 = vpop.f32.mrf.mxu0
        %v5493 = vadd.f32 %v5305, %v5492
        %v5494 = vpop.f32.mrf.mxu0
        %v5495 = vadd.f32 %v5305, %v5494
        %5496 = vdwg.mxu0
        %v5497 = vtanh.pop %v5386
        %v5498 = vtanh.pop %v5388
        %v5499 = vtanh.pop %v5475
        %v5500 = vtanh.pop %v5477
        %v5501 = vtanh.pop %v5392
        %v5502 = vtanh.pop %v5394
        %v5503 = vtanh.pop %v5481
        %v5504 = vtanh.pop %v5483
        %v5505 = vtanh.pop %v5398
        %v5506 = vtanh.pop %v5400
        %v5507 = vtanh.pop %v5487
        %v5508 = vtanh.pop %v5489
        %v5509 = vtanh.pop %v5404
        %v5510 = vtanh.pop %v5406
        %v5511 = vtanh.pop %v5493
        %v5512 = vtanh.pop %v5495
        %v5513 = vadd.f32 %v5497, %v5029
        %v5514 = vadd.f32 %v5498, %v5030
        %v5515 = vadd.f32 %v5499, %v5031
        %v5516 = vadd.f32 %v5500, %v5032
        %v5517 = vadd.f32 %v5501, %v5033
        %v5518 = vadd.f32 %v5502, %v5034
        %v5519 = vadd.f32 %v5503, %v5035
        %v5520 = vadd.f32 %v5504, %v5036
        %v5521 = vadd.f32 %v5505, %v5037
        %v5522 = vadd.f32 %v5506, %v5038
        %v5523 = vadd.f32 %v5507, %v5039
        %v5524 = vadd.f32 %v5508, %v5040
        %v5525 = vadd.f32 %v5509, %v5041
        %v5526 = vadd.f32 %v5510, %v5042
        %v5527 = vadd.f32 %v5511, %v5043
        %v5528 = vadd.f32 %v5512, %v5044
        %v5529 = vld [vmem:[%s1124] sm:$0xff]
        %v5530 = vld [vmem:[%s1124 + $0x8] sm:$0xff]
        %v5531 = vld [vmem:[%s1124 + $0x10] sm:$0xff]
        %v5532 = vld [vmem:[%s1124 + $0x18] sm:$0xff]
        %v5533 = vld [vmem:[%s1129] sm:$0xff]
        %v5534 = vld [vmem:[%s1129 + $0x8] sm:$0xff]
        %v5535 = vld [vmem:[%s1129 + $0x10] sm:$0xff]
        %v5536 = vld [vmem:[%s1129 + $0x18] sm:$0xff]
        %5538 = vset.pattern.permute.xlu0 0
        %5539 = vperm.xlu0 %5538, %v5533
        %v5540 = vpop.permute.xlu0 %5539
        %5543 = vset.pattern.permute.xlu0 0
        %5544 = vperm.xlu0 %5543, %v5534
        %v5545 = vpop.permute.xlu0 %5544
        %5548 = vset.pattern.permute.xlu0 0
        %5549 = vperm.xlu0 %5548, %v5535
        %v5550 = vpop.permute.xlu0 %5549
        %5553 = vset.pattern.permute.xlu0 0
        %5554 = vperm.xlu0 %5553, %v5536
        %v5555 = vpop.permute.xlu0 %5554
        %v5558 = vsel %vm667, %v5529, 0
        %v5561 = vsel %vm667, %v5530, 0
        %v5564 = vsel %vm667, %v5531, 0
        %v5567 = vsel %vm667, %v5532, 0
        %5569 = vmatprep.subr.mxu0 0.0
        %5570 = vmatpush1.msra.mxu0 0.0
        %5571 = vmatprep.subr.mxu0 0.0
        %5572 = vmatpush1.msra.mxu0 0.0
        %5573 = vmatprep.subr.mxu0 0.0
        %5574 = vmatpush1.msra.mxu0 0.0
        %5575 = vmatprep.subr.mxu0 0.0
        %5576 = vmatpush1.msra.mxu0 0.0
        %5577 = vmatprep.subr.mxu0 0.0
        %5578 = vmatpush1.msra.mxu0 0.0
        %5579 = vmatprep.subr.mxu0 0.0
        %5580 = vmatpush1.msra.mxu0 0.0
        %5581 = vmatprep.subr.mxu0 0.0
        %5582 = vmatpush1.msra.mxu0 0.0
        %5583 = vmatprep.subr.mxu0 0.0
        %5584 = vmatpush1.msra.mxu0 0.0
        %5585 = vmatprep.subr.mxu0 0.0
        %5586 = vmatpush1.msra.mxu0 0.0
        %5587 = vmatprep.subr.mxu0 0.0
        %5588 = vmatpush1.msra.mxu0 0.0
        %5589 = vmatprep.subr.mxu0 0.0
        %5590 = vmatpush1.msra.mxu0 0.0
        %5591 = vmatprep.subr.mxu0 0.0
        %5592 = vmatpush1.msra.mxu0 0.0
        %5593 = vmatprep.subr.mxu0 %v5526
        %5594 = vmatpush1.msra.mxu0 %v5525
        %5595 = vmatprep.subr.mxu0 %v5522
        %5596 = vmatpush1.msra.mxu0 %v5521
        %5597 = vmatprep.subr.mxu0 %v5518
        %5598 = vmatpush1.msra.mxu0 %v5517
        %5599 = vmatprep.subr.mxu0 %v5514
        %5600 = vmatpush1.msra.mxu0 %v5513
        %5601 = vmatprep.subr.mxu0 0.0
        %5602 = vmatpush2.msra.mxu0 0.0
        %5603 = vmatprep.subr.mxu0 0.0
        %5604 = vmatpush2.msra.mxu0 0.0
        %5605 = vmatprep.subr.mxu0 0.0
        %5606 = vmatpush2.msra.mxu0 0.0
        %5607 = vmatprep.subr.mxu0 0.0
        %5608 = vmatpush2.msra.mxu0 0.0
        %5609 = vmatprep.subr.mxu0 0.0
        %5610 = vmatpush2.msra.mxu0 0.0
        %5611 = vmatprep.subr.mxu0 0.0
        %5612 = vmatpush2.msra.mxu0 0.0
        %5613 = vmatprep.subr.mxu0 0.0
        %5614 = vmatpush2.msra.mxu0 0.0
        %5615 = vmatprep.subr.mxu0 0.0
        %5616 = vmatpush2.msra.mxu0 0.0
        %5617 = vmatprep.subr.mxu0 0.0
        %5618 = vmatpush2.msra.mxu0 0.0
        %5619 = vmatprep.subr.mxu0 0.0
        %5620 = vmatpush2.msra.mxu0 0.0
        %5621 = vmatprep.subr.mxu0 0.0
        %5622 = vmatpush2.msra.mxu0 0.0
        %5623 = vmatprep.subr.mxu0 0.0
        %5624 = vmatpush2.msra.mxu0 0.0
        %5625 = vmatprep.subr.mxu0 0.0
        %5626 = vmatpush2.msra.mxu0 0.0
        %5627 = vmatprep.subr.mxu0 0.0
        %5628 = vmatpush2.msra.mxu0 0.0
        %5629 = vmatprep.subr.mxu0 0.0
        %5630 = vmatpush2.msra.mxu0 0.0
        %5631 = vmatprep.subr.mxu0 0.0
        %5632 = vmatpush2.msra.mxu0 0.0
        %5633 = vmatprep.mubr.f32.mxu0 0.0
        %5634 = vmatmul.mubr.f32.gmra.mxu0 %v5558
        %v5635 = vpop.f32.mrf.mxu0
        %v5636 = vadd.f32 %v5540, %v5635
        %v5637 = vpop.f32.mrf.mxu0
        %v5638 = vadd.f32 %v5540, %v5637
        %5639 = vmatprep.mubr.f32.mxu0 0.0
        %5640 = vmatmul.mubr.f32.gmra.mxu0 %v5561
        %v5641 = vpop.f32.mrf.mxu0
        %v5642 = vadd.f32 %v5545, %v5641
        %v5643 = vpop.f32.mrf.mxu0
        %v5644 = vadd.f32 %v5545, %v5643
        %5645 = vmatprep.mubr.f32.mxu0 0.0
        %5646 = vmatmul.mubr.f32.gmra.mxu0 %v5564
        %v5647 = vpop.f32.mrf.mxu0
        %v5648 = vadd.f32 %v5550, %v5647
        %v5649 = vpop.f32.mrf.mxu0
        %v5650 = vadd.f32 %v5550, %v5649
        %5651 = vmatprep.mubr.f32.mxu0 0.0
        %5652 = vmatmul.mubr.f32.gmra.mxu0 %v5567
        %v5653 = vpop.f32.mrf.mxu0
        %v5654 = vadd.f32 %v5555, %v5653
        %v5655 = vpop.f32.mrf.mxu0
        %v5656 = vadd.f32 %v5555, %v5655
        %5657 = vdwg.mxu0
        %5658 = vmatprep.subr.mxu0 0.0
        %5659 = vmatpush1.msra.mxu0 0.0
        %5660 = vmatprep.subr.mxu0 0.0
        %5661 = vmatpush1.msra.mxu0 0.0
        %5662 = vmatprep.subr.mxu0 0.0
        %5663 = vmatpush1.msra.mxu0 0.0
        %5664 = vmatprep.subr.mxu0 0.0
        %5665 = vmatpush1.msra.mxu0 0.0
        %5666 = vmatprep.subr.mxu0 0.0
        %5667 = vmatpush1.msra.mxu0 0.0
        %5668 = vmatprep.subr.mxu0 0.0
        %5669 = vmatpush1.msra.mxu0 0.0
        %5670 = vmatprep.subr.mxu0 0.0
        %5671 = vmatpush1.msra.mxu0 0.0
        %5672 = vmatprep.subr.mxu0 0.0
        %5673 = vmatpush1.msra.mxu0 0.0
        %5674 = vmatprep.subr.mxu0 0.0
        %5675 = vmatpush1.msra.mxu0 0.0
        %5676 = vmatprep.subr.mxu0 0.0
        %5677 = vmatpush1.msra.mxu0 0.0
        %5678 = vmatprep.subr.mxu0 0.0
        %5679 = vmatpush1.msra.mxu0 0.0
        %5680 = vmatprep.subr.mxu0 0.0
        %5681 = vmatpush1.msra.mxu0 0.0
        %5682 = vmatprep.subr.mxu0 %v5528
        %5683 = vmatpush1.msra.mxu0 %v5527
        %5684 = vmatprep.subr.mxu0 %v5524
        %5685 = vmatpush1.msra.mxu0 %v5523
        %5686 = vmatprep.subr.mxu0 %v5520
        %5687 = vmatpush1.msra.mxu0 %v5519
        %5688 = vmatprep.subr.mxu0 %v5516
        %5689 = vmatpush1.msra.mxu0 %v5515
        %5690 = vmatprep.subr.mxu0 0.0
        %5691 = vmatpush2.msra.mxu0 0.0
        %5692 = vmatprep.subr.mxu0 0.0
        %5693 = vmatpush2.msra.mxu0 0.0
        %5694 = vmatprep.subr.mxu0 0.0
        %5695 = vmatpush2.msra.mxu0 0.0
        %5696 = vmatprep.subr.mxu0 0.0
        %5697 = vmatpush2.msra.mxu0 0.0
        %5698 = vmatprep.subr.mxu0 0.0
        %5699 = vmatpush2.msra.mxu0 0.0
        %5700 = vmatprep.subr.mxu0 0.0
        %5701 = vmatpush2.msra.mxu0 0.0
        %5702 = vmatprep.subr.mxu0 0.0
        %5703 = vmatpush2.msra.mxu0 0.0
        %5704 = vmatprep.subr.mxu0 0.0
        %5705 = vmatpush2.msra.mxu0 0.0
        %5706 = vmatprep.subr.mxu0 0.0
        %5707 = vmatpush2.msra.mxu0 0.0
        %5708 = vmatprep.subr.mxu0 0.0
        %5709 = vmatpush2.msra.mxu0 0.0
        %5710 = vmatprep.subr.mxu0 0.0
        %5711 = vmatpush2.msra.mxu0 0.0
        %5712 = vmatprep.subr.mxu0 0.0
        %5713 = vmatpush2.msra.mxu0 0.0
        %5714 = vmatprep.subr.mxu0 0.0
        %5715 = vmatpush2.msra.mxu0 0.0
        %5716 = vmatprep.subr.mxu0 0.0
        %5717 = vmatpush2.msra.mxu0 0.0
        %5718 = vmatprep.subr.mxu0 0.0
        %5719 = vmatpush2.msra.mxu0 0.0
        %5720 = vmatprep.subr.mxu0 0.0
        %5721 = vmatpush2.msra.mxu0 0.0
        %5722 = vmatprep.mubr.f32.mxu0 0.0
        %5723 = vmatmul.mubr.f32.gmra.mxu0 %v5558
        %v5724 = vpop.f32.mrf.mxu0
        %v5725 = vadd.f32 %v5540, %v5724
        %v5726 = vpop.f32.mrf.mxu0
        %v5727 = vadd.f32 %v5540, %v5726
        %5728 = vmatprep.mubr.f32.mxu0 0.0
        %5729 = vmatmul.mubr.f32.gmra.mxu0 %v5561
        %v5730 = vpop.f32.mrf.mxu0
        %v5731 = vadd.f32 %v5545, %v5730
        %v5732 = vpop.f32.mrf.mxu0
        %v5733 = vadd.f32 %v5545, %v5732
        %5734 = vmatprep.mubr.f32.mxu0 0.0
        %5735 = vmatmul.mubr.f32.gmra.mxu0 %v5564
        %v5736 = vpop.f32.mrf.mxu0
        %v5737 = vadd.f32 %v5550, %v5736
        %v5738 = vpop.f32.mrf.mxu0
        %v5739 = vadd.f32 %v5550, %v5738
        %5740 = vmatprep.mubr.f32.mxu0 0.0
        %5741 = vmatmul.mubr.f32.gmra.mxu0 %v5567
        %v5742 = vpop.f32.mrf.mxu0
        %v5743 = vadd.f32 %v5555, %v5742
        %v5744 = vpop.f32.mrf.mxu0
        %v5745 = vadd.f32 %v5555, %v5744
        %5746 = vdwg.mxu0
        %v5747 = vtanh.pop %v5636
        %v5748 = vtanh.pop %v5638
        %v5749 = vtanh.pop %v5725
        %v5750 = vtanh.pop %v5727
        %v5751 = vtanh.pop %v5642
        %v5752 = vtanh.pop %v5644
        %v5753 = vtanh.pop %v5731
        %v5754 = vtanh.pop %v5733
        %v5755 = vtanh.pop %v5648
        %v5756 = vtanh.pop %v5650
        %v5757 = vtanh.pop %v5737
        %v5758 = vtanh.pop %v5739
        %v5759 = vtanh.pop %v5654
        %v5760 = vtanh.pop %v5656
        %v5761 = vtanh.pop %v5743
        %v5762 = vtanh.pop %v5745
        %v5763 = vld [vmem:[%s1360] sm:$0xff]
        %v5764 = vld [vmem:[%s1360 + $0x8] sm:$0xff]
        %v5765 = vld [vmem:[%s1360 + $0x10] sm:$0xff]
        %v5766 = vld [vmem:[%s1360 + $0x18] sm:$0xff]
        %v5767 = vld [vmem:[%s1365] sm:$0xff]
        %v5768 = vld [vmem:[%s1365 + $0x8] sm:$0xff]
        %v5769 = vld [vmem:[%s1365 + $0x10] sm:$0xff]
        %v5770 = vld [vmem:[%s1365 + $0x18] sm:$0xff]
        %5772 = vset.pattern.permute.xlu0 0
        %5773 = vperm.xlu0 %5772, %v5767
        %v5774 = vpop.permute.xlu0 %5773
        %5777 = vset.pattern.permute.xlu0 0
        %5778 = vperm.xlu0 %5777, %v5768
        %v5779 = vpop.permute.xlu0 %5778
        %5782 = vset.pattern.permute.xlu0 0
        %5783 = vperm.xlu0 %5782, %v5769
        %v5784 = vpop.permute.xlu0 %5783
        %5787 = vset.pattern.permute.xlu0 0
        %5788 = vperm.xlu0 %5787, %v5770
        %v5789 = vpop.permute.xlu0 %5788
        %v5792 = vsel %vm667, %v5763, 0
        %v5795 = vsel %vm667, %v5764, 0
        %v5798 = vsel %vm667, %v5765, 0
        %v5801 = vsel %vm667, %v5766, 0
        %5803 = vmatprep.subr.mxu0 0.0
        %5804 = vmatpush1.msra.mxu0 0.0
        %5805 = vmatprep.subr.mxu0 0.0
        %5806 = vmatpush1.msra.mxu0 0.0
        %5807 = vmatprep.subr.mxu0 0.0
        %5808 = vmatpush1.msra.mxu0 0.0
        %5809 = vmatprep.subr.mxu0 0.0
        %5810 = vmatpush1.msra.mxu0 0.0
        %5811 = vmatprep.subr.mxu0 0.0
        %5812 = vmatpush1.msra.mxu0 0.0
        %5813 = vmatprep.subr.mxu0 0.0
        %5814 = vmatpush1.msra.mxu0 0.0
        %5815 = vmatprep.subr.mxu0 0.0
        %5816 = vmatpush1.msra.mxu0 0.0
        %5817 = vmatprep.subr.mxu0 0.0
        %5818 = vmatpush1.msra.mxu0 0.0
        %5819 = vmatprep.subr.mxu0 0.0
        %5820 = vmatpush1.msra.mxu0 0.0
        %5821 = vmatprep.subr.mxu0 0.0
        %5822 = vmatpush1.msra.mxu0 0.0
        %5823 = vmatprep.subr.mxu0 0.0
        %5824 = vmatpush1.msra.mxu0 0.0
        %5825 = vmatprep.subr.mxu0 0.0
        %5826 = vmatpush1.msra.mxu0 0.0
        %5827 = vmatprep.subr.mxu0 %v5760
        %5828 = vmatpush1.msra.mxu0 %v5759
        %5829 = vmatprep.subr.mxu0 %v5756
        %5830 = vmatpush1.msra.mxu0 %v5755
        %5831 = vmatprep.subr.mxu0 %v5752
        %5832 = vmatpush1.msra.mxu0 %v5751
        %5833 = vmatprep.subr.mxu0 %v5748
        %5834 = vmatpush1.msra.mxu0 %v5747
        %5835 = vmatprep.subr.mxu0 0.0
        %5836 = vmatpush2.msra.mxu0 0.0
        %5837 = vmatprep.subr.mxu0 0.0
        %5838 = vmatpush2.msra.mxu0 0.0
        %5839 = vmatprep.subr.mxu0 0.0
        %5840 = vmatpush2.msra.mxu0 0.0
        %5841 = vmatprep.subr.mxu0 0.0
        %5842 = vmatpush2.msra.mxu0 0.0
        %5843 = vmatprep.subr.mxu0 0.0
        %5844 = vmatpush2.msra.mxu0 0.0
        %5845 = vmatprep.subr.mxu0 0.0
        %5846 = vmatpush2.msra.mxu0 0.0
        %5847 = vmatprep.subr.mxu0 0.0
        %5848 = vmatpush2.msra.mxu0 0.0
        %5849 = vmatprep.subr.mxu0 0.0
        %5850 = vmatpush2.msra.mxu0 0.0
        %5851 = vmatprep.subr.mxu0 0.0
        %5852 = vmatpush2.msra.mxu0 0.0
        %5853 = vmatprep.subr.mxu0 0.0
        %5854 = vmatpush2.msra.mxu0 0.0
        %5855 = vmatprep.subr.mxu0 0.0
        %5856 = vmatpush2.msra.mxu0 0.0
        %5857 = vmatprep.subr.mxu0 0.0
        %5858 = vmatpush2.msra.mxu0 0.0
        %5859 = vmatprep.subr.mxu0 0.0
        %5860 = vmatpush2.msra.mxu0 0.0
        %5861 = vmatprep.subr.mxu0 0.0
        %5862 = vmatpush2.msra.mxu0 0.0
        %5863 = vmatprep.subr.mxu0 0.0
        %5864 = vmatpush2.msra.mxu0 0.0
        %5865 = vmatprep.subr.mxu0 0.0
        %5866 = vmatpush2.msra.mxu0 0.0
        %5867 = vmatprep.mubr.f32.mxu0 0.0
        %5868 = vmatmul.mubr.f32.gmra.mxu0 %v5792
        %v5869 = vpop.f32.mrf.mxu0
        %v5870 = vadd.f32 %v5774, %v5869
        %v5871 = vpop.f32.mrf.mxu0
        %v5872 = vadd.f32 %v5774, %v5871
        %5873 = vmatprep.mubr.f32.mxu0 0.0
        %5874 = vmatmul.mubr.f32.gmra.mxu0 %v5795
        %v5875 = vpop.f32.mrf.mxu0
        %v5876 = vadd.f32 %v5779, %v5875
        %v5877 = vpop.f32.mrf.mxu0
        %v5878 = vadd.f32 %v5779, %v5877
        %5879 = vmatprep.mubr.f32.mxu0 0.0
        %5880 = vmatmul.mubr.f32.gmra.mxu0 %v5798
        %v5881 = vpop.f32.mrf.mxu0
        %v5882 = vadd.f32 %v5784, %v5881
        %v5883 = vpop.f32.mrf.mxu0
        %v5884 = vadd.f32 %v5784, %v5883
        %5885 = vmatprep.mubr.f32.mxu0 0.0
        %5886 = vmatmul.mubr.f32.gmra.mxu0 %v5801
        %v5887 = vpop.f32.mrf.mxu0
        %v5888 = vadd.f32 %v5789, %v5887
        %v5889 = vpop.f32.mrf.mxu0
        %v5890 = vadd.f32 %v5789, %v5889
        %5891 = vdwg.mxu0
        %5892 = vmatprep.subr.mxu0 0.0
        %5893 = vmatpush1.msra.mxu0 0.0
        %5894 = vmatprep.subr.mxu0 0.0
        %5895 = vmatpush1.msra.mxu0 0.0
        %5896 = vmatprep.subr.mxu0 0.0
        %5897 = vmatpush1.msra.mxu0 0.0
        %5898 = vmatprep.subr.mxu0 0.0
        %5899 = vmatpush1.msra.mxu0 0.0
        %5900 = vmatprep.subr.mxu0 0.0
        %5901 = vmatpush1.msra.mxu0 0.0
        %5902 = vmatprep.subr.mxu0 0.0
        %5903 = vmatpush1.msra.mxu0 0.0
        %5904 = vmatprep.subr.mxu0 0.0
        %5905 = vmatpush1.msra.mxu0 0.0
        %5906 = vmatprep.subr.mxu0 0.0
        %5907 = vmatpush1.msra.mxu0 0.0
        %5908 = vmatprep.subr.mxu0 0.0
        %5909 = vmatpush1.msra.mxu0 0.0
        %5910 = vmatprep.subr.mxu0 0.0
        %5911 = vmatpush1.msra.mxu0 0.0
        %5912 = vmatprep.subr.mxu0 0.0
        %5913 = vmatpush1.msra.mxu0 0.0
        %5914 = vmatprep.subr.mxu0 0.0
        %5915 = vmatpush1.msra.mxu0 0.0
        %5916 = vmatprep.subr.mxu0 %v5762
        %5917 = vmatpush1.msra.mxu0 %v5761
        %5918 = vmatprep.subr.mxu0 %v5758
        %5919 = vmatpush1.msra.mxu0 %v5757
        %5920 = vmatprep.subr.mxu0 %v5754
        %5921 = vmatpush1.msra.mxu0 %v5753
        %5922 = vmatprep.subr.mxu0 %v5750
        %5923 = vmatpush1.msra.mxu0 %v5749
        %5924 = vmatprep.subr.mxu0 0.0
        %5925 = vmatpush2.msra.mxu0 0.0
        %5926 = vmatprep.subr.mxu0 0.0
        %5927 = vmatpush2.msra.mxu0 0.0
        %5928 = vmatprep.subr.mxu0 0.0
        %5929 = vmatpush2.msra.mxu0 0.0
        %5930 = vmatprep.subr.mxu0 0.0
        %5931 = vmatpush2.msra.mxu0 0.0
        %5932 = vmatprep.subr.mxu0 0.0
        %5933 = vmatpush2.msra.mxu0 0.0
        %5934 = vmatprep.subr.mxu0 0.0
        %5935 = vmatpush2.msra.mxu0 0.0
        %5936 = vmatprep.subr.mxu0 0.0
        %5937 = vmatpush2.msra.mxu0 0.0
        %5938 = vmatprep.subr.mxu0 0.0
        %5939 = vmatpush2.msra.mxu0 0.0
        %5940 = vmatprep.subr.mxu0 0.0
        %5941 = vmatpush2.msra.mxu0 0.0
        %5942 = vmatprep.subr.mxu0 0.0
        %5943 = vmatpush2.msra.mxu0 0.0
        %5944 = vmatprep.subr.mxu0 0.0
        %5945 = vmatpush2.msra.mxu0 0.0
        %5946 = vmatprep.subr.mxu0 0.0
        %5947 = vmatpush2.msra.mxu0 0.0
        %5948 = vmatprep.subr.mxu0 0.0
        %5949 = vmatpush2.msra.mxu0 0.0
        %5950 = vmatprep.subr.mxu0 0.0
        %5951 = vmatpush2.msra.mxu0 0.0
        %5952 = vmatprep.subr.mxu0 0.0
        %5953 = vmatpush2.msra.mxu0 0.0
        %5954 = vmatprep.subr.mxu0 0.0
        %5955 = vmatpush2.msra.mxu0 0.0
        %5956 = vmatprep.mubr.f32.mxu0 0.0
        %5957 = vmatmul.mubr.f32.gmra.mxu0 %v5792
        %v5958 = vpop.f32.mrf.mxu0
        %v5959 = vadd.f32 %v5774, %v5958
        %v5960 = vpop.f32.mrf.mxu0
        %v5961 = vadd.f32 %v5774, %v5960
        %5962 = vmatprep.mubr.f32.mxu0 0.0
        %5963 = vmatmul.mubr.f32.gmra.mxu0 %v5795
        %v5964 = vpop.f32.mrf.mxu0
        %v5965 = vadd.f32 %v5779, %v5964
        %v5966 = vpop.f32.mrf.mxu0
        %v5967 = vadd.f32 %v5779, %v5966
        %5968 = vmatprep.mubr.f32.mxu0 0.0
        %5969 = vmatmul.mubr.f32.gmra.mxu0 %v5798
        %v5970 = vpop.f32.mrf.mxu0
        %v5971 = vadd.f32 %v5784, %v5970
        %v5972 = vpop.f32.mrf.mxu0
        %v5973 = vadd.f32 %v5784, %v5972
        %5974 = vmatprep.mubr.f32.mxu0 0.0
        %5975 = vmatmul.mubr.f32.gmra.mxu0 %v5801
        %v5976 = vpop.f32.mrf.mxu0
        %v5977 = vadd.f32 %v5789, %v5976
        %v5978 = vpop.f32.mrf.mxu0
        %v5979 = vadd.f32 %v5789, %v5978
        %5980 = vdwg.mxu0
        %v5981 = vtanh.pop %v5870
        %v5982 = vtanh.pop %v5872
        %v5983 = vtanh.pop %v5959
        %v5984 = vtanh.pop %v5961
        %v5985 = vtanh.pop %v5876
        %v5986 = vtanh.pop %v5878
        %v5987 = vtanh.pop %v5965
        %v5988 = vtanh.pop %v5967
        %v5989 = vtanh.pop %v5882
        %v5990 = vtanh.pop %v5884
        %v5991 = vtanh.pop %v5971
        %v5992 = vtanh.pop %v5973
        %v5993 = vtanh.pop %v5888
        %v5994 = vtanh.pop %v5890
        %v5995 = vtanh.pop %v5977
        %v5996 = vtanh.pop %v5979
        %v5997 = vadd.f32 %v5981, %v5513
        %v5998 = vadd.f32 %v5982, %v5514
        %v5999 = vadd.f32 %v5983, %v5515
        %v6000 = vadd.f32 %v5984, %v5516
        %v6001 = vadd.f32 %v5985, %v5517
        %v6002 = vadd.f32 %v5986, %v5518
        %v6003 = vadd.f32 %v5987, %v5519
        %v6004 = vadd.f32 %v5988, %v5520
        %v6005 = vadd.f32 %v5989, %v5521
        %v6006 = vadd.f32 %v5990, %v5522
        %v6007 = vadd.f32 %v5991, %v5523
        %v6008 = vadd.f32 %v5992, %v5524
        %v6009 = vadd.f32 %v5993, %v5525
        %v6010 = vadd.f32 %v5994, %v5526
        %v6011 = vadd.f32 %v5995, %v5527
        %v6012 = vadd.f32 %v5996, %v5528
        %v6013 = vld [vmem:[%s7] sm:$0xff]
        %v6014 = vld [vmem:[%s7 + $0x8] sm:$0xff]
        %v6015 = vld [vmem:[%s7 + $0x10] sm:$0xff]
        %v6016 = vld [vmem:[%s7 + $0x18] sm:$0xff]
        %6018 = vset.pattern.permute.xlu0 0
        %6019 = vperm.xlu0 %6018, %v6013
        %v6020 = vpop.permute.xlu0 %6019
        %6023 = vset.pattern.permute.xlu0 0
        %6024 = vperm.xlu0 %6023, %v6014
        %v6025 = vpop.permute.xlu0 %6024
        %6028 = vset.pattern.permute.xlu0 0
        %6029 = vperm.xlu0 %6028, %v6015
        %v6030 = vpop.permute.xlu0 %6029
        %6033 = vset.pattern.permute.xlu0 0
        %6034 = vperm.xlu0 %6033, %v6016
        %v6035 = vpop.permute.xlu0 %6034
        %v6037 = vmul.f32 %v5997, %v6020
        %v6038 = vmul.f32 %v5998, %v6020
        %v6039 = vmul.f32 %v5999, %v6020
        %v6040 = vmul.f32 %v6000, %v6020
        %v6041 = vmul.f32 %v6001, %v6025
        %v6042 = vmul.f32 %v6002, %v6025
        %v6043 = vmul.f32 %v6003, %v6025
        %v6044 = vmul.f32 %v6004, %v6025
        %v6045 = vmul.f32 %v6005, %v6030
        %v6046 = vmul.f32 %v6006, %v6030
        %v6047 = vmul.f32 %v6007, %v6030
        %v6048 = vmul.f32 %v6008, %v6030
        %v6049 = vmul.f32 %v6009, %v6035
        %v6050 = vmul.f32 %v6010, %v6035
        %v6051 = vmul.f32 %v6011, %v6035
        %v6052 = vmul.f32 %v6012, %v6035
        %v6053 = vadd.f32 %v6037, %v6041
        %v6054 = vadd.f32 %v6053, %v6045
        %v6055 = vadd.f32 %v6054, %v6049
        %v6056 = vrot.slane %v6055, 4
        %v6057 = vadd.f32 %v6055, %v6056
        %v6058 = vrot.slane %v6057, 2
        %v6059 = vadd.f32 %v6057, %v6058
        %v6060 = vrot.slane %v6059, 1
        %v6061 = vadd.f32 %v6059, %v6060
        %v6062 = vadd.f32 %v6038, %v6042
        %v6063 = vadd.f32 %v6062, %v6046
        %v6064 = vadd.f32 %v6063, %v6050
        %v6065 = vrot.slane %v6064, 4
        %v6066 = vadd.f32 %v6064, %v6065
        %v6067 = vrot.slane %v6066, 2
        %v6068 = vadd.f32 %v6066, %v6067
        %v6069 = vrot.slane %v6068, 1
        %v6070 = vadd.f32 %v6068, %v6069
        %v6071 = vadd.f32 %v6039, %v6043
        %v6072 = vadd.f32 %v6071, %v6047
        %v6073 = vadd.f32 %v6072, %v6051
        %v6074 = vrot.slane %v6073, 4
        %v6075 = vadd.f32 %v6073, %v6074
        %v6076 = vrot.slane %v6075, 2
        %v6077 = vadd.f32 %v6075, %v6076
        %v6078 = vrot.slane %v6077, 1
        %v6079 = vadd.f32 %v6077, %v6078
        %v6080 = vadd.f32 %v6040, %v6044
        %v6081 = vadd.f32 %v6080, %v6048
        %v6082 = vadd.f32 %v6081, %v6052
        %v6083 = vrot.slane %v6082, 4
        %v6084 = vadd.f32 %v6082, %v6083
        %v6085 = vrot.slane %v6084, 2
        %v6086 = vadd.f32 %v6084, %v6085
        %v6087 = vrot.slane %v6086, 1
        %v6088 = vadd.f32 %v6086, %v6087
        %v6089 = vld [vmem:[#allocation2] sm:$0x1]
        %6091 = vset.pattern.permute.xlu0 0
        %6092 = vperm.xlu0 %6091, %v6089
        %v6093 = vpop.permute.xlu0 %6092
        %v6095 = vlaneseq
        %v6096 = vshrl.u32 %v6095, 7
        %v6097 = vsub.s32 0, %v6096
        %v6098 = vrot.slane %v6093, %v6097
        %v6099 = vadd.f32 %v6061, %v6098
        %v6100 = vadd.f32 %v6070, %v6098
        %v6101 = vadd.f32 %v6079, %v6098
        %v6102 = vadd.f32 %v6088, %v6098
        %v6103 = vmul.f32 %v6099, %v4788
        %v6104 = vmul.f32 %v6100, %v4792
        %v6105 = vmul.f32 %v6101, %v4796
        %v6106 = vmul.f32 %v6102, %v4800
        %v6107 = vmul.f32 %v6103, %v4856
        %v6108 = vmul.f32 %v6104, %v4860
        %v6109 = vmul.f32 %v6105, %v4864
        %v6110 = vmul.f32 %v6106, %v4868
        %v6111 = vmul.f32 %v6107, %v4940
        %v6112 = vmul.f32 %v6108, %v4944
        %v6113 = vmul.f32 %v6109, %v4948
        %v6114 = vmul.f32 %v6110, %v4952
        %v6115 = vsub.f32 1.0, %v4757
        %v6116 = vsub.f32 1.0, %v4758
        %v6119 = vlaneseq
        %v6120 = vshrl.u32 %v6119, 7
        %v6121 = vsub.s32 0, %v6120
        %v6122 = vrot.slane %v6115, %v6121
        %v6123 = vlaneseq
        %v6124 = vshrl.u32 %v6123, 7
        %v6125 = vsub.s32 4, %v6124
        %v6126 = vrot.slane %v6115, %v6125
        %v6127 = vlaneseq
        %v6128 = vshrl.u32 %v6127, 7
        %v6129 = vsub.s32 0, %v6128
        %v6130 = vrot.slane %v6116, %v6129
        %v6131 = vlaneseq
        %v6132 = vshrl.u32 %v6131, 7
        %v6133 = vsub.s32 4, %v6132
        %v6134 = vrot.slane %v6116, %v6133
        %v6139 = vmul.f32 %v6111, %v6122
        %v6140 = vmul.f32 %v6112, %v6126
        %v6141 = vmul.f32 %v6113, %v6130
        %v6142 = vmul.f32 %v6114, %v6134
        %v6143 = vlaneseq
        %v6144 = vshrl.u32 %v6143, 7
        %v6145 = vsub.s32 1, %v6144
        %v6146 = vrot.slane %v6115, %v6145
        %v6147 = vlaneseq
        %v6148 = vshrl.u32 %v6147, 7
        %v6149 = vsub.s32 5, %v6148
        %v6150 = vrot.slane %v6115, %v6149
        %v6151 = vlaneseq
        %v6152 = vshrl.u32 %v6151, 7
        %v6153 = vsub.s32 1, %v6152
        %v6154 = vrot.slane %v6116, %v6153
        %v6155 = vlaneseq
        %v6156 = vshrl.u32 %v6155, 7
        %v6157 = vsub.s32 5, %v6156
        %v6158 = vrot.slane %v6116, %v6157
        %v6163 = vmul.f32 %v6139, %v6146
        %v6164 = vmul.f32 %v6140, %v6150
        %v6165 = vmul.f32 %v6141, %v6154
        %v6166 = vmul.f32 %v6142, %v6158
        %v6167 = vlaneseq
        %v6168 = vshrl.u32 %v6167, 7
        %v6169 = vsub.s32 2, %v6168
        %v6170 = vrot.slane %v6115, %v6169
        %v6171 = vlaneseq
        %v6172 = vshrl.u32 %v6171, 7
        %v6173 = vsub.s32 6, %v6172
        %v6174 = vrot.slane %v6115, %v6173
        %v6175 = vlaneseq
        %v6176 = vshrl.u32 %v6175, 7
        %v6177 = vsub.s32 2, %v6176
        %v6178 = vrot.slane %v6116, %v6177
        %v6179 = vlaneseq
        %v6180 = vshrl.u32 %v6179, 7
        %v6181 = vsub.s32 6, %v6180
        %v6182 = vrot.slane %v6116, %v6181
        %v6187 = vmul.f32 %v6163, %v6170
        %v6188 = vmul.f32 %v6164, %v6174
        %v6189 = vmul.f32 %v6165, %v6178
        %v6190 = vmul.f32 %v6166, %v6182
        %v6195 = vcombine.low %v6187, %v6188
        %v6196 = vcombine.low %v6189, %v6190
        %v6198 = vunpack.c.l.s4 1966171168
        %v6199 = vunpack.c.0.s8 %v6198
        %v6200 = vlaneseq
        %v6201 = vshrl.u32 %v6200, 7
        %v6202 = vsub.s32 %v6199, %v6201
        %v6203 = vrot.slane %v6195, %v6202
        %v6205 = vunpack.c.l.s4 1966171168
        %v6206 = vunpack.c.0.s8 %v6205
        %v6207 = vlaneseq
        %v6208 = vshrl.u32 %v6207, 7
        %v6209 = vsub.s32 %v6206, %v6208
        %v6210 = vrot.slane %v6196, %v6209
        %v6211 = vcombine.low %v6203, %v6210
        %v6213 = vunpack.c.l.s4 1966171168
        %v6214 = vunpack.c.0.s8 %v6213
        %v6215 = vlaneseq
        %v6216 = vshrl.u32 %v6215, 7
        %v6217 = vsub.s32 %v6214, %v6216
        %v6218 = vrot.slane %v6211, %v6217
        %s6220 = scalar_lea.vmem %s343, 12 [#allocation6]
        %6221 = vst.msk [vmem:[%s6220] sm:$0xf] %vm1822, %v6218
        %s6222 = sand.u32 %s228, 1
        %s6223 = scalar_lea.sflag [#allocation5], %s6222
        %s6224 = sand.u32 %s228, 1
        %s6225 = smul.addr %s6224, 16
        %s6226 = scalar_lea.vmem [#allocation6], %s6225
        // Predicated region
        $region61: #{tpu_custom_call.1} parent=55 // pred_check
          %p6227 = pneg %p238
        $region62: #{tpu_custom_call.1} parent=55 // pred_check_branch
          %6229 = sbr.rel (%p6227) target = $region64
        $region63: #{tpu_custom_call.1} parent=55 // pred_region
          %s6230 = smul.u32 16, %s26
          %s6232 = ssub.s32 256, 256
          %6233 = vsyncadd %s6223, %s6232
          %s6234 = smul.addr %s6230, 16
          %s6235 = scalar_lea.hbm %s9, %s6234
          %s6237 = sshll.u32 %s6226, 4
          %s6238 = int_to_ptr.vmem [resolvable:$true] %s6237
          %6240 = dma.vmem_to_hbm [thread:$0]  %s6238, 256, %s6235, %s6223
        $region64: #{tpu_custom_call.1} parent=55 // pred_fallthru
          _
      $region56: #{tpu_custom_call.1} parent=5 // pred_fallthru
        _
      %p6241 = scmp.le.s32.totalorder 2, %s21
      // Predicated region
      $region65: #{tpu_custom_call.1} parent=5 // pred_check
        %p6242 = pneg %p6241
      $region66: #{tpu_custom_call.1} parent=5 // pred_check_branch
        %6244 = sbr.rel (%p6242) target = $region68
      $region67: #{tpu_custom_call.1} parent=5 // pred_region
        %s6245 = ssub.s32 %s21, 2
        // Predicated region
        $region69: #{tpu_custom_call.1} parent=67 // pred_check
          %p6246 = pneg %p244
        $region70: #{tpu_custom_call.1} parent=67 // pred_check_branch
          %6248 = sbr.rel (%p6246) target = $region72
        $region71: #{tpu_custom_call.1} parent=67 // pred_region
          %s6249 = sand.u32 %s229, 1
          %s6250 = scalar_lea.sflag [#allocation5], %s6249
          %s6251 = sand.u32 %s229, 1
          %s6252 = smul.addr %s6251, 16
          %s6253 = scalar_lea.vmem [#allocation6], %s6252
          %6254 = dma.done %s6250, 256
        $region72: #{tpu_custom_call.1} parent=67 // pred_fallthru
          _
      $region68: #{tpu_custom_call.1} parent=5 // pred_fallthru
        _
    $region6: #{tpu_custom_call.1} parent=1 // loop_footer
      %s25 = sadd.s32 1, %s21
    $region7: #{tpu_custom_call.1} parent=1 // loop_footer_branch
      %20 = sbr.rel target = $region3
    $region8: #{tpu_custom_call.1} parent=1 // loop_exit
      _
    %6255 = vsyncpa [#allocation4], 1
    %s6256 = scalar_lea.sflag [#allocation4], 1
    %6257 = vsyncpa %s6256, 1
    %6258 = vsyncpa [#allocation5], 1
    %s6259 = scalar_lea.sflag [#allocation5], 1
    %6260 = vsyncpa %s6259, 1

</llo_original>
